<compile_context>
chip_gen: v5e
topology: v5e:2x2
jax: 0.10.0
libtpu: 0.0.40
codegen_flags: <defaults>
</compile_context>

<pallas_src>
import numpy as np
import jax
import jax.numpy as jnp
from jax import lax
from jax.experimental import pallas as pl
from jax.experimental.pallas import tpu as pltpu


# ----------------------------------------------------------------------------
# host-side constants (align_corners=True linear interpolation, 3x3 tap masks)
# ----------------------------------------------------------------------------
def _interp_taps(n_in: int, n_out: int):
    """Per-output-row (i0, i1, w0, w1) taps for 1-D align_corners=True interp."""
    if n_in == 1 or n_out == 1:
        return [(0, 0, 1.0, 0.0)] * n_out
    scale = (n_in - 1) / (n_out - 1)
    taps = []
    for i in range(n_out):
        src = i * scale
        i0 = min(int(np.floor(src)), n_in - 1)
        i1 = min(i0 + 1, n_in - 1)
        f = float(src - i0)
        taps.append((i0, i1, 1.0 - f, f))
    return taps


def _interp_matrix(n_in: int, n_out: int) -> np.ndarray:
    """(n_out, n_in) interpolation matrix built from the same taps (reference)."""
    A = np.zeros((n_out, n_in), dtype=np.float32)
    for i, (i0, i1, w0, w1) in enumerate(_interp_taps(n_in, n_out)):
        A[i, i0] += w0
        A[i, i1] += w1
    return A


def _shift_masks(Ho: int, Wo: int) -> np.ndarray:
    """(9, Ho*Wo) validity masks for the 9 conv taps (zero padding=1)."""
    ys, xs = np.meshgrid(np.arange(Ho), np.arange(Wo), indexing="ij")
    ys = ys.reshape(-1)
    xs = xs.reshape(-1)
    masks = np.zeros((9, Ho * Wo), np.float32)
    for kh in range(3):
        for kw in range(3):
            dh, dw = kh - 1, kw - 1
            valid = (ys + dh >= 0) & (ys + dh < Ho) & (xs + dw >= 0) & (xs + dw < Wo)
            masks[kh * 3 + kw] = valid.astype(np.float32)
    return masks


def _round_up(x: int, m: int) -> int:
    return (x + m - 1) // m * m


def _pick_batch_tile(B: int) -> int:
    """Fold batches per grid step, keeping grid extent >= 2 (v7x has 2 TCs)."""
    for bt in (8, 4, 3, 2):
        if B % bt == 0 and B // bt >= 2:
            return bt
    return 1


# ----------------------------------------------------------------------------
# Pallas kernel wrapper
# ----------------------------------------------------------------------------
def up_forward(x1, x2, weight, bias=None):
    del bias  # conv bias is exactly cancelled by non-affine InstanceNorm (dead work)

    B, Cin, H, W = x1.shape
    _, _, Ho, Wo = x2.shape
    Cout = weight.shape[0]
    HoWo = Ho * Wo
    eps = 1e-5

    Cinp = _round_up(Cin, 8)     # 8-aligned channel blocks -> aligned im2col stores
    Coutp = _round_up(Cout, 8)
    K = 9 * Cinp
    bt = _pick_batch_tile(B)
    grid = (B // bt,)
    inv_n = 1.0 / float(HoWo)

    # --- host-precomputed constants (constant index maps -> DMA'd once) -------
    awT = jnp.asarray(_interp_matrix(W, Wo).T).astype(jnp.bfloat16)      # (W, Wo)
    h_taps = _interp_taps(H, Ho)                                         # python consts
    masks = jnp.asarray(_shift_masks(Ho, Wo))                            # (9, HoWo) f32
    # Conv weight -> (Coutp, 9*Cinp) im2col layout: K index = (kh*3+kw)*Cinp + ci.
    wt = jnp.transpose(weight, (0, 2, 3, 1))                             # (Cout,3,3,Cin)
    wt = jnp.pad(wt, ((0, Coutp - Cout), (0, 0), (0, 0), (0, Cinp - Cin)))
    w_mat = wt.reshape(Coutp, K).astype(jnp.bfloat16)

    # --- activations: channel-pad, flatten, cast matmul operand to bf16 -------
    x1p = jnp.pad(x1, ((0, 0), (0, Cinp - Cin), (0, 0), (0, 0)))
    x1p = x1p.reshape(B, Cinp * H, W).astype(jnp.bfloat16)
    x2p = jnp.pad(x2, ((0, 0), (0, Cinp - Cin), (0, 0), (0, 0)))
    x2p = x2p.reshape(B, Cinp, HoWo).astype(jnp.float32)

    def kernel(x1_ref, x2_ref, awT_ref, mask_ref, w_ref, o_ref, u_ref, col_ref):
        # ---- 1) W-interp: one MXU matmul over all bt*Cinp*H rows (bf16 -> f32)
        s1 = jnp.dot(x1_ref[...].reshape(bt * Cinp * H, W), awT_ref[...],
                     preferred_element_type=jnp.float32)        # (bt*Cinp*H, Wo)
        s1 = s1.reshape(bt * Cinp, H, Wo)
        x2f = x2_ref[...].reshape(bt * Cinp, HoWo)

        # ---- 2) H-interp (<=2 taps/row, VPU) fused with flatten-to-lanes + skip add
        for p, (i0, i1, w0, w1) in enumerate(h_taps):
            row = w0 * s1[:, i0, :]
            if w1 != 0.0:
                row = row + w1 * s1[:, i1, :]
            u_ref[:, p * Wo:(p + 1) * Wo] = row + x2f[:, p * Wo:(p + 1) * Wo]

        # ---- 3) per-batch: im2col (9 masked lane-rolls, aligned stores) ->
        #         one MXU conv matmul -> one-pass InstanceNorm -> LeakyReLU
        for j in range(bt):
            xs = u_ref[j * Cinp:(j + 1) * Cinp, :]               # (Cinp, HoWo) f32
            for k9 in range(9):
                kh, kw = k9 // 3, k9 % 3
                # want col[p] = xs[p + dh*Wo + dw]; roll(x, s)[i] = x[i - s]
                shift = ((1 - kh) * Wo + (1 - kw)) % HoWo
                rolled = xs if shift == 0 else pltpu.roll(xs, shift, axis=1)
                col_ref[k9 * Cinp:(k9 + 1) * Cinp, :] = (
                    rolled * mask_ref[k9:k9 + 1, :]).astype(jnp.bfloat16)

            acc = jnp.dot(w_ref[...], col_ref[...],
                          preferred_element_type=jnp.float32)    # (Coutp, HoWo)

            # InstanceNorm2d (no affine), single reduction pass, then LeakyReLU(0.2)
            mu = jnp.sum(acc, axis=1, keepdims=True) * inv_n
            ex2 = jnp.sum(acc * acc, axis=1, keepdims=True) * inv_n
            var = jnp.maximum(ex2 - mu * mu, 0.0)
            y = (acc - mu) * lax.rsqrt(var + eps)
            o_ref[j] = jnp.where(y > 0, y, 0.2 * y)

    out_flat = pl.pallas_call(
        kernel,
        out_shape=jax.ShapeDtypeStruct((B, Coutp, HoWo), jnp.float32),
        grid_spec=pltpu.PrefetchScalarGridSpec(
            num_scalar_prefetch=0,
            grid=grid,
            in_specs=[
                pl.BlockSpec((bt, Cinp * H, W), lambda i: (i, 0, 0)),   # x1 (padded)
                pl.BlockSpec((bt, Cinp, HoWo), lambda i: (i, 0, 0)),    # x2 (padded)
                pl.BlockSpec((W, Wo), lambda i: (0, 0)),                # W-interp matrix
                pl.BlockSpec((9, HoWo), lambda i: (0, 0)),              # tap masks
                pl.BlockSpec((Coutp, K), lambda i: (0, 0)),             # conv weights
            ],
            out_specs=pl.BlockSpec((bt, Coutp, HoWo), lambda i: (i, 0, 0)),
            scratch_shapes=[
                pltpu.VMEM((bt * Cinp, HoWo), jnp.float32),             # upsampled+skip
                pltpu.VMEM((K, HoWo), jnp.bfloat16),                    # im2col slab
            ],
        ),
        compiler_params=pltpu.CompilerParams(
            dimension_semantics=("parallel",),
            vmem_limit_bytes=48 * 1024 * 1024,   # fits v7x's 64 MiB with headroom
        ),
    )(x1p, x2p, awT, masks, w_mat)

    return out_flat[:, :Cout, :].reshape(B, Cout, Ho, Wo)


# ----------------------------------------------------------------------------
# pure-JAX f32 reference (matches PyTorch Up.forward semantics)
# ----------------------------------------------------------------------------
def up_reference(x1, x2, weight, bias):
    _, _, H, W = x1.shape
    _, _, Ho, Wo = x2.shape
    ah = jnp.asarray(_interp_matrix(H, Ho))
    aw = jnp.asarray(_interp_matrix(W, Wo))
    up = jnp.einsum("ph,bchw->bcpw", ah, x1)
    up = jnp.einsum("qw,bcpw->bcpq", aw, up)
    x = up + x2
    y = lax.conv_general_dilated(x, weight, window_strides=(1, 1),
                                 padding=((1, 1), (1, 1)),
                                 dimension_numbers=("NCHW", "OIHW", "NCHW"))
    y = y + bias[None, :, None, None]
    mu = y.mean(axis=(2, 3), keepdims=True)
    var = ((y - mu) ** 2).mean(axis=(2, 3), keepdims=True)
    y = (y - mu) / jnp.sqrt(var + 1e-5)
    return jnp.where(y > 0, y, 0.2 * y)


if __name__ == "__main__":
    B, Cin, Cout = 4, 4, 8
    H = W = 8  # Up doubles spatial dims: output is 16x16

    key = jax.random.PRNGKey(0)
    k1, k2, k3, k4 = jax.random.split(key, 4)
    x1 = jax.random.normal(k1, (B, Cin, H, W), jnp.float32)
    x2 = jax.random.normal(k2, (B, Cin, 2 * H, 2 * W), jnp.float32)
    weight = jax.random.normal(k3, (Cout, Cin, 3, 3), jnp.float32) * 0.1
    bias = jax.random.normal(k4, (Cout,), jnp.float32) * 0.1

    out = jax.block_until_ready(up_forward(x1, x2, weight, bias))

    ref = up_reference(x1, x2, weight, bias)
    assert out.shape == (B, Cout, 2 * H, 2 * W)
    # bf16 matmul operands (f32 accumulation) -> compare with bf16-level tolerance.
    assert np.allclose(np.asarray(out), np.asarray(ref), rtol=5e-2, atol=7.5e-2), \
        "Pallas kernel output mismatch vs JAX reference"
    print("KERNEL_OK")
</pallas_src>

<mosaic_0001>
module attributes {stable_mosaic.version = 11 : i64} {
  func.func @kernel(%arg0: i32, %arg1: memref<2x64x8xbf16, #tpu.memory_space<vmem>>, %arg2: memref<2x8x256xf32, #tpu.memory_space<vmem>>, %arg3: memref<8x16xbf16, #tpu.memory_space<vmem>>, %arg4: memref<9x256xf32, #tpu.memory_space<vmem>>, %arg5: memref<8x72xbf16, #tpu.memory_space<vmem>>, %arg6: memref<2x8x256xf32, #tpu.memory_space<vmem>>, %arg7: memref<16x256xf32, #tpu.memory_space<vmem>>, %arg8: memref<72x256xbf16, #tpu.memory_space<vmem>>) attributes {dimension_semantics = [#tpu.dimension_semantics<parallel>], iteration_bounds = array<i64: 2>, scalar_prefetch = 0 : i64, scratch_operands = 2 : i64, tpu.core_type = #tpu.core_type<tc>, window_params = [{transform_indices = @transform_0, window_bounds = array<i64: 2, 64, 8>}, {transform_indices = @transform_1, window_bounds = array<i64: 2, 8, 256>}, {pipeline_mode = #tpu.pipeline_mode<synchronous>, transform_indices = @transform_2, window_bounds = array<i64: 8, 16>}, {pipeline_mode = #tpu.pipeline_mode<synchronous>, transform_indices = @transform_3, window_bounds = array<i64: 9, 256>}, {pipeline_mode = #tpu.pipeline_mode<synchronous>, transform_indices = @transform_4, window_bounds = array<i64: 8, 72>}, {transform_indices = @transform_5, window_bounds = array<i64: 2, 8, 256>}]} {
    %c0 = arith.constant 0 : index
    %c0_0 = arith.constant 0 : index
    %c0_1 = arith.constant 0 : index
    %0 = vector.load %arg1[%c0, %c0_0, %c0_1] : memref<2x64x8xbf16, #tpu.memory_space<vmem>>, vector<2x64x8xbf16>
    %1 = vector.shape_cast %0 : vector<2x64x8xbf16> to vector<128x8xbf16>
    %c0_2 = arith.constant 0 : index
    %c0_3 = arith.constant 0 : index
    %2 = vector.load %arg3[%c0_2, %c0_3] : memref<8x16xbf16, #tpu.memory_space<vmem>>, vector<8x16xbf16>
    %cst = arith.constant dense<0.000000e+00> : vector<128x16xf32>
    %3 = tpu.matmul %1, %2, %cst {dimension_numbers = #tpu.dot_dimension_numbers<[1], [0], [0], [1], [0, 0, 1, 1], [], []>} : vector<128x8xbf16>, vector<8x16xbf16>, vector<128x16xf32> -> vector<128x16xf32>
    %4 = vector.shape_cast %3 : vector<128x16xf32> to vector<16x8x16xf32>
    %c0_4 = arith.constant 0 : index
    %c0_5 = arith.constant 0 : index
    %c0_6 = arith.constant 0 : index
    %5 = vector.load %arg2[%c0_4, %c0_5, %c0_6] : memref<2x8x256xf32, #tpu.memory_space<vmem>>, vector<2x8x256xf32>
    %6 = vector.shape_cast %5 : vector<2x8x256xf32> to vector<16x256xf32>
    %7 = vector.extract_strided_slice %4 {offsets = [0, 0, 0], sizes = [16, 1, 16], strides = [1, 1, 1]} : vector<16x8x16xf32> to vector<16x1x16xf32>
    %8 = vector.shape_cast %7 : vector<16x1x16xf32> to vector<16x16xf32>
    %cst_7 = arith.constant 1.000000e+00 : f32
    %9 = vector.broadcast %cst_7 : f32 to vector<16x16xf32>
    %10 = arith.mulf %9, %8 : vector<16x16xf32>
    %11 = vector.extract_strided_slice %6 {offsets = [0, 0], sizes = [16, 16], strides = [1, 1]} : vector<16x256xf32> to vector<16x16xf32>
    %12 = arith.addf %10, %11 : vector<16x16xf32>
    %c0_8 = arith.constant 0 : index
    %c0_9 = arith.constant 0 : index
    %13 = vector.load %arg7[%c0_8, %c0_9] : memref<16x256xf32, #tpu.memory_space<vmem>>, vector<16x16xf32>
    tpu.vector_store %arg7[%c0_8, %c0_9], %12 {strides = array<i32>} : memref<16x256xf32, #tpu.memory_space<vmem>>, vector<16x16xf32>,
    %14 = vector.extract_strided_slice %4 {offsets = [0, 0, 0], sizes = [16, 1, 16], strides = [1, 1, 1]} : vector<16x8x16xf32> to vector<16x1x16xf32>
    %15 = vector.shape_cast %14 : vector<16x1x16xf32> to vector<16x16xf32>
    %cst_10 = arith.constant 0.533333361 : f32
    %16 = vector.broadcast %cst_10 : f32 to vector<16x16xf32>
    %17 = arith.mulf %16, %15 : vector<16x16xf32>
    %18 = vector.extract_strided_slice %4 {offsets = [0, 1, 0], sizes = [16, 1, 16], strides = [1, 1, 1]} : vector<16x8x16xf32> to vector<16x1x16xf32>
    %19 = vector.shape_cast %18 : vector<16x1x16xf32> to vector<16x16xf32>
    %cst_11 = arith.constant 0.466666669 : f32
    %20 = vector.broadcast %cst_11 : f32 to vector<16x16xf32>
    %21 = arith.mulf %20, %19 : vector<16x16xf32>
    %22 = arith.addf %17, %21 : vector<16x16xf32>
    %23 = vector.extract_strided_slice %6 {offsets = [0, 16], sizes = [16, 16], strides = [1, 1]} : vector<16x256xf32> to vector<16x16xf32>
    %24 = arith.addf %22, %23 : vector<16x16xf32>
    %c0_12 = arith.constant 0 : index
    %c16 = arith.constant 16 : index
    %25 = vector.load %arg7[%c0_12, %c16] : memref<16x256xf32, #tpu.memory_space<vmem>>, vector<16x16xf32>
    tpu.vector_store %arg7[%c0_12, %c16], %24 {strides = array<i32>} : memref<16x256xf32, #tpu.memory_space<vmem>>, vector<16x16xf32>,
    %26 = vector.extract_strided_slice %4 {offsets = [0, 0, 0], sizes = [16, 1, 16], strides = [1, 1, 1]} : vector<16x8x16xf32> to vector<16x1x16xf32>
    %27 = vector.shape_cast %26 : vector<16x1x16xf32> to vector<16x16xf32>
    %cst_13 = arith.constant 0.0666666701 : f32
    %28 = vector.broadcast %cst_13 : f32 to vector<16x16xf32>
    %29 = arith.mulf %28, %27 : vector<16x16xf32>
    %30 = vector.extract_strided_slice %4 {offsets = [0, 1, 0], sizes = [16, 1, 16], strides = [1, 1, 1]} : vector<16x8x16xf32> to vector<16x1x16xf32>
    %31 = vector.shape_cast %30 : vector<16x1x16xf32> to vector<16x16xf32>
    %cst_14 = arith.constant 0.933333337 : f32
    %32 = vector.broadcast %cst_14 : f32 to vector<16x16xf32>
    %33 = arith.mulf %32, %31 : vector<16x16xf32>
    %34 = arith.addf %29, %33 : vector<16x16xf32>
    %35 = vector.extract_strided_slice %6 {offsets = [0, 32], sizes = [16, 16], strides = [1, 1]} : vector<16x256xf32> to vector<16x16xf32>
    %36 = arith.addf %34, %35 : vector<16x16xf32>
    %c0_15 = arith.constant 0 : index
    %c32 = arith.constant 32 : index
    %37 = vector.load %arg7[%c0_15, %c32] : memref<16x256xf32, #tpu.memory_space<vmem>>, vector<16x16xf32>
    tpu.vector_store %arg7[%c0_15, %c32], %36 {strides = array<i32>} : memref<16x256xf32, #tpu.memory_space<vmem>>, vector<16x16xf32>,
    %38 = vector.extract_strided_slice %4 {offsets = [0, 1, 0], sizes = [16, 1, 16], strides = [1, 1, 1]} : vector<16x8x16xf32> to vector<16x1x16xf32>
    %39 = vector.shape_cast %38 : vector<16x1x16xf32> to vector<16x16xf32>
    %cst_16 = arith.constant 6.000000e-01 : f32
    %40 = vector.broadcast %cst_16 : f32 to vector<16x16xf32>
    %41 = arith.mulf %40, %39 : vector<16x16xf32>
    %42 = vector.extract_strided_slice %4 {offsets = [0, 2, 0], sizes = [16, 1, 16], strides = [1, 1, 1]} : vector<16x8x16xf32> to vector<16x1x16xf32>
    %43 = vector.shape_cast %42 : vector<16x1x16xf32> to vector<16x16xf32>
    %cst_17 = arith.constant 4.000000e-01 : f32
    %44 = vector.broadcast %cst_17 : f32 to vector<16x16xf32>
    %45 = arith.mulf %44, %43 : vector<16x16xf32>
    %46 = arith.addf %41, %45 : vector<16x16xf32>
    %47 = vector.extract_strided_slice %6 {offsets = [0, 48], sizes = [16, 16], strides = [1, 1]} : vector<16x256xf32> to vector<16x16xf32>
    %48 = arith.addf %46, %47 : vector<16x16xf32>
    %c0_18 = arith.constant 0 : index
    %c48 = arith.constant 48 : index
    %49 = vector.load %arg7[%c0_18, %c48] : memref<16x256xf32, #tpu.memory_space<vmem>>, vector<16x16xf32>
    tpu.vector_store %arg7[%c0_18, %c48], %48 {strides = array<i32>} : memref<16x256xf32, #tpu.memory_space<vmem>>, vector<16x16xf32>,
    %50 = vector.extract_strided_slice %4 {offsets = [0, 1, 0], sizes = [16, 1, 16], strides = [1, 1, 1]} : vector<16x8x16xf32> to vector<16x1x16xf32>
    %51 = vector.shape_cast %50 : vector<16x1x16xf32> to vector<16x16xf32>
    %cst_19 = arith.constant 0.13333334 : f32
    %52 = vector.broadcast %cst_19 : f32 to vector<16x16xf32>
    %53 = arith.mulf %52, %51 : vector<16x16xf32>
    %54 = vector.extract_strided_slice %4 {offsets = [0, 2, 0], sizes = [16, 1, 16], strides = [1, 1, 1]} : vector<16x8x16xf32> to vector<16x1x16xf32>
    %55 = vector.shape_cast %54 : vector<16x1x16xf32> to vector<16x16xf32>
    %cst_20 = arith.constant 0.866666674 : f32
    %56 = vector.broadcast %cst_20 : f32 to vector<16x16xf32>
    %57 = arith.mulf %56, %55 : vector<16x16xf32>
    %58 = arith.addf %53, %57 : vector<16x16xf32>
    %59 = vector.extract_strided_slice %6 {offsets = [0, 64], sizes = [16, 16], strides = [1, 1]} : vector<16x256xf32> to vector<16x16xf32>
    %60 = arith.addf %58, %59 : vector<16x16xf32>
    %c0_21 = arith.constant 0 : index
    %c64 = arith.constant 64 : index
    %61 = vector.load %arg7[%c0_21, %c64] : memref<16x256xf32, #tpu.memory_space<vmem>>, vector<16x16xf32>
    tpu.vector_store %arg7[%c0_21, %c64], %60 {strides = array<i32>} : memref<16x256xf32, #tpu.memory_space<vmem>>, vector<16x16xf32>,
    %62 = vector.extract_strided_slice %4 {offsets = [0, 2, 0], sizes = [16, 1, 16], strides = [1, 1, 1]} : vector<16x8x16xf32> to vector<16x1x16xf32>
    %63 = vector.shape_cast %62 : vector<16x1x16xf32> to vector<16x16xf32>
    %cst_22 = arith.constant 0.666666686 : f32
    %64 = vector.broadcast %cst_22 : f32 to vector<16x16xf32>
    %65 = arith.mulf %64, %63 : vector<16x16xf32>
    %66 = vector.extract_strided_slice %4 {offsets = [0, 3, 0], sizes = [16, 1, 16], strides = [1, 1, 1]} : vector<16x8x16xf32> to vector<16x1x16xf32>
    %67 = vector.shape_cast %66 : vector<16x1x16xf32> to vector<16x16xf32>
    %cst_23 = arith.constant 0.333333343 : f32
    %68 = vector.broadcast %cst_23 : f32 to vector<16x16xf32>
    %69 = arith.mulf %68, %67 : vector<16x16xf32>
    %70 = arith.addf %65, %69 : vector<16x16xf32>
    %71 = vector.extract_strided_slice %6 {offsets = [0, 80], sizes = [16, 16], strides = [1, 1]} : vector<16x256xf32> to vector<16x16xf32>
    %72 = arith.addf %70, %71 : vector<16x16xf32>
    %c0_24 = arith.constant 0 : index
    %c80 = arith.constant 80 : index
    %73 = vector.load %arg7[%c0_24, %c80] : memref<16x256xf32, #tpu.memory_space<vmem>>, vector<16x16xf32>
    tpu.vector_store %arg7[%c0_24, %c80], %72 {strides = array<i32>} : memref<16x256xf32, #tpu.memory_space<vmem>>, vector<16x16xf32>,
    %74 = vector.extract_strided_slice %4 {offsets = [0, 2, 0], sizes = [16, 1, 16], strides = [1, 1, 1]} : vector<16x8x16xf32> to vector<16x1x16xf32>
    %75 = vector.shape_cast %74 : vector<16x1x16xf32> to vector<16x16xf32>
    %cst_25 = arith.constant 2.000000e-01 : f32
    %76 = vector.broadcast %cst_25 : f32 to vector<16x16xf32>
    %77 = arith.mulf %76, %75 : vector<16x16xf32>
    %78 = vector.extract_strided_slice %4 {offsets = [0, 3, 0], sizes = [16, 1, 16], strides = [1, 1, 1]} : vector<16x8x16xf32> to vector<16x1x16xf32>
    %79 = vector.shape_cast %78 : vector<16x1x16xf32> to vector<16x16xf32>
    %cst_26 = arith.constant 8.000000e-01 : f32
    %80 = vector.broadcast %cst_26 : f32 to vector<16x16xf32>
    %81 = arith.mulf %80, %79 : vector<16x16xf32>
    %82 = arith.addf %77, %81 : vector<16x16xf32>
    %83 = vector.extract_strided_slice %6 {offsets = [0, 96], sizes = [16, 16], strides = [1, 1]} : vector<16x256xf32> to vector<16x16xf32>
    %84 = arith.addf %82, %83 : vector<16x16xf32>
    %c0_27 = arith.constant 0 : index
    %c96 = arith.constant 96 : index
    %85 = vector.load %arg7[%c0_27, %c96] : memref<16x256xf32, #tpu.memory_space<vmem>>, vector<16x16xf32>
    tpu.vector_store %arg7[%c0_27, %c96], %84 {strides = array<i32>} : memref<16x256xf32, #tpu.memory_space<vmem>>, vector<16x16xf32>,
    %86 = vector.extract_strided_slice %4 {offsets = [0, 3, 0], sizes = [16, 1, 16], strides = [1, 1, 1]} : vector<16x8x16xf32> to vector<16x1x16xf32>
    %87 = vector.shape_cast %86 : vector<16x1x16xf32> to vector<16x16xf32>
    %cst_28 = arith.constant 0.733333349 : f32
    %88 = vector.broadcast %cst_28 : f32 to vector<16x16xf32>
    %89 = arith.mulf %88, %87 : vector<16x16xf32>
    %90 = vector.extract_strided_slice %4 {offsets = [0, 4, 0], sizes = [16, 1, 16], strides = [1, 1, 1]} : vector<16x8x16xf32> to vector<16x1x16xf32>
    %91 = vector.shape_cast %90 : vector<16x1x16xf32> to vector<16x16xf32>
    %cst_29 = arith.constant 0.266666681 : f32
    %92 = vector.broadcast %cst_29 : f32 to vector<16x16xf32>
    %93 = arith.mulf %92, %91 : vector<16x16xf32>
    %94 = arith.addf %89, %93 : vector<16x16xf32>
    %95 = vector.extract_strided_slice %6 {offsets = [0, 112], sizes = [16, 16], strides = [1, 1]} : vector<16x256xf32> to vector<16x16xf32>
    %96 = arith.addf %94, %95 : vector<16x16xf32>
    %c0_30 = arith.constant 0 : index
    %c112 = arith.constant 112 : index
    %97 = vector.load %arg7[%c0_30, %c112] : memref<16x256xf32, #tpu.memory_space<vmem>>, vector<16x16xf32>
    tpu.vector_store %arg7[%c0_30, %c112], %96 {strides = array<i32>} : memref<16x256xf32, #tpu.memory_space<vmem>>, vector<16x16xf32>,
    %98 = vector.extract_strided_slice %4 {offsets = [0, 3, 0], sizes = [16, 1, 16], strides = [1, 1, 1]} : vector<16x8x16xf32> to vector<16x1x16xf32>
    %99 = vector.shape_cast %98 : vector<16x1x16xf32> to vector<16x16xf32>
    %cst_31 = arith.constant 0.266666681 : f32
    %100 = vector.broadcast %cst_31 : f32 to vector<16x16xf32>
    %101 = arith.mulf %100, %99 : vector<16x16xf32>
    %102 = vector.extract_strided_slice %4 {offsets = [0, 4, 0], sizes = [16, 1, 16], strides = [1, 1, 1]} : vector<16x8x16xf32> to vector<16x1x16xf32>
    %103 = vector.shape_cast %102 : vector<16x1x16xf32> to vector<16x16xf32>
    %cst_32 = arith.constant 0.733333349 : f32
    %104 = vector.broadcast %cst_32 : f32 to vector<16x16xf32>
    %105 = arith.mulf %104, %103 : vector<16x16xf32>
    %106 = arith.addf %101, %105 : vector<16x16xf32>
    %107 = vector.extract_strided_slice %6 {offsets = [0, 128], sizes = [16, 16], strides = [1, 1]} : vector<16x256xf32> to vector<16x16xf32>
    %108 = arith.addf %106, %107 : vector<16x16xf32>
    %c0_33 = arith.constant 0 : index
    %c128 = arith.constant 128 : index
    %109 = vector.load %arg7[%c0_33, %c128] : memref<16x256xf32, #tpu.memory_space<vmem>>, vector<16x16xf32>
    tpu.vector_store %arg7[%c0_33, %c128], %108 {strides = array<i32>} : memref<16x256xf32, #tpu.memory_space<vmem>>, vector<16x16xf32>,
    %110 = vector.extract_strided_slice %4 {offsets = [0, 4, 0], sizes = [16, 1, 16], strides = [1, 1, 1]} : vector<16x8x16xf32> to vector<16x1x16xf32>
    %111 = vector.shape_cast %110 : vector<16x1x16xf32> to vector<16x16xf32>
    %cst_34 = arith.constant 8.000000e-01 : f32
    %112 = vector.broadcast %cst_34 : f32 to vector<16x16xf32>
    %113 = arith.mulf %112, %111 : vector<16x16xf32>
    %114 = vector.extract_strided_slice %4 {offsets = [0, 5, 0], sizes = [16, 1, 16], strides = [1, 1, 1]} : vector<16x8x16xf32> to vector<16x1x16xf32>
    %115 = vector.shape_cast %114 : vector<16x1x16xf32> to vector<16x16xf32>
    %cst_35 = arith.constant 2.000000e-01 : f32
    %116 = vector.broadcast %cst_35 : f32 to vector<16x16xf32>
    %117 = arith.mulf %116, %115 : vector<16x16xf32>
    %118 = arith.addf %113, %117 : vector<16x16xf32>
    %119 = vector.extract_strided_slice %6 {offsets = [0, 144], sizes = [16, 16], strides = [1, 1]} : vector<16x256xf32> to vector<16x16xf32>
    %120 = arith.addf %118, %119 : vector<16x16xf32>
    %c0_36 = arith.constant 0 : index
    %c144 = arith.constant 144 : index
    %121 = vector.load %arg7[%c0_36, %c144] : memref<16x256xf32, #tpu.memory_space<vmem>>, vector<16x16xf32>
    tpu.vector_store %arg7[%c0_36, %c144], %120 {strides = array<i32>} : memref<16x256xf32, #tpu.memory_space<vmem>>, vector<16x16xf32>,
    %122 = vector.extract_strided_slice %4 {offsets = [0, 4, 0], sizes = [16, 1, 16], strides = [1, 1, 1]} : vector<16x8x16xf32> to vector<16x1x16xf32>
    %123 = vector.shape_cast %122 : vector<16x1x16xf32> to vector<16x16xf32>
    %cst_37 = arith.constant 0.333333343 : f32
    %124 = vector.broadcast %cst_37 : f32 to vector<16x16xf32>
    %125 = arith.mulf %124, %123 : vector<16x16xf32>
    %126 = vector.extract_strided_slice %4 {offsets = [0, 5, 0], sizes = [16, 1, 16], strides = [1, 1, 1]} : vector<16x8x16xf32> to vector<16x1x16xf32>
    %127 = vector.shape_cast %126 : vector<16x1x16xf32> to vector<16x16xf32>
    %cst_38 = arith.constant 0.666666686 : f32
    %128 = vector.broadcast %cst_38 : f32 to vector<16x16xf32>
    %129 = arith.mulf %128, %127 : vector<16x16xf32>
    %130 = arith.addf %125, %129 : vector<16x16xf32>
    %131 = vector.extract_strided_slice %6 {offsets = [0, 160], sizes = [16, 16], strides = [1, 1]} : vector<16x256xf32> to vector<16x16xf32>
    %132 = arith.addf %130, %131 : vector<16x16xf32>
    %c0_39 = arith.constant 0 : index
    %c160 = arith.constant 160 : index
    %133 = vector.load %arg7[%c0_39, %c160] : memref<16x256xf32, #tpu.memory_space<vmem>>, vector<16x16xf32>
    tpu.vector_store %arg7[%c0_39, %c160], %132 {strides = array<i32>} : memref<16x256xf32, #tpu.memory_space<vmem>>, vector<16x16xf32>,
    %134 = vector.extract_strided_slice %4 {offsets = [0, 5, 0], sizes = [16, 1, 16], strides = [1, 1, 1]} : vector<16x8x16xf32> to vector<16x1x16xf32>
    %135 = vector.shape_cast %134 : vector<16x1x16xf32> to vector<16x16xf32>
    %cst_40 = arith.constant 0.866666674 : f32
    %136 = vector.broadcast %cst_40 : f32 to vector<16x16xf32>
    %137 = arith.mulf %136, %135 : vector<16x16xf32>
    %138 = vector.extract_strided_slice %4 {offsets = [0, 6, 0], sizes = [16, 1, 16], strides = [1, 1, 1]} : vector<16x8x16xf32> to vector<16x1x16xf32>
    %139 = vector.shape_cast %138 : vector<16x1x16xf32> to vector<16x16xf32>
    %cst_41 = arith.constant 0.13333334 : f32
    %140 = vector.broadcast %cst_41 : f32 to vector<16x16xf32>
    %141 = arith.mulf %140, %139 : vector<16x16xf32>
    %142 = arith.addf %137, %141 : vector<16x16xf32>
    %143 = vector.extract_strided_slice %6 {offsets = [0, 176], sizes = [16, 16], strides = [1, 1]} : vector<16x256xf32> to vector<16x16xf32>
    %144 = arith.addf %142, %143 : vector<16x16xf32>
    %c0_42 = arith.constant 0 : index
    %c176 = arith.constant 176 : index
    %145 = vector.load %arg7[%c0_42, %c176] : memref<16x256xf32, #tpu.memory_space<vmem>>, vector<16x16xf32>
    tpu.vector_store %arg7[%c0_42, %c176], %144 {strides = array<i32>} : memref<16x256xf32, #tpu.memory_space<vmem>>, vector<16x16xf32>,
    %146 = vector.extract_strided_slice %4 {offsets = [0, 5, 0], sizes = [16, 1, 16], strides = [1, 1, 1]} : vector<16x8x16xf32> to vector<16x1x16xf32>
    %147 = vector.shape_cast %146 : vector<16x1x16xf32> to vector<16x16xf32>
    %cst_43 = arith.constant 4.000000e-01 : f32
    %148 = vector.broadcast %cst_43 : f32 to vector<16x16xf32>
    %149 = arith.mulf %148, %147 : vector<16x16xf32>
    %150 = vector.extract_strided_slice %4 {offsets = [0, 6, 0], sizes = [16, 1, 16], strides = [1, 1, 1]} : vector<16x8x16xf32> to vector<16x1x16xf32>
    %151 = vector.shape_cast %150 : vector<16x1x16xf32> to vector<16x16xf32>
    %cst_44 = arith.constant 6.000000e-01 : f32
    %152 = vector.broadcast %cst_44 : f32 to vector<16x16xf32>
    %153 = arith.mulf %152, %151 : vector<16x16xf32>
    %154 = arith.addf %149, %153 : vector<16x16xf32>
    %155 = vector.extract_strided_slice %6 {offsets = [0, 192], sizes = [16, 16], strides = [1, 1]} : vector<16x256xf32> to vector<16x16xf32>
    %156 = arith.addf %154, %155 : vector<16x16xf32>
    %c0_45 = arith.constant 0 : index
    %c192 = arith.constant 192 : index
    %157 = vector.load %arg7[%c0_45, %c192] : memref<16x256xf32, #tpu.memory_space<vmem>>, vector<16x16xf32>
    tpu.vector_store %arg7[%c0_45, %c192], %156 {strides = array<i32>} : memref<16x256xf32, #tpu.memory_space<vmem>>, vector<16x16xf32>,
    %158 = vector.extract_strided_slice %4 {offsets = [0, 6, 0], sizes = [16, 1, 16], strides = [1, 1, 1]} : vector<16x8x16xf32> to vector<16x1x16xf32>
    %159 = vector.shape_cast %158 : vector<16x1x16xf32> to vector<16x16xf32>
    %cst_46 = arith.constant 0.933333337 : f32
    %160 = vector.broadcast %cst_46 : f32 to vector<16x16xf32>
    %161 = arith.mulf %160, %159 : vector<16x16xf32>
    %162 = vector.extract_strided_slice %4 {offsets = [0, 7, 0], sizes = [16, 1, 16], strides = [1, 1, 1]} : vector<16x8x16xf32> to vector<16x1x16xf32>
    %163 = vector.shape_cast %162 : vector<16x1x16xf32> to vector<16x16xf32>
    %cst_47 = arith.constant 0.0666666701 : f32
    %164 = vector.broadcast %cst_47 : f32 to vector<16x16xf32>
    %165 = arith.mulf %164, %163 : vector<16x16xf32>
    %166 = arith.addf %161, %165 : vector<16x16xf32>
    %167 = vector.extract_strided_slice %6 {offsets = [0, 208], sizes = [16, 16], strides = [1, 1]} : vector<16x256xf32> to vector<16x16xf32>
    %168 = arith.addf %166, %167 : vector<16x16xf32>
    %c0_48 = arith.constant 0 : index
    %c208 = arith.constant 208 : index
    %169 = vector.load %arg7[%c0_48, %c208] : memref<16x256xf32, #tpu.memory_space<vmem>>, vector<16x16xf32>
    tpu.vector_store %arg7[%c0_48, %c208], %168 {strides = array<i32>} : memref<16x256xf32, #tpu.memory_space<vmem>>, vector<16x16xf32>,
    %170 = vector.extract_strided_slice %4 {offsets = [0, 6, 0], sizes = [16, 1, 16], strides = [1, 1, 1]} : vector<16x8x16xf32> to vector<16x1x16xf32>
    %171 = vector.shape_cast %170 : vector<16x1x16xf32> to vector<16x16xf32>
    %cst_49 = arith.constant 0.466666669 : f32
    %172 = vector.broadcast %cst_49 : f32 to vector<16x16xf32>
    %173 = arith.mulf %172, %171 : vector<16x16xf32>
    %174 = vector.extract_strided_slice %4 {offsets = [0, 7, 0], sizes = [16, 1, 16], strides = [1, 1, 1]} : vector<16x8x16xf32> to vector<16x1x16xf32>
    %175 = vector.shape_cast %174 : vector<16x1x16xf32> to vector<16x16xf32>
    %cst_50 = arith.constant 0.533333361 : f32
    %176 = vector.broadcast %cst_50 : f32 to vector<16x16xf32>
    %177 = arith.mulf %176, %175 : vector<16x16xf32>
    %178 = arith.addf %173, %177 : vector<16x16xf32>
    %179 = vector.extract_strided_slice %6 {offsets = [0, 224], sizes = [16, 16], strides = [1, 1]} : vector<16x256xf32> to vector<16x16xf32>
    %180 = arith.addf %178, %179 : vector<16x16xf32>
    %c0_51 = arith.constant 0 : index
    %c224 = arith.constant 224 : index
    %181 = vector.load %arg7[%c0_51, %c224] : memref<16x256xf32, #tpu.memory_space<vmem>>, vector<16x16xf32>
    tpu.vector_store %arg7[%c0_51, %c224], %180 {strides = array<i32>} : memref<16x256xf32, #tpu.memory_space<vmem>>, vector<16x16xf32>,
    %182 = vector.extract_strided_slice %4 {offsets = [0, 7, 0], sizes = [16, 1, 16], strides = [1, 1, 1]} : vector<16x8x16xf32> to vector<16x1x16xf32>
    %183 = vector.shape_cast %182 : vector<16x1x16xf32> to vector<16x16xf32>
    %cst_52 = arith.constant 1.000000e+00 : f32
    %184 = vector.broadcast %cst_52 : f32 to vector<16x16xf32>
    %185 = arith.mulf %184, %183 : vector<16x16xf32>
    %186 = vector.extract_strided_slice %6 {offsets = [0, 240], sizes = [16, 16], strides = [1, 1]} : vector<16x256xf32> to vector<16x16xf32>
    %187 = arith.addf %185, %186 : vector<16x16xf32>
    %c0_53 = arith.constant 0 : index
    %c240 = arith.constant 240 : index
    %188 = vector.load %arg7[%c0_53, %c240] : memref<16x256xf32, #tpu.memory_space<vmem>>, vector<16x16xf32>
    tpu.vector_store %arg7[%c0_53, %c240], %187 {strides = array<i32>} : memref<16x256xf32, #tpu.memory_space<vmem>>, vector<16x16xf32>,
    %c0_54 = arith.constant 0 : index
    %c0_55 = arith.constant 0 : index
    %189 = vector.load %arg7[%c0_54, %c0_55] : memref<16x256xf32, #tpu.memory_space<vmem>>, vector<8x256xf32>
    %c17_i32 = arith.constant 17 : i32
    %190 = tpu.dynamic_rotate %189 by %c17_i32 dim 1 : vector<8x256xf32>, i32 -> vector<8x256xf32>
    %c0_56 = arith.constant 0 : index
    %c0_57 = arith.constant 0 : index
    %191 = vector.load %arg4[%c0_56, %c0_57] : memref<9x256xf32, #tpu.memory_space<vmem>>, vector<1x256xf32>
    %192 = vector.broadcast %191 : vector<1x256xf32> to vector<8x256xf32>
    %193 = arith.mulf %190, %192 : vector<8x256xf32>
    %194 = arith.truncf %193 : vector<8x256xf32> to vector<8x256xbf16>
    %c0_58 = arith.constant 0 : index
    %c0_59 = arith.constant 0 : index
    %195 = vector.load %arg8[%c0_58, %c0_59] : memref<72x256xbf16, #tpu.memory_space<vmem>>, vector<8x256xbf16>
    tpu.vector_store %arg8[%c0_58, %c0_59], %194 {strides = array<i32>} : memref<72x256xbf16, #tpu.memory_space<vmem>>, vector<8x256xbf16>,
    %c16_i32 = arith.constant 16 : i32
    %196 = tpu.dynamic_rotate %189 by %c16_i32 dim 1 : vector<8x256xf32>, i32 -> vector<8x256xf32>
    %c1 = arith.constant 1 : index
    %c0_60 = arith.constant 0 : index
    %197 = vector.load %arg4[%c1, %c0_60] : memref<9x256xf32, #tpu.memory_space<vmem>>, vector<1x256xf32>
    %198 = vector.broadcast %197 : vector<1x256xf32> to vector<8x256xf32>
    %199 = arith.mulf %196, %198 : vector<8x256xf32>
    %200 = arith.truncf %199 : vector<8x256xf32> to vector<8x256xbf16>
    %c8 = arith.constant 8 : index
    %c0_61 = arith.constant 0 : index
    %201 = vector.load %arg8[%c8, %c0_61] : memref<72x256xbf16, #tpu.memory_space<vmem>>, vector<8x256xbf16>
    tpu.vector_store %arg8[%c8, %c0_61], %200 {strides = array<i32>} : memref<72x256xbf16, #tpu.memory_space<vmem>>, vector<8x256xbf16>,
    %c15_i32 = arith.constant 15 : i32
    %202 = tpu.dynamic_rotate %189 by %c15_i32 dim 1 : vector<8x256xf32>, i32 -> vector<8x256xf32>
    %c2 = arith.constant 2 : index
    %c0_62 = arith.constant 0 : index
    %203 = vector.load %arg4[%c2, %c0_62] : memref<9x256xf32, #tpu.memory_space<vmem>>, vector<1x256xf32>
    %204 = vector.broadcast %203 : vector<1x256xf32> to vector<8x256xf32>
    %205 = arith.mulf %202, %204 : vector<8x256xf32>
    %206 = arith.truncf %205 : vector<8x256xf32> to vector<8x256xbf16>
    %c16_63 = arith.constant 16 : index
    %c0_64 = arith.constant 0 : index
    %207 = vector.load %arg8[%c16_63, %c0_64] : memref<72x256xbf16, #tpu.memory_space<vmem>>, vector<8x256xbf16>
    tpu.vector_store %arg8[%c16_63, %c0_64], %206 {strides = array<i32>} : memref<72x256xbf16, #tpu.memory_space<vmem>>, vector<8x256xbf16>,
    %c1_i32 = arith.constant 1 : i32
    %208 = tpu.dynamic_rotate %189 by %c1_i32 dim 1 : vector<8x256xf32>, i32 -> vector<8x256xf32>
    %c3 = arith.constant 3 : index
    %c0_65 = arith.constant 0 : index
    %209 = vector.load %arg4[%c3, %c0_65] : memref<9x256xf32, #tpu.memory_space<vmem>>, vector<1x256xf32>
    %210 = vector.broadcast %209 : vector<1x256xf32> to vector<8x256xf32>
    %211 = arith.mulf %208, %210 : vector<8x256xf32>
    %212 = arith.truncf %211 : vector<8x256xf32> to vector<8x256xbf16>
    %c24 = arith.constant 24 : index
    %c0_66 = arith.constant 0 : index
    %213 = vector.load %arg8[%c24, %c0_66] : memref<72x256xbf16, #tpu.memory_space<vmem>>, vector<8x256xbf16>
    tpu.vector_store %arg8[%c24, %c0_66], %212 {strides = array<i32>} : memref<72x256xbf16, #tpu.memory_space<vmem>>, vector<8x256xbf16>,
    %c4 = arith.constant 4 : index
    %c0_67 = arith.constant 0 : index
    %214 = vector.load %arg4[%c4, %c0_67] : memref<9x256xf32, #tpu.memory_space<vmem>>, vector<1x256xf32>
    %215 = vector.broadcast %214 : vector<1x256xf32> to vector<8x256xf32>
    %216 = arith.mulf %189, %215 : vector<8x256xf32>
    %217 = arith.truncf %216 : vector<8x256xf32> to vector<8x256xbf16>
    %c32_68 = arith.constant 32 : index
    %c0_69 = arith.constant 0 : index
    %218 = vector.load %arg8[%c32_68, %c0_69] : memref<72x256xbf16, #tpu.memory_space<vmem>>, vector<8x256xbf16>
    tpu.vector_store %arg8[%c32_68, %c0_69], %217 {strides = array<i32>} : memref<72x256xbf16, #tpu.memory_space<vmem>>, vector<8x256xbf16>,
    %c255_i32 = arith.constant 255 : i32
    %219 = tpu.dynamic_rotate %189 by %c255_i32 dim 1 : vector<8x256xf32>, i32 -> vector<8x256xf32>
    %c5 = arith.constant 5 : index
    %c0_70 = arith.constant 0 : index
    %220 = vector.load %arg4[%c5, %c0_70] : memref<9x256xf32, #tpu.memory_space<vmem>>, vector<1x256xf32>
    %221 = vector.broadcast %220 : vector<1x256xf32> to vector<8x256xf32>
    %222 = arith.mulf %219, %221 : vector<8x256xf32>
    %223 = arith.truncf %222 : vector<8x256xf32> to vector<8x256xbf16>
    %c40 = arith.constant 40 : index
    %c0_71 = arith.constant 0 : index
    %224 = vector.load %arg8[%c40, %c0_71] : memref<72x256xbf16, #tpu.memory_space<vmem>>, vector<8x256xbf16>
    tpu.vector_store %arg8[%c40, %c0_71], %223 {strides = array<i32>} : memref<72x256xbf16, #tpu.memory_space<vmem>>, vector<8x256xbf16>,
    %c241_i32 = arith.constant 241 : i32
    %225 = tpu.dynamic_rotate %189 by %c241_i32 dim 1 : vector<8x256xf32>, i32 -> vector<8x256xf32>
    %c6 = arith.constant 6 : index
    %c0_72 = arith.constant 0 : index
    %226 = vector.load %arg4[%c6, %c0_72] : memref<9x256xf32, #tpu.memory_space<vmem>>, vector<1x256xf32>
    %227 = vector.broadcast %226 : vector<1x256xf32> to vector<8x256xf32>
    %228 = arith.mulf %225, %227 : vector<8x256xf32>
    %229 = arith.truncf %228 : vector<8x256xf32> to vector<8x256xbf16>
    %c48_73 = arith.constant 48 : index
    %c0_74 = arith.constant 0 : index
    %230 = vector.load %arg8[%c48_73, %c0_74] : memref<72x256xbf16, #tpu.memory_space<vmem>>, vector<8x256xbf16>
    tpu.vector_store %arg8[%c48_73, %c0_74], %229 {strides = array<i32>} : memref<72x256xbf16, #tpu.memory_space<vmem>>, vector<8x256xbf16>,
    %c240_i32 = arith.constant 240 : i32
    %231 = tpu.dynamic_rotate %189 by %c240_i32 dim 1 : vector<8x256xf32>, i32 -> vector<8x256xf32>
    %c7 = arith.constant 7 : index
    %c0_75 = arith.constant 0 : index
    %232 = vector.load %arg4[%c7, %c0_75] : memref<9x256xf32, #tpu.memory_space<vmem>>, vector<1x256xf32>
    %233 = vector.broadcast %232 : vector<1x256xf32> to vector<8x256xf32>
    %234 = arith.mulf %231, %233 : vector<8x256xf32>
    %235 = arith.truncf %234 : vector<8x256xf32> to vector<8x256xbf16>
    %c56 = arith.constant 56 : index
    %c0_76 = arith.constant 0 : index
    %236 = vector.load %arg8[%c56, %c0_76] : memref<72x256xbf16, #tpu.memory_space<vmem>>, vector<8x256xbf16>
    tpu.vector_store %arg8[%c56, %c0_76], %235 {strides = array<i32>} : memref<72x256xbf16, #tpu.memory_space<vmem>>, vector<8x256xbf16>,
    %c239_i32 = arith.constant 239 : i32
    %237 = tpu.dynamic_rotate %189 by %c239_i32 dim 1 : vector<8x256xf32>, i32 -> vector<8x256xf32>
    %c8_77 = arith.constant 8 : index
    %c0_78 = arith.constant 0 : index
    %238 = vector.load %arg4[%c8_77, %c0_78] : memref<9x256xf32, #tpu.memory_space<vmem>>, vector<1x256xf32>
    %239 = vector.broadcast %238 : vector<1x256xf32> to vector<8x256xf32>
    %240 = arith.mulf %237, %239 : vector<8x256xf32>
    %241 = arith.truncf %240 : vector<8x256xf32> to vector<8x256xbf16>
    %c64_79 = arith.constant 64 : index
    %c0_80 = arith.constant 0 : index
    %242 = vector.load %arg8[%c64_79, %c0_80] : memref<72x256xbf16, #tpu.memory_space<vmem>>, vector<8x256xbf16>
    tpu.vector_store %arg8[%c64_79, %c0_80], %241 {strides = array<i32>} : memref<72x256xbf16, #tpu.memory_space<vmem>>, vector<8x256xbf16>,
    %c0_81 = arith.constant 0 : index
    %c0_82 = arith.constant 0 : index
    %243 = vector.load %arg5[%c0_81, %c0_82] : memref<8x72xbf16, #tpu.memory_space<vmem>>, vector<8x72xbf16>
    %c0_83 = arith.constant 0 : index
    %c0_84 = arith.constant 0 : index
    %244 = vector.load %arg8[%c0_83, %c0_84] : memref<72x256xbf16, #tpu.memory_space<vmem>>, vector<72x256xbf16>
    %cst_85 = arith.constant dense<0.000000e+00> : vector<8x256xf32>
    %245 = tpu.matmul %243, %244, %cst_85 {dimension_numbers = #tpu.dot_dimension_numbers<[1], [0], [0], [1], [0, 0, 1, 1], [], []>} : vector<8x72xbf16>, vector<72x256xbf16>, vector<8x256xf32> -> vector<8x256xf32>
    %cst_86 = arith.constant dense<0.000000e+00> : vector<8xf32>
    %246 = vector.multi_reduction <add>, %245, %cst_86 [1] : vector<8x256xf32> to vector<8xf32>
    %247 = vector.shape_cast %246 : vector<8xf32> to vector<8x1xf32>
    %cst_87 = arith.constant 3.906250e-03 : f32
    %248 = vector.broadcast %cst_87 : f32 to vector<8x1xf32>
    %249 = arith.mulf %247, %248 : vector<8x1xf32>
    %250 = arith.mulf %245, %245 : vector<8x256xf32>
    %cst_88 = arith.constant dense<0.000000e+00> : vector<8xf32>
    %251 = vector.multi_reduction <add>, %250, %cst_88 [1] : vector<8x256xf32> to vector<8xf32>
    %252 = vector.shape_cast %251 : vector<8xf32> to vector<8x1xf32>
    %cst_89 = arith.constant 3.906250e-03 : f32
    %253 = vector.broadcast %cst_89 : f32 to vector<8x1xf32>
    %254 = arith.mulf %252, %253 : vector<8x1xf32>
    %255 = arith.mulf %249, %249 : vector<8x1xf32>
    %256 = arith.subf %254, %255 : vector<8x1xf32>
    %cst_90 = arith.constant 0.000000e+00 : f32
    %257 = vector.broadcast %cst_90 : f32 to vector<8x1xf32>
    %258 = arith.maximumf %256, %257 : vector<8x1xf32>
    %259 = vector.broadcast %249 : vector<8x1xf32> to vector<8x256xf32>
    %260 = arith.subf %245, %259 : vector<8x256xf32>
    %cst_91 = arith.constant 9.99999974E-6 : f32
    %261 = vector.broadcast %cst_91 : f32 to vector<8x1xf32>
    %262 = arith.addf %258, %261 : vector<8x1xf32>
    %263 = math.rsqrt %262 : vector<8x1xf32>
    %264 = vector.broadcast %263 : vector<8x1xf32> to vector<8x256xf32>
    %265 = arith.mulf %260, %264 : vector<8x256xf32>
    %cst_92 = arith.constant 0.000000e+00 : f32
    %266 = vector.broadcast %cst_92 : f32 to vector<8x256xf32>
    %267 = arith.cmpf ogt, %265, %266 : vector<8x256xf32>
    %cst_93 = arith.constant 2.000000e-01 : f32
    %268 = vector.broadcast %cst_93 : f32 to vector<8x256xf32>
    %269 = arith.mulf %268, %265 : vector<8x256xf32>
    %270 = arith.select %267, %265, %269 : vector<8x256xi1>, vector<8x256xf32>
    %c0_94 = arith.constant 0 : index
    %c0_95 = arith.constant 0 : index
    %c0_96 = arith.constant 0 : index
    %271 = vector.load %arg6[%c0_94, %c0_95, %c0_96] : memref<2x8x256xf32, #tpu.memory_space<vmem>>, vector<1x8x256xf32>
    %272 = vector.shape_cast %271 : vector<1x8x256xf32> to vector<8x256xf32>
    %273 = vector.shape_cast %270 : vector<8x256xf32> to vector<1x8x256xf32>
    tpu.vector_store %arg6[%c0_94, %c0_95, %c0_96], %273 {strides = array<i32>} : memref<2x8x256xf32, #tpu.memory_space<vmem>>, vector<1x8x256xf32>,
    %c8_97 = arith.constant 8 : index
    %c0_98 = arith.constant 0 : index
    %274 = vector.load %arg7[%c8_97, %c0_98] : memref<16x256xf32, #tpu.memory_space<vmem>>, vector<8x256xf32>
    %c17_i32_99 = arith.constant 17 : i32
    %275 = tpu.dynamic_rotate %274 by %c17_i32_99 dim 1 : vector<8x256xf32>, i32 -> vector<8x256xf32>
    %c0_100 = arith.constant 0 : index
    %c0_101 = arith.constant 0 : index
    %276 = vector.load %arg4[%c0_100, %c0_101] : memref<9x256xf32, #tpu.memory_space<vmem>>, vector<1x256xf32>
    %277 = vector.broadcast %276 : vector<1x256xf32> to vector<8x256xf32>
    %278 = arith.mulf %275, %277 : vector<8x256xf32>
    %279 = arith.truncf %278 : vector<8x256xf32> to vector<8x256xbf16>
    %c0_102 = arith.constant 0 : index
    %c0_103 = arith.constant 0 : index
    %280 = vector.load %arg8[%c0_102, %c0_103] : memref<72x256xbf16, #tpu.memory_space<vmem>>, vector<8x256xbf16>
    tpu.vector_store %arg8[%c0_102, %c0_103], %279 {strides = array<i32>} : memref<72x256xbf16, #tpu.memory_space<vmem>>, vector<8x256xbf16>,
    %c16_i32_104 = arith.constant 16 : i32
    %281 = tpu.dynamic_rotate %274 by %c16_i32_104 dim 1 : vector<8x256xf32>, i32 -> vector<8x256xf32>
    %c1_105 = arith.constant 1 : index
    %c0_106 = arith.constant 0 : index
    %282 = vector.load %arg4[%c1_105, %c0_106] : memref<9x256xf32, #tpu.memory_space<vmem>>, vector<1x256xf32>
    %283 = vector.broadcast %282 : vector<1x256xf32> to vector<8x256xf32>
    %284 = arith.mulf %281, %283 : vector<8x256xf32>
    %285 = arith.truncf %284 : vector<8x256xf32> to vector<8x256xbf16>
    %c8_107 = arith.constant 8 : index
    %c0_108 = arith.constant 0 : index
    %286 = vector.load %arg8[%c8_107, %c0_108] : memref<72x256xbf16, #tpu.memory_space<vmem>>, vector<8x256xbf16>
    tpu.vector_store %arg8[%c8_107, %c0_108], %285 {strides = array<i32>} : memref<72x256xbf16, #tpu.memory_space<vmem>>, vector<8x256xbf16>,
    %c15_i32_109 = arith.constant 15 : i32
    %287 = tpu.dynamic_rotate %274 by %c15_i32_109 dim 1 : vector<8x256xf32>, i32 -> vector<8x256xf32>
    %c2_110 = arith.constant 2 : index
    %c0_111 = arith.constant 0 : index
    %288 = vector.load %arg4[%c2_110, %c0_111] : memref<9x256xf32, #tpu.memory_space<vmem>>, vector<1x256xf32>
    %289 = vector.broadcast %288 : vector<1x256xf32> to vector<8x256xf32>
    %290 = arith.mulf %287, %289 : vector<8x256xf32>
    %291 = arith.truncf %290 : vector<8x256xf32> to vector<8x256xbf16>
    %c16_112 = arith.constant 16 : index
    %c0_113 = arith.constant 0 : index
    %292 = vector.load %arg8[%c16_112, %c0_113] : memref<72x256xbf16, #tpu.memory_space<vmem>>, vector<8x256xbf16>
    tpu.vector_store %arg8[%c16_112, %c0_113], %291 {strides = array<i32>} : memref<72x256xbf16, #tpu.memory_space<vmem>>, vector<8x256xbf16>,
    %c1_i32_114 = arith.constant 1 : i32
    %293 = tpu.dynamic_rotate %274 by %c1_i32_114 dim 1 : vector<8x256xf32>, i32 -> vector<8x256xf32>
    %c3_115 = arith.constant 3 : index
    %c0_116 = arith.constant 0 : index
    %294 = vector.load %arg4[%c3_115, %c0_116] : memref<9x256xf32, #tpu.memory_space<vmem>>, vector<1x256xf32>
    %295 = vector.broadcast %294 : vector<1x256xf32> to vector<8x256xf32>
    %296 = arith.mulf %293, %295 : vector<8x256xf32>
    %297 = arith.truncf %296 : vector<8x256xf32> to vector<8x256xbf16>
    %c24_117 = arith.constant 24 : index
    %c0_118 = arith.constant 0 : index
    %298 = vector.load %arg8[%c24_117, %c0_118] : memref<72x256xbf16, #tpu.memory_space<vmem>>, vector<8x256xbf16>
    tpu.vector_store %arg8[%c24_117, %c0_118], %297 {strides = array<i32>} : memref<72x256xbf16, #tpu.memory_space<vmem>>, vector<8x256xbf16>,
    %c4_119 = arith.constant 4 : index
    %c0_120 = arith.constant 0 : index
    %299 = vector.load %arg4[%c4_119, %c0_120] : memref<9x256xf32, #tpu.memory_space<vmem>>, vector<1x256xf32>
    %300 = vector.broadcast %299 : vector<1x256xf32> to vector<8x256xf32>
    %301 = arith.mulf %274, %300 : vector<8x256xf32>
    %302 = arith.truncf %301 : vector<8x256xf32> to vector<8x256xbf16>
    %c32_121 = arith.constant 32 : index
    %c0_122 = arith.constant 0 : index
    %303 = vector.load %arg8[%c32_121, %c0_122] : memref<72x256xbf16, #tpu.memory_space<vmem>>, vector<8x256xbf16>
    tpu.vector_store %arg8[%c32_121, %c0_122], %302 {strides = array<i32>} : memref<72x256xbf16, #tpu.memory_space<vmem>>, vector<8x256xbf16>,
    %c255_i32_123 = arith.constant 255 : i32
    %304 = tpu.dynamic_rotate %274 by %c255_i32_123 dim 1 : vector<8x256xf32>, i32 -> vector<8x256xf32>
    %c5_124 = arith.constant 5 : index
    %c0_125 = arith.constant 0 : index
    %305 = vector.load %arg4[%c5_124, %c0_125] : memref<9x256xf32, #tpu.memory_space<vmem>>, vector<1x256xf32>
    %306 = vector.broadcast %305 : vector<1x256xf32> to vector<8x256xf32>
    %307 = arith.mulf %304, %306 : vector<8x256xf32>
    %308 = arith.truncf %307 : vector<8x256xf32> to vector<8x256xbf16>
    %c40_126 = arith.constant 40 : index
    %c0_127 = arith.constant 0 : index
    %309 = vector.load %arg8[%c40_126, %c0_127] : memref<72x256xbf16, #tpu.memory_space<vmem>>, vector<8x256xbf16>
    tpu.vector_store %arg8[%c40_126, %c0_127], %308 {strides = array<i32>} : memref<72x256xbf16, #tpu.memory_space<vmem>>, vector<8x256xbf16>,
    %c241_i32_128 = arith.constant 241 : i32
    %310 = tpu.dynamic_rotate %274 by %c241_i32_128 dim 1 : vector<8x256xf32>, i32 -> vector<8x256xf32>
    %c6_129 = arith.constant 6 : index
    %c0_130 = arith.constant 0 : index
    %311 = vector.load %arg4[%c6_129, %c0_130] : memref<9x256xf32, #tpu.memory_space<vmem>>, vector<1x256xf32>
    %312 = vector.broadcast %311 : vector<1x256xf32> to vector<8x256xf32>
    %313 = arith.mulf %310, %312 : vector<8x256xf32>
    %314 = arith.truncf %313 : vector<8x256xf32> to vector<8x256xbf16>
    %c48_131 = arith.constant 48 : index
    %c0_132 = arith.constant 0 : index
    %315 = vector.load %arg8[%c48_131, %c0_132] : memref<72x256xbf16, #tpu.memory_space<vmem>>, vector<8x256xbf16>
    tpu.vector_store %arg8[%c48_131, %c0_132], %314 {strides = array<i32>} : memref<72x256xbf16, #tpu.memory_space<vmem>>, vector<8x256xbf16>,
    %c240_i32_133 = arith.constant 240 : i32
    %316 = tpu.dynamic_rotate %274 by %c240_i32_133 dim 1 : vector<8x256xf32>, i32 -> vector<8x256xf32>
    %c7_134 = arith.constant 7 : index
    %c0_135 = arith.constant 0 : index
    %317 = vector.load %arg4[%c7_134, %c0_135] : memref<9x256xf32, #tpu.memory_space<vmem>>, vector<1x256xf32>
    %318 = vector.broadcast %317 : vector<1x256xf32> to vector<8x256xf32>
    %319 = arith.mulf %316, %318 : vector<8x256xf32>
    %320 = arith.truncf %319 : vector<8x256xf32> to vector<8x256xbf16>
    %c56_136 = arith.constant 56 : index
    %c0_137 = arith.constant 0 : index
    %321 = vector.load %arg8[%c56_136, %c0_137] : memref<72x256xbf16, #tpu.memory_space<vmem>>, vector<8x256xbf16>
    tpu.vector_store %arg8[%c56_136, %c0_137], %320 {strides = array<i32>} : memref<72x256xbf16, #tpu.memory_space<vmem>>, vector<8x256xbf16>,
    %c239_i32_138 = arith.constant 239 : i32
    %322 = tpu.dynamic_rotate %274 by %c239_i32_138 dim 1 : vector<8x256xf32>, i32 -> vector<8x256xf32>
    %c8_139 = arith.constant 8 : index
    %c0_140 = arith.constant 0 : index
    %323 = vector.load %arg4[%c8_139, %c0_140] : memref<9x256xf32, #tpu.memory_space<vmem>>, vector<1x256xf32>
    %324 = vector.broadcast %323 : vector<1x256xf32> to vector<8x256xf32>
    %325 = arith.mulf %322, %324 : vector<8x256xf32>
    %326 = arith.truncf %325 : vector<8x256xf32> to vector<8x256xbf16>
    %c64_141 = arith.constant 64 : index
    %c0_142 = arith.constant 0 : index
    %327 = vector.load %arg8[%c64_141, %c0_142] : memref<72x256xbf16, #tpu.memory_space<vmem>>, vector<8x256xbf16>
    tpu.vector_store %arg8[%c64_141, %c0_142], %326 {strides = array<i32>} : memref<72x256xbf16, #tpu.memory_space<vmem>>, vector<8x256xbf16>,
    %c0_143 = arith.constant 0 : index
    %c0_144 = arith.constant 0 : index
    %328 = vector.load %arg5[%c0_143, %c0_144] : memref<8x72xbf16, #tpu.memory_space<vmem>>, vector<8x72xbf16>
    %c0_145 = arith.constant 0 : index
    %c0_146 = arith.constant 0 : index
    %329 = vector.load %arg8[%c0_145, %c0_146] : memref<72x256xbf16, #tpu.memory_space<vmem>>, vector<72x256xbf16>
    %cst_147 = arith.constant dense<0.000000e+00> : vector<8x256xf32>
    %330 = tpu.matmul %328, %329, %cst_147 {dimension_numbers = #tpu.dot_dimension_numbers<[1], [0], [0], [1], [0, 0, 1, 1], [], []>} : vector<8x72xbf16>, vector<72x256xbf16>, vector<8x256xf32> -> vector<8x256xf32>
    %cst_148 = arith.constant dense<0.000000e+00> : vector<8xf32>
    %331 = vector.multi_reduction <add>, %330, %cst_148 [1] : vector<8x256xf32> to vector<8xf32>
    %332 = vector.shape_cast %331 : vector<8xf32> to vector<8x1xf32>
    %cst_149 = arith.constant 3.906250e-03 : f32
    %333 = vector.broadcast %cst_149 : f32 to vector<8x1xf32>
    %334 = arith.mulf %332, %333 : vector<8x1xf32>
    %335 = arith.mulf %330, %330 : vector<8x256xf32>
    %cst_150 = arith.constant dense<0.000000e+00> : vector<8xf32>
    %336 = vector.multi_reduction <add>, %335, %cst_150 [1] : vector<8x256xf32> to vector<8xf32>
    %337 = vector.shape_cast %336 : vector<8xf32> to vector<8x1xf32>
    %cst_151 = arith.constant 3.906250e-03 : f32
    %338 = vector.broadcast %cst_151 : f32 to vector<8x1xf32>
    %339 = arith.mulf %337, %338 : vector<8x1xf32>
    %340 = arith.mulf %334, %334 : vector<8x1xf32>
    %341 = arith.subf %339, %340 : vector<8x1xf32>
    %cst_152 = arith.constant 0.000000e+00 : f32
    %342 = vector.broadcast %cst_152 : f32 to vector<8x1xf32>
    %343 = arith.maximumf %341, %342 : vector<8x1xf32>
    %344 = vector.broadcast %334 : vector<8x1xf32> to vector<8x256xf32>
    %345 = arith.subf %330, %344 : vector<8x256xf32>
    %cst_153 = arith.constant 9.99999974E-6 : f32
    %346 = vector.broadcast %cst_153 : f32 to vector<8x1xf32>
    %347 = arith.addf %343, %346 : vector<8x1xf32>
    %348 = math.rsqrt %347 : vector<8x1xf32>
    %349 = vector.broadcast %348 : vector<8x1xf32> to vector<8x256xf32>
    %350 = arith.mulf %345, %349 : vector<8x256xf32>
    %cst_154 = arith.constant 0.000000e+00 : f32
    %351 = vector.broadcast %cst_154 : f32 to vector<8x256xf32>
    %352 = arith.cmpf ogt, %350, %351 : vector<8x256xf32>
    %cst_155 = arith.constant 2.000000e-01 : f32
    %353 = vector.broadcast %cst_155 : f32 to vector<8x256xf32>
    %354 = arith.mulf %353, %350 : vector<8x256xf32>
    %355 = arith.select %352, %350, %354 : vector<8x256xi1>, vector<8x256xf32>
    %c1_156 = arith.constant 1 : index
    %c0_157 = arith.constant 0 : index
    %c0_158 = arith.constant 0 : index
    %356 = vector.load %arg6[%c1_156, %c0_157, %c0_158] : memref<2x8x256xf32, #tpu.memory_space<vmem>>, vector<1x8x256xf32>
    %357 = vector.shape_cast %356 : vector<1x8x256xf32> to vector<8x256xf32>
    %358 = vector.shape_cast %355 : vector<8x256xf32> to vector<1x8x256xf32>
    tpu.vector_store %arg6[%c1_156, %c0_157, %c0_158], %358 {strides = array<i32>} : memref<2x8x256xf32, #tpu.memory_space<vmem>>, vector<1x8x256xf32>,
    return
  }
  func.func @transform_0(%arg0: i32) -> (i32, i32, i32) {
    %c0_i32 = arith.constant 0 : i32
    %c0_i32_0 = arith.constant 0 : i32
    %c0_i32_1 = arith.constant 0 : i32
    return %arg0, %c0_i32, %c0_i32_0 : i32, i32, i32
  }
  func.func @transform_1(%arg0: i32) -> (i32, i32, i32) {
    %c0_i32 = arith.constant 0 : i32
    %c0_i32_0 = arith.constant 0 : i32
    %c0_i32_1 = arith.constant 0 : i32
    return %arg0, %c0_i32, %c0_i32_0 : i32, i32, i32
  }
  func.func @transform_2(%arg0: i32) -> (i32, i32) {
    %c0_i32 = arith.constant 0 : i32
    %c0_i32_0 = arith.constant 0 : i32
    %c0_i32_1 = arith.constant 0 : i32
    return %c0_i32, %c0_i32_0 : i32, i32
  }
  func.func @transform_3(%arg0: i32) -> (i32, i32) {
    %c0_i32 = arith.constant 0 : i32
    %c0_i32_0 = arith.constant 0 : i32
    %c0_i32_1 = arith.constant 0 : i32
    return %c0_i32, %c0_i32_0 : i32, i32
  }
  func.func @transform_4(%arg0: i32) -> (i32, i32) {
    %c0_i32 = arith.constant 0 : i32
    %c0_i32_0 = arith.constant 0 : i32
    %c0_i32_1 = arith.constant 0 : i32
    return %c0_i32, %c0_i32_0 : i32, i32
  }
  func.func @transform_5(%arg0: i32) -> (i32, i32, i32) {
    %c0_i32 = arith.constant 0 : i32
    %c0_i32_0 = arith.constant 0 : i32
    %c0_i32_1 = arith.constant 0 : i32
    return %arg0, %c0_i32, %c0_i32_0 : i32, i32, i32
  }
}

</mosaic_0001>

<llo_original>
// kernel: tpu_custom_call.1
$region0: #{tpu_custom_call.1}
  #allocation0 [shape = 'u32[]', space=smem, size = 0x4, offset = 0x4, fixed_abs, tag = 'smem constant byte address 0x4 - core index']
  #allocation1 [shape = 'u32[72,128]{1,0:T(1,128)}', space=vmem, size = 0x9000, scoped, tag = 'internal scratch']
  #allocation2 [shape = 'f32[16,256]{1,0:T(8,128)}', space=vmem, size = 0x4000, scoped, tag = 'scratch operand']
  #allocation3 [shape = 'bf16[72,256]{1,0:T(8,128)(2,1)}', space=vmem, size = 0x9000, scoped, tag = 'scratch operand']
  %s0 = inlined_call_operand.vmem [shape: bf16[4,64,8], index: 0, kind: input, shape index: {}]
  %s1 = inlined_call_operand.vmem [shape: f32[4,8,256], index: 1, kind: input, shape index: {}]
  %s2 = inlined_call_operand.vmem [shape: bf16[8,16], index: 2, kind: input, shape index: {}]
  %s3 = inlined_call_operand.vmem [shape: f32[9,256], index: 3, kind: input, shape index: {}]
  %s4 = inlined_call_operand.vmem [shape: bf16[8,72], index: 4, kind: input, shape index: {}]
  %s5 = inlined_call_operand.hbm [shape: f32[4,8,256], index: 5, kind: output, shape index: {}]
  %s6 = sld [smem:[#allocation0]]
  $region53: #{tpu_custom_call.1} parent=0
    _
  %s8 = ssub.s32 1, %s6
  %s9 = scalar_select 0, %s8, %s6
  $region1: #{tpu_custom_call.1} parent=0
    #allocation4 [shape = 'u8[32768]{0}', space=vmem, size = 0x8000, scoped, tag = 'output window, operand 0']
    #allocation5 [shape = 's32[2]{0}', space=sflag, size = 0x8, scoped, tag = 'scoped memory for tpu_custom_call.1']
    %10 = vsyncpa [#allocation5], 0
    %s11 = scalar_lea.sflag [#allocation5], 1
    %12 = vsyncpa %s11, 0
    loop: start=0, step=1, limit=4
    $region2: #{tpu_custom_call.1} parent=1 // loop_pre_header
      _
    $region3: #{tpu_custom_call.1} parent=1 // loop_header
      %s14 = sphi 0, %s18
      %p15 = scmp.ge.s32.totalorder %s14, 4
      %s24 = sphi 0, %s26
      %s27 = sphi 0, %s24
      %s28 = sphi 0, %s27
      %s44 = sphi 0, %s28
      %s50 = sphi 0, %s52
      %s53 = sphi 0, %s50
      %s54 = sphi 0, %s53
      %s70 = sphi 0, %s54
      %s74 = sphi 0, %s74
      %s76 = sphi 0, %s74
      %s77 = sphi 0, %s76
      %s91 = sphi 0, %s77
      %s95 = sphi 0, %s95
      %s97 = sphi 0, %s95
      %s98 = sphi 0, %s97
      %s112 = sphi 0, %s98
      %s116 = sphi 0, %s116
      %s118 = sphi 0, %s116
      %s119 = sphi 0, %s118
      %s133 = sphi 0, %s119
      %s139 = sphi 0, %s141
      %s142 = sphi 0, %s139
      %s143 = sphi 0, %s142
      %s159 = sphi 0, %s143
    $region4: #{tpu_custom_call.1} parent=1 // loop_header_branch
      %17 = sbr.rel (%p15) target = $region8
    $region5: #{tpu_custom_call.1} parent=1 // loop_body
      %s19 = ssub.s32 %s14, 1
      %s20 = ssub.s32 %s14, 2
      %s21 = sadd.s32 %s14, 1
      %s22 = ssub.s32 %s14, %s21
      %p23 = scmp.eq.s32.totalorder %s22, 0
      %s25 = sadd.s32 %s24, 1
      %s26 = scalar_select %p23, %s24, %s25
      %p29 = pneg %p23
      %p30 = scmp.eq.s32.totalorder %s14, 1
      %p31 = por %p29, %p30
      %p32 = scmp.ne.s32.totalorder %s24, %s27
      %p33 = scmp.eq.s32.totalorder %s14, 0
      %p34 = por %p32, %p33
      %p35 = scmp.ne.s32.totalorder %s24, %s27
      %p36 = scmp.eq.s32.totalorder %s19, 1
      %p37 = por %p35, %p36
      %p38 = scmp.ne.s32.totalorder %s27, %s28
      %p39 = scmp.eq.s32.totalorder %s19, 0
      %p40 = por %p38, %p39
      %p41 = scmp.ne.s32.totalorder %s27, %s28
      %p42 = scmp.eq.s32.totalorder %s20, 1
      %p43 = por %p41, %p42
      %p45 = scmp.ne.s32.totalorder %s28, %s44
      %p46 = scmp.eq.s32.totalorder %s20, 0
      %p47 = por %p45, %p46
      %s48 = ssub.s32 %s14, %s21
      %p49 = scmp.eq.s32.totalorder %s48, 0
      %s51 = sadd.s32 %s50, 1
      %s52 = scalar_select %p49, %s50, %s51
      %p55 = pneg %p49
      %p56 = scmp.eq.s32.totalorder %s14, 1
      %p57 = por %p55, %p56
      %p58 = scmp.ne.s32.totalorder %s50, %s53
      %p59 = scmp.eq.s32.totalorder %s14, 0
      %p60 = por %p58, %p59
      %p61 = scmp.ne.s32.totalorder %s50, %s53
      %p62 = scmp.eq.s32.totalorder %s19, 1
      %p63 = por %p61, %p62
      %p64 = scmp.ne.s32.totalorder %s53, %s54
      %p65 = scmp.eq.s32.totalorder %s19, 0
      %p66 = por %p64, %p65
      %p67 = scmp.ne.s32.totalorder %s53, %s54
      %p68 = scmp.eq.s32.totalorder %s20, 1
      %p69 = por %p67, %p68
      %p71 = scmp.ne.s32.totalorder %s54, %s70
      %p72 = scmp.eq.s32.totalorder %s20, 0
      %p73 = por %p71, %p72
      %s75 = sadd.s32 %s74, 1
      %p78 = scmp.eq.s32.totalorder %s14, 1
      %p79 = scmp.ne.s32.totalorder %s74, %s76
      %p80 = scmp.eq.s32.totalorder %s14, 0
      %p81 = por %p79, %p80
      %p82 = scmp.ne.s32.totalorder %s74, %s76
      %p83 = scmp.eq.s32.totalorder %s19, 1
      %p84 = por %p82, %p83
      %p85 = scmp.ne.s32.totalorder %s76, %s77
      %p86 = scmp.eq.s32.totalorder %s19, 0
      %p87 = por %p85, %p86
      %p88 = scmp.ne.s32.totalorder %s76, %s77
      %p89 = scmp.eq.s32.totalorder %s20, 1
      %p90 = por %p88, %p89
      %p92 = scmp.ne.s32.totalorder %s77, %s91
      %p93 = scmp.eq.s32.totalorder %s20, 0
      %p94 = por %p92, %p93
      %s96 = sadd.s32 %s95, 1
      %p99 = scmp.eq.s32.totalorder %s14, 1
      %p100 = scmp.ne.s32.totalorder %s95, %s97
      %p101 = scmp.eq.s32.totalorder %s14, 0
      %p102 = por %p100, %p101
      %p103 = scmp.ne.s32.totalorder %s95, %s97
      %p104 = scmp.eq.s32.totalorder %s19, 1
      %p105 = por %p103, %p104
      %p106 = scmp.ne.s32.totalorder %s97, %s98
      %p107 = scmp.eq.s32.totalorder %s19, 0
      %p108 = por %p106, %p107
      %p109 = scmp.ne.s32.totalorder %s97, %s98
      %p110 = scmp.eq.s32.totalorder %s20, 1
      %p111 = por %p109, %p110
      %p113 = scmp.ne.s32.totalorder %s98, %s112
      %p114 = scmp.eq.s32.totalorder %s20, 0
      %p115 = por %p113, %p114
      %s117 = sadd.s32 %s116, 1
      %p120 = scmp.eq.s32.totalorder %s14, 1
      %p121 = scmp.ne.s32.totalorder %s116, %s118
      %p122 = scmp.eq.s32.totalorder %s14, 0
      %p123 = por %p121, %p122
      %p124 = scmp.ne.s32.totalorder %s116, %s118
      %p125 = scmp.eq.s32.totalorder %s19, 1
      %p126 = por %p124, %p125
      %p127 = scmp.ne.s32.totalorder %s118, %s119
      %p128 = scmp.eq.s32.totalorder %s19, 0
      %p129 = por %p127, %p128
      %p130 = scmp.ne.s32.totalorder %s118, %s119
      %p131 = scmp.eq.s32.totalorder %s20, 1
      %p132 = por %p130, %p131
      %p134 = scmp.ne.s32.totalorder %s119, %s133
      %p135 = scmp.eq.s32.totalorder %s20, 0
      %p136 = por %p134, %p135
      %s137 = ssub.s32 %s14, %s21
      %p138 = scmp.eq.s32.totalorder %s137, 0
      %s140 = sadd.s32 %s139, 1
      %s141 = scalar_select %p138, %s139, %s140
      %p144 = pneg %p138
      %p145 = scmp.eq.s32.totalorder %s14, 1
      %p146 = por %p144, %p145
      %p147 = scmp.ne.s32.totalorder %s139, %s142
      %p148 = scmp.eq.s32.totalorder %s14, 0
      %p149 = por %p147, %p148
      %p150 = scmp.ne.s32.totalorder %s139, %s142
      %p151 = scmp.eq.s32.totalorder %s19, 1
      %p152 = por %p150, %p151
      %p153 = scmp.ne.s32.totalorder %s142, %s143
      %p154 = scmp.eq.s32.totalorder %s19, 0
      %p155 = por %p153, %p154
      %p156 = scmp.ne.s32.totalorder %s142, %s143
      %p157 = scmp.eq.s32.totalorder %s20, 1
      %p158 = por %p156, %p157
      %p160 = scmp.ne.s32.totalorder %s143, %s159
      %p161 = scmp.eq.s32.totalorder %s20, 0
      %p162 = por %p160, %p161
      %p163 = scmp.le.s32.totalorder 1, %s14
      %p164 = scmp.lt.s32.totalorder %s14, 3
      %p165 = pnand %p163, %p164
      %p166 = pneg %p165
      // Predicated region
      $region9: #{tpu_custom_call.1} parent=5 // pred_check
        _
      $region10: #{tpu_custom_call.1} parent=5 // pred_check_branch
        %168 = sbr.rel (%p165) target = $region12
      $region11: #{tpu_custom_call.1} parent=5 // pred_region
        %s169 = ssub.s32 %s14, 1
        // Predicated region
        $region13: #{tpu_custom_call.1} parent=11 // pred_check
          %p170 = pneg %p87
        $region14: #{tpu_custom_call.1} parent=11 // pred_check_branch
          %172 = sbr.rel (%p170) target = $region16
        $region15: #{tpu_custom_call.1} parent=11 // pred_region
          _
        $region16: #{tpu_custom_call.1} parent=11 // pred_fallthru
          _
        // Predicated region
        $region17: #{tpu_custom_call.1} parent=11 // pred_check
          %p173 = pneg %p108
        $region18: #{tpu_custom_call.1} parent=11 // pred_check_branch
          %175 = sbr.rel (%p173) target = $region20
        $region19: #{tpu_custom_call.1} parent=11 // pred_region
          _
        $region20: #{tpu_custom_call.1} parent=11 // pred_fallthru
          _
        // Predicated region
        $region21: #{tpu_custom_call.1} parent=11 // pred_check
          %p176 = pneg %p129
        $region22: #{tpu_custom_call.1} parent=11 // pred_check_branch
          %178 = sbr.rel (%p176) target = $region24
        $region23: #{tpu_custom_call.1} parent=11 // pred_region
          _
        $region24: #{tpu_custom_call.1} parent=11 // pred_fallthru
          _
      $region12: #{tpu_custom_call.1} parent=5 // pred_fallthru
        _
      %p179 = scmp.lt.s32.totalorder %s14, 2
      // Predicated region
      $region25: #{tpu_custom_call.1} parent=5 // pred_check
        %p180 = pneg %p179
      $region26: #{tpu_custom_call.1} parent=5 // pred_check_branch
        %182 = sbr.rel (%p180) target = $region28
      $region27: #{tpu_custom_call.1} parent=5 // pred_region
        // Predicated region
        $region29: #{tpu_custom_call.1} parent=27 // pred_check
          %p183 = pneg %p34
        $region30: #{tpu_custom_call.1} parent=27 // pred_check_branch
          %185 = sbr.rel (%p183) target = $region32
        $region31: #{tpu_custom_call.1} parent=27 // pred_region
          %s186 = smul.u32 2, %s14
          %p187 = scmp.lt.s32.totalorder %s186, 3
          %s188 = scalar_select %p187, %s186, 3
          %s189 = smul.addr %s188, 8
          %s190 = smul.addr %s189, 4
          %s191 = scalar_lea.vmem %s0, %s190
          %s192 = smul.u32 2, %s14
        $region32: #{tpu_custom_call.1} parent=27 // pred_fallthru
          _
        // Predicated region
        $region33: #{tpu_custom_call.1} parent=27 // pred_check
          %p193 = pneg %p60
        $region34: #{tpu_custom_call.1} parent=27 // pred_check_branch
          %195 = sbr.rel (%p193) target = $region36
        $region35: #{tpu_custom_call.1} parent=27 // pred_region
          %s196 = smul.u32 2, %s14
          %p197 = scmp.lt.s32.totalorder %s196, 3
          %s198 = scalar_select %p197, %s196, 3
          %s199 = smul.addr %s198, 2
          %s200 = smul.addr %s199, 8
          %s201 = scalar_lea.vmem %s1, %s200
          %s202 = smul.u32 2, %s14
        $region36: #{tpu_custom_call.1} parent=27 // pred_fallthru
          _
      $region28: #{tpu_custom_call.1} parent=5 // pred_fallthru
        _
      %p203 = scmp.le.s32.totalorder 1, %s14
      %p204 = scmp.lt.s32.totalorder %s14, 3
      %p205 = pnand %p203, %p204
      %p206 = pneg %p205
      // Predicated region
      $region37: #{tpu_custom_call.1} parent=5 // pred_check
        _
      $region38: #{tpu_custom_call.1} parent=5 // pred_check_branch
        %208 = sbr.rel (%p205) target = $region40
      $region39: #{tpu_custom_call.1} parent=5 // pred_region
        %s209 = ssub.s32 %s14, 1
        %s210 = smul.u32 2, %s19
        %p211 = scmp.lt.s32.totalorder %s210, 3
        %s212 = scalar_select %p211, %s210, 3
        %s213 = smul.addr %s212, 8
        %s214 = smul.addr %s213, 4
        %s215 = scalar_lea.vmem %s0, %s214
        %p216 = pneg %p40
        %p217 = pneg %p37
        %s218 = smul.u32 2, %s19
        %p219 = scmp.lt.s32.totalorder %s218, 3
        %s220 = scalar_select %p219, %s218, 3
        %s221 = smul.addr %s220, 2
        %s222 = smul.addr %s221, 8
        %s223 = scalar_lea.vmem %s1, %s222
        %p224 = pneg %p66
        %p225 = pneg %p63
        %p226 = pneg %p87
        %p227 = pneg %p84
        %p228 = pneg %p108
        %p229 = pneg %p105
        %p230 = pneg %p129
        %p231 = pneg %p126
        %p232 = pneg %p155
        %p233 = pneg %p152
        %s234 = sand.u32 %s142, 1
        %s235 = scalar_lea.sflag [#allocation5], %s234
        %s236 = sand.u32 %s142, 1
        %s237 = smul.addr %s236, 32
        %s238 = scalar_lea.vmem [#allocation4], %s237
        %s239 = smul.u32 2, %s19
        %p240 = scmp.lt.s32.totalorder %s239, 3
        %s241 = scalar_select %p240, %s239, 3
        %s242 = smul.addr %s241, 8
        %s243 = smul.addr %s242, 4
        %s244 = scalar_lea.vmem %s0, %s243
        %s245 = smul.u32 2, %s19
        %s246 = smul.u32 2, %s19
        %p247 = scmp.lt.s32.totalorder %s246, 3
        %s248 = scalar_select %p247, %s246, 3
        %s249 = smul.addr %s248, 2
        %s250 = smul.addr %s249, 8
        %s251 = scalar_lea.vmem %s1, %s250
        %s252 = smul.u32 2, %s19
        %s253 = smul.u32 2, %s19
        %v255 = vld [vmem:[%s244] sm:$0xf]
        %v256 = vld [vmem:[%s244 + $0x4] sm:$0xf]
        %v257 = vld [vmem:[%s244 + $0x8] sm:$0xf]
        %v258 = vld [vmem:[%s244 + $0xc] sm:$0xf]
        %v259 = vld [vmem:[%s244 + $0x10] sm:$0xf]
        %v260 = vld [vmem:[%s244 + $0x14] sm:$0xf]
        %v261 = vld [vmem:[%s244 + $0x18] sm:$0xf]
        %v262 = vld [vmem:[%s244 + $0x1c] sm:$0xf]
        %v263 = vld [vmem:[%s244 + $0x20] sm:$0xf]
        %v264 = vld [vmem:[%s244 + $0x24] sm:$0xf]
        %v265 = vld [vmem:[%s244 + $0x28] sm:$0xf]
        %v266 = vld [vmem:[%s244 + $0x2c] sm:$0xf]
        %v267 = vld [vmem:[%s244 + $0x30] sm:$0xf]
        %v268 = vld [vmem:[%s244 + $0x34] sm:$0xf]
        %v269 = vld [vmem:[%s244 + $0x38] sm:$0xf]
        %v270 = vld [vmem:[%s244 + $0x3c] sm:$0xf]
        %v271 = vld [vmem:[%s2] sm:$0xf]
        %v288 = vunpack.c.l.b16 %v255
        %v289 = vunpack.c.l.b16 %v256
        %v290 = vunpack.c.l.b16 %v257
        %v291 = vunpack.c.l.b16 %v258
        %v292 = vunpack.c.l.b16 %v259
        %v293 = vunpack.c.l.b16 %v260
        %v294 = vunpack.c.l.b16 %v261
        %v295 = vunpack.c.l.b16 %v262
        %v296 = vunpack.c.l.b16 %v263
        %v297 = vunpack.c.l.b16 %v264
        %v298 = vunpack.c.l.b16 %v265
        %v299 = vunpack.c.l.b16 %v266
        %v300 = vunpack.c.l.b16 %v267
        %v301 = vunpack.c.l.b16 %v268
        %v302 = vunpack.c.l.b16 %v269
        %v303 = vunpack.c.l.b16 %v270
        %v304 = vpack.c.b16 %v289, %v288
        %v305 = vpack.c.b16 %v291, %v290
        %v306 = vpack.c.b16 %v293, %v292
        %v307 = vpack.c.b16 %v295, %v294
        %v308 = vpack.c.b16 %v297, %v296
        %v309 = vpack.c.b16 %v299, %v298
        %v310 = vpack.c.b16 %v301, %v300
        %v311 = vpack.c.b16 %v303, %v302
        %vm312 = vcmask 64512
        %v314 = vsel %vm312, %v304, 0
        %v317 = vsel %vm312, %v305, 0
        %v320 = vsel %vm312, %v306, 0
        %v323 = vsel %vm312, %v307, 0
        %v326 = vsel %vm312, %v308, 0
        %v329 = vsel %vm312, %v309, 0
        %v332 = vsel %vm312, %v310, 0
        %v335 = vsel %vm312, %v311, 0
        %vm337 = vcmask 1043456
        %v339 = vsel %vm337, %v271, 0
        %341 = vmatpush.bf16.msra.mxu0 0
        %342 = vmatpush.bf16.msra.mxu0 0
        %343 = vmatpush.bf16.msra.mxu0 0
        %344 = vmatpush.bf16.msra.mxu0 0
        %345 = vmatpush.bf16.msra.mxu0 0
        %346 = vmatpush.bf16.msra.mxu0 0
        %347 = vmatpush.bf16.msra.mxu0 0
        %348 = vmatpush.bf16.msra.mxu0 %v339
        %349 = vmatmul.bf16.gmra.mxu0 %v314
        %v350 = vpop.f32.mrf.mxu0
        %v351 = vadd.f32 0.0, %v350
        %v352 = vpop.f32.mrf.mxu0
        %v353 = vadd.f32 0.0, %v352
        %354 = vmatmul.bf16.gmra.mxu0 %v317
        %v355 = vpop.f32.mrf.mxu0
        %v356 = vadd.f32 0.0, %v355
        %v357 = vpop.f32.mrf.mxu0
        %v358 = vadd.f32 0.0, %v357
        %359 = vmatmul.bf16.gmra.mxu0 %v320
        %v360 = vpop.f32.mrf.mxu0
        %v361 = vadd.f32 0.0, %v360
        %v362 = vpop.f32.mrf.mxu0
        %v363 = vadd.f32 0.0, %v362
        %364 = vmatmul.bf16.gmra.mxu0 %v323
        %v365 = vpop.f32.mrf.mxu0
        %v366 = vadd.f32 0.0, %v365
        %v367 = vpop.f32.mrf.mxu0
        %v368 = vadd.f32 0.0, %v367
        %369 = vmatmul.bf16.gmra.mxu0 %v326
        %v370 = vpop.f32.mrf.mxu0
        %v371 = vadd.f32 0.0, %v370
        %v372 = vpop.f32.mrf.mxu0
        %v373 = vadd.f32 0.0, %v372
        %374 = vmatmul.bf16.gmra.mxu0 %v329
        %v375 = vpop.f32.mrf.mxu0
        %v376 = vadd.f32 0.0, %v375
        %v377 = vpop.f32.mrf.mxu0
        %v378 = vadd.f32 0.0, %v377
        %379 = vmatmul.bf16.gmra.mxu0 %v332
        %v380 = vpop.f32.mrf.mxu0
        %v381 = vadd.f32 0.0, %v380
        %v382 = vpop.f32.mrf.mxu0
        %v383 = vadd.f32 0.0, %v382
        %384 = vmatmul.bf16.gmra.mxu0 %v335
        %v385 = vpop.f32.mrf.mxu0
        %v386 = vadd.f32 0.0, %v385
        %v387 = vpop.f32.mrf.mxu0
        %v388 = vadd.f32 0.0, %v387
        %389 = vdwg.mxu0
        %v390 = vld [vmem:[%s251] sm:$0xff]
        %v391 = vld [vmem:[%s251 + $0x8] sm:$0xff]
        %v392 = vld [vmem:[%s251 + $0x10] sm:$0xff]
        %v393 = vld [vmem:[%s251 + $0x18] sm:$0xff]
        %v396 = vrot.slane %v390, 1
        %v397 = vrot.slane %v390, 2
        %v398 = vrot.slane %v390, 3
        %v399 = vrot.slane %v390, 4
        %v400 = vrot.slane %v390, 5
        %v401 = vrot.slane %v390, 6
        %v402 = vrot.slane %v390, 7
        %v403 = vrot.slane %v392, 1
        %v404 = vrot.slane %v392, 2
        %v405 = vrot.slane %v392, 3
        %v406 = vrot.slane %v392, 4
        %v407 = vrot.slane %v392, 5
        %v408 = vrot.slane %v392, 6
        %v409 = vrot.slane %v392, 7
        %v426 = vadd.f32 %v351, %v390
        %v427 = vadd.f32 %v353, %v396
        %v428 = vadd.f32 %v356, %v397
        %v429 = vadd.f32 %v358, %v398
        %v430 = vadd.f32 %v361, %v399
        %v431 = vadd.f32 %v363, %v400
        %v432 = vadd.f32 %v366, %v401
        %v433 = vadd.f32 %v368, %v402
        %v434 = vadd.f32 %v371, %v392
        %v435 = vadd.f32 %v373, %v403
        %v436 = vadd.f32 %v376, %v404
        %v437 = vadd.f32 %v378, %v405
        %v438 = vadd.f32 %v381, %v406
        %v439 = vadd.f32 %v383, %v407
        %v440 = vadd.f32 %v386, %v408
        %v441 = vadd.f32 %v388, %v409
        %v458 = vrot.slane %v427, 7
        %vm459 = vcmask 1041409
        %v460 = vsel %vm459, %v458, %v426
        %v461 = vrot.slane %v428, 6
        %vm462 = vcmask 1042434
        %v463 = vsel %vm462, %v461, %v460
        %v464 = vrot.slane %v429, 5
        %vm465 = vcmask 1043459
        %v466 = vsel %vm465, %v464, %v463
        %v467 = vrot.slane %v430, 4
        %vm468 = vcmask 1044484
        %v469 = vsel %vm468, %v467, %v466
        %v470 = vrot.slane %v431, 3
        %vm471 = vcmask 1045509
        %v472 = vsel %vm471, %v470, %v469
        %v473 = vrot.slane %v432, 2
        %vm474 = vcmask 1046534
        %v475 = vsel %vm474, %v473, %v472
        %v476 = vrot.slane %v433, 1
        %vm477 = vcmask 1047559
        %v478 = vsel %vm477, %v476, %v475
        %v479 = vrot.slane %v435, 7
        %v480 = vsel %vm459, %v479, %v434
        %v481 = vrot.slane %v436, 6
        %v482 = vsel %vm462, %v481, %v480
        %v483 = vrot.slane %v437, 5
        %v484 = vsel %vm465, %v483, %v482
        %v485 = vrot.slane %v438, 4
        %v486 = vsel %vm468, %v485, %v484
        %v487 = vrot.slane %v439, 3
        %v488 = vsel %vm471, %v487, %v486
        %v489 = vrot.slane %v440, 2
        %v490 = vsel %vm474, %v489, %v488
        %v491 = vrot.slane %v441, 1
        %v492 = vsel %vm477, %v491, %v490
        %vm495 = vcmask 130048
        %496 = vst.msk [vmem:[#allocation2] sm:$0xff] %vm495, %v478
        %497 = vst.msk [vmem:[#allocation2 + $0x10] sm:$0xff] %vm495, %v492
        %v498 = vmul.f32 %v351, 0.53333336
        %v499 = vmul.f32 %v353, 0.53333336
        %v500 = vmul.f32 %v356, 0.53333336
        %v501 = vmul.f32 %v358, 0.53333336
        %v502 = vmul.f32 %v361, 0.53333336
        %v503 = vmul.f32 %v363, 0.53333336
        %v504 = vmul.f32 %v366, 0.53333336
        %v505 = vmul.f32 %v368, 0.53333336
        %v506 = vmul.f32 %v371, 0.53333336
        %v507 = vmul.f32 %v373, 0.53333336
        %v508 = vmul.f32 %v376, 0.53333336
        %v509 = vmul.f32 %v378, 0.53333336
        %v510 = vmul.f32 %v381, 0.53333336
        %v511 = vmul.f32 %v383, 0.53333336
        %v512 = vmul.f32 %v386, 0.53333336
        %v513 = vmul.f32 %v388, 0.53333336
        %v514 = vmul.f32 %v351, 0.46666667
        %v515 = vmul.f32 %v353, 0.46666667
        %v516 = vmul.f32 %v356, 0.46666667
        %v517 = vmul.f32 %v358, 0.46666667
        %v518 = vmul.f32 %v361, 0.46666667
        %v519 = vmul.f32 %v363, 0.46666667
        %v520 = vmul.f32 %v366, 0.46666667
        %v521 = vmul.f32 %v368, 0.46666667
        %v522 = vmul.f32 %v371, 0.46666667
        %v523 = vmul.f32 %v373, 0.46666667
        %v524 = vmul.f32 %v376, 0.46666667
        %v525 = vmul.f32 %v378, 0.46666667
        %v526 = vmul.f32 %v381, 0.46666667
        %v527 = vmul.f32 %v383, 0.46666667
        %v528 = vmul.f32 %v386, 0.46666667
        %v529 = vmul.f32 %v388, 0.46666667
        %v546 = vrot.slane %v514, 1
        %v547 = vrot.slane %v515, 1
        %v548 = vrot.slane %v516, 1
        %v549 = vrot.slane %v517, 1
        %v550 = vrot.slane %v518, 1
        %v551 = vrot.slane %v519, 1
        %v552 = vrot.slane %v520, 1
        %v553 = vrot.slane %v521, 1
        %v554 = vrot.slane %v522, 1
        %v555 = vrot.slane %v523, 1
        %v556 = vrot.slane %v524, 1
        %v557 = vrot.slane %v525, 1
        %v558 = vrot.slane %v526, 1
        %v559 = vrot.slane %v527, 1
        %v560 = vrot.slane %v528, 1
        %v561 = vrot.slane %v529, 1
        %v578 = vadd.f32 %v498, %v546
        %v579 = vadd.f32 %v499, %v547
        %v580 = vadd.f32 %v500, %v548
        %v581 = vadd.f32 %v501, %v549
        %v582 = vadd.f32 %v502, %v550
        %v583 = vadd.f32 %v503, %v551
        %v584 = vadd.f32 %v504, %v552
        %v585 = vadd.f32 %v505, %v553
        %v586 = vadd.f32 %v506, %v554
        %v587 = vadd.f32 %v507, %v555
        %v588 = vadd.f32 %v508, %v556
        %v589 = vadd.f32 %v509, %v557
        %v590 = vadd.f32 %v510, %v558
        %v591 = vadd.f32 %v511, %v559
        %v592 = vadd.f32 %v512, %v560
        %v593 = vadd.f32 %v513, %v561
        %594 = vrot.lane.b32.xlu0 %v390, 112
        %v595 = vpop.permute.xlu0 %594
        %596 = vrot.lane.b32.xlu0 %v396, 112
        %v597 = vpop.permute.xlu0 %596
        %598 = vrot.lane.b32.xlu0 %v397, 112
        %v599 = vpop.permute.xlu0 %598
        %600 = vrot.lane.b32.xlu0 %v398, 112
        %v601 = vpop.permute.xlu0 %600
        %602 = vrot.lane.b32.xlu0 %v399, 112
        %v603 = vpop.permute.xlu0 %602
        %604 = vrot.lane.b32.xlu0 %v400, 112
        %v605 = vpop.permute.xlu0 %604
        %606 = vrot.lane.b32.xlu0 %v401, 112
        %v607 = vpop.permute.xlu0 %606
        %608 = vrot.lane.b32.xlu0 %v402, 112
        %v609 = vpop.permute.xlu0 %608
        %610 = vrot.lane.b32.xlu0 %v392, 112
        %v611 = vpop.permute.xlu0 %610
        %612 = vrot.lane.b32.xlu0 %v403, 112
        %v613 = vpop.permute.xlu0 %612
        %614 = vrot.lane.b32.xlu0 %v404, 112
        %v615 = vpop.permute.xlu0 %614
        %616 = vrot.lane.b32.xlu0 %v405, 112
        %v617 = vpop.permute.xlu0 %616
        %618 = vrot.lane.b32.xlu0 %v406, 112
        %v619 = vpop.permute.xlu0 %618
        %620 = vrot.lane.b32.xlu0 %v407, 112
        %v621 = vpop.permute.xlu0 %620
        %622 = vrot.lane.b32.xlu0 %v408, 112
        %v623 = vpop.permute.xlu0 %622
        %624 = vrot.lane.b32.xlu0 %v409, 112
        %v625 = vpop.permute.xlu0 %624
        %v642 = vadd.f32 %v578, %v595
        %v643 = vadd.f32 %v579, %v597
        %v644 = vadd.f32 %v580, %v599
        %v645 = vadd.f32 %v581, %v601
        %v646 = vadd.f32 %v582, %v603
        %v647 = vadd.f32 %v583, %v605
        %v648 = vadd.f32 %v584, %v607
        %v649 = vadd.f32 %v585, %v609
        %v650 = vadd.f32 %v586, %v611
        %v651 = vadd.f32 %v587, %v613
        %v652 = vadd.f32 %v588, %v615
        %v653 = vadd.f32 %v589, %v617
        %v654 = vadd.f32 %v590, %v619
        %v655 = vadd.f32 %v591, %v621
        %v656 = vadd.f32 %v592, %v623
        %v657 = vadd.f32 %v593, %v625
        %v674 = vrot.slane %v643, 7
        %v675 = vsel %vm459, %v674, %v642
        %v676 = vrot.slane %v644, 6
        %v677 = vsel %vm462, %v676, %v675
        %v678 = vrot.slane %v645, 5
        %v679 = vsel %vm465, %v678, %v677
        %v680 = vrot.slane %v646, 4
        %v681 = vsel %vm468, %v680, %v679
        %v682 = vrot.slane %v647, 3
        %v683 = vsel %vm471, %v682, %v681
        %v684 = vrot.slane %v648, 2
        %v685 = vsel %vm474, %v684, %v683
        %v686 = vrot.slane %v649, 1
        %v687 = vsel %vm477, %v686, %v685
        %v688 = vrot.slane %v651, 7
        %v689 = vsel %vm459, %v688, %v650
        %v690 = vrot.slane %v652, 6
        %v691 = vsel %vm462, %v690, %v689
        %v692 = vrot.slane %v653, 5
        %v693 = vsel %vm465, %v692, %v691
        %v694 = vrot.slane %v654, 4
        %v695 = vsel %vm468, %v694, %v693
        %v696 = vrot.slane %v655, 3
        %v697 = vsel %vm471, %v696, %v695
        %v698 = vrot.slane %v656, 2
        %v699 = vsel %vm474, %v698, %v697
        %v700 = vrot.slane %v657, 1
        %v701 = vsel %vm477, %v700, %v699
        %702 = vrot.lane.b32.xlu0 %v687, 16
        %v703 = vpop.permute.xlu0 %702
        %704 = vrot.lane.b32.xlu0 %v701, 16
        %v705 = vpop.permute.xlu0 %704
        %vm708 = vcmask 261248
        %709 = vst.msk [vmem:[#allocation2] sm:$0xff] %vm708, %v703
        %710 = vst.msk [vmem:[#allocation2 + $0x10] sm:$0xff] %vm708, %v705
        %v711 = vmul.f32 %v351, 0.06666667
        %v712 = vmul.f32 %v353, 0.06666667
        %v713 = vmul.f32 %v356, 0.06666667
        %v714 = vmul.f32 %v358, 0.06666667
        %v715 = vmul.f32 %v361, 0.06666667
        %v716 = vmul.f32 %v363, 0.06666667
        %v717 = vmul.f32 %v366, 0.06666667
        %v718 = vmul.f32 %v368, 0.06666667
        %v719 = vmul.f32 %v371, 0.06666667
        %v720 = vmul.f32 %v373, 0.06666667
        %v721 = vmul.f32 %v376, 0.06666667
        %v722 = vmul.f32 %v378, 0.06666667
        %v723 = vmul.f32 %v381, 0.06666667
        %v724 = vmul.f32 %v383, 0.06666667
        %v725 = vmul.f32 %v386, 0.06666667
        %v726 = vmul.f32 %v388, 0.06666667
        %v727 = vmul.f32 %v351, 0.93333334
        %v728 = vmul.f32 %v353, 0.93333334
        %v729 = vmul.f32 %v356, 0.93333334
        %v730 = vmul.f32 %v358, 0.93333334
        %v731 = vmul.f32 %v361, 0.93333334
        %v732 = vmul.f32 %v363, 0.93333334
        %v733 = vmul.f32 %v366, 0.93333334
        %v734 = vmul.f32 %v368, 0.93333334
        %v735 = vmul.f32 %v371, 0.93333334
        %v736 = vmul.f32 %v373, 0.93333334
        %v737 = vmul.f32 %v376, 0.93333334
        %v738 = vmul.f32 %v378, 0.93333334
        %v739 = vmul.f32 %v381, 0.93333334
        %v740 = vmul.f32 %v383, 0.93333334
        %v741 = vmul.f32 %v386, 0.93333334
        %v742 = vmul.f32 %v388, 0.93333334
        %v759 = vrot.slane %v727, 1
        %v760 = vrot.slane %v728, 1
        %v761 = vrot.slane %v729, 1
        %v762 = vrot.slane %v730, 1
        %v763 = vrot.slane %v731, 1
        %v764 = vrot.slane %v732, 1
        %v765 = vrot.slane %v733, 1
        %v766 = vrot.slane %v734, 1
        %v767 = vrot.slane %v735, 1
        %v768 = vrot.slane %v736, 1
        %v769 = vrot.slane %v737, 1
        %v770 = vrot.slane %v738, 1
        %v771 = vrot.slane %v739, 1
        %v772 = vrot.slane %v740, 1
        %v773 = vrot.slane %v741, 1
        %v774 = vrot.slane %v742, 1
        %v791 = vadd.f32 %v711, %v759
        %v792 = vadd.f32 %v712, %v760
        %v793 = vadd.f32 %v713, %v761
        %v794 = vadd.f32 %v714, %v762
        %v795 = vadd.f32 %v715, %v763
        %v796 = vadd.f32 %v716, %v764
        %v797 = vadd.f32 %v717, %v765
        %v798 = vadd.f32 %v718, %v766
        %v799 = vadd.f32 %v719, %v767
        %v800 = vadd.f32 %v720, %v768
        %v801 = vadd.f32 %v721, %v769
        %v802 = vadd.f32 %v722, %v770
        %v803 = vadd.f32 %v723, %v771
        %v804 = vadd.f32 %v724, %v772
        %v805 = vadd.f32 %v725, %v773
        %v806 = vadd.f32 %v726, %v774
        %807 = vrot.lane.b32.xlu0 %v390, 96
        %v808 = vpop.permute.xlu0 %807
        %809 = vrot.lane.b32.xlu0 %v396, 96
        %v810 = vpop.permute.xlu0 %809
        %811 = vrot.lane.b32.xlu0 %v397, 96
        %v812 = vpop.permute.xlu0 %811
        %813 = vrot.lane.b32.xlu0 %v398, 96
        %v814 = vpop.permute.xlu0 %813
        %815 = vrot.lane.b32.xlu0 %v399, 96
        %v816 = vpop.permute.xlu0 %815
        %817 = vrot.lane.b32.xlu0 %v400, 96
        %v818 = vpop.permute.xlu0 %817
        %819 = vrot.lane.b32.xlu0 %v401, 96
        %v820 = vpop.permute.xlu0 %819
        %821 = vrot.lane.b32.xlu0 %v402, 96
        %v822 = vpop.permute.xlu0 %821
        %823 = vrot.lane.b32.xlu0 %v392, 96
        %v824 = vpop.permute.xlu0 %823
        %825 = vrot.lane.b32.xlu0 %v403, 96
        %v826 = vpop.permute.xlu0 %825
        %827 = vrot.lane.b32.xlu0 %v404, 96
        %v828 = vpop.permute.xlu0 %827
        %829 = vrot.lane.b32.xlu0 %v405, 96
        %v830 = vpop.permute.xlu0 %829
        %831 = vrot.lane.b32.xlu0 %v406, 96
        %v832 = vpop.permute.xlu0 %831
        %833 = vrot.lane.b32.xlu0 %v407, 96
        %v834 = vpop.permute.xlu0 %833
        %835 = vrot.lane.b32.xlu0 %v408, 96
        %v836 = vpop.permute.xlu0 %835
        %837 = vrot.lane.b32.xlu0 %v409, 96
        %v838 = vpop.permute.xlu0 %837
        %v855 = vadd.f32 %v791, %v808
        %v856 = vadd.f32 %v792, %v810
        %v857 = vadd.f32 %v793, %v812
        %v858 = vadd.f32 %v794, %v814
        %v859 = vadd.f32 %v795, %v816
        %v860 = vadd.f32 %v796, %v818
        %v861 = vadd.f32 %v797, %v820
        %v862 = vadd.f32 %v798, %v822
        %v863 = vadd.f32 %v799, %v824
        %v864 = vadd.f32 %v800, %v826
        %v865 = vadd.f32 %v801, %v828
        %v866 = vadd.f32 %v802, %v830
        %v867 = vadd.f32 %v803, %v832
        %v868 = vadd.f32 %v804, %v834
        %v869 = vadd.f32 %v805, %v836
        %v870 = vadd.f32 %v806, %v838
        %v887 = vrot.slane %v856, 7
        %v888 = vsel %vm459, %v887, %v855
        %v889 = vrot.slane %v857, 6
        %v890 = vsel %vm462, %v889, %v888
        %v891 = vrot.slane %v858, 5
        %v892 = vsel %vm465, %v891, %v890
        %v893 = vrot.slane %v859, 4
        %v894 = vsel %vm468, %v893, %v892
        %v895 = vrot.slane %v860, 3
        %v896 = vsel %vm471, %v895, %v894
        %v897 = vrot.slane %v861, 2
        %v898 = vsel %vm474, %v897, %v896
        %v899 = vrot.slane %v862, 1
        %v900 = vsel %vm477, %v899, %v898
        %v901 = vrot.slane %v864, 7
        %v902 = vsel %vm459, %v901, %v863
        %v903 = vrot.slane %v865, 6
        %v904 = vsel %vm462, %v903, %v902
        %v905 = vrot.slane %v866, 5
        %v906 = vsel %vm465, %v905, %v904
        %v907 = vrot.slane %v867, 4
        %v908 = vsel %vm468, %v907, %v906
        %v909 = vrot.slane %v868, 3
        %v910 = vsel %vm471, %v909, %v908
        %v911 = vrot.slane %v869, 2
        %v912 = vsel %vm474, %v911, %v910
        %v913 = vrot.slane %v870, 1
        %v914 = vsel %vm477, %v913, %v912
        %915 = vrot.lane.b32.xlu0 %v900, 32
        %v916 = vpop.permute.xlu0 %915
        %917 = vrot.lane.b32.xlu0 %v914, 32
        %v918 = vpop.permute.xlu0 %917
        %vm921 = vcmask 392448
        %922 = vst.msk [vmem:[#allocation2] sm:$0xff] %vm921, %v916
        %923 = vst.msk [vmem:[#allocation2 + $0x10] sm:$0xff] %vm921, %v918
        %v924 = vmul.f32 %v351, 0.6
        %v925 = vmul.f32 %v353, 0.6
        %v926 = vmul.f32 %v356, 0.6
        %v927 = vmul.f32 %v358, 0.6
        %v928 = vmul.f32 %v361, 0.6
        %v929 = vmul.f32 %v363, 0.6
        %v930 = vmul.f32 %v366, 0.6
        %v931 = vmul.f32 %v368, 0.6
        %v932 = vmul.f32 %v371, 0.6
        %v933 = vmul.f32 %v373, 0.6
        %v934 = vmul.f32 %v376, 0.6
        %v935 = vmul.f32 %v378, 0.6
        %v936 = vmul.f32 %v381, 0.6
        %v937 = vmul.f32 %v383, 0.6
        %v938 = vmul.f32 %v386, 0.6
        %v939 = vmul.f32 %v388, 0.6
        %v940 = vmul.f32 %v351, 0.4
        %v941 = vmul.f32 %v353, 0.4
        %v942 = vmul.f32 %v356, 0.4
        %v943 = vmul.f32 %v358, 0.4
        %v944 = vmul.f32 %v361, 0.4
        %v945 = vmul.f32 %v363, 0.4
        %v946 = vmul.f32 %v366, 0.4
        %v947 = vmul.f32 %v368, 0.4
        %v948 = vmul.f32 %v371, 0.4
        %v949 = vmul.f32 %v373, 0.4
        %v950 = vmul.f32 %v376, 0.4
        %v951 = vmul.f32 %v378, 0.4
        %v952 = vmul.f32 %v381, 0.4
        %v953 = vmul.f32 %v383, 0.4
        %v954 = vmul.f32 %v386, 0.4
        %v955 = vmul.f32 %v388, 0.4
        %v972 = vrot.slane %v940, 1
        %v973 = vrot.slane %v941, 1
        %v974 = vrot.slane %v942, 1
        %v975 = vrot.slane %v943, 1
        %v976 = vrot.slane %v944, 1
        %v977 = vrot.slane %v945, 1
        %v978 = vrot.slane %v946, 1
        %v979 = vrot.slane %v947, 1
        %v980 = vrot.slane %v948, 1
        %v981 = vrot.slane %v949, 1
        %v982 = vrot.slane %v950, 1
        %v983 = vrot.slane %v951, 1
        %v984 = vrot.slane %v952, 1
        %v985 = vrot.slane %v953, 1
        %v986 = vrot.slane %v954, 1
        %v987 = vrot.slane %v955, 1
        %v1004 = vadd.f32 %v924, %v972
        %v1005 = vadd.f32 %v925, %v973
        %v1006 = vadd.f32 %v926, %v974
        %v1007 = vadd.f32 %v927, %v975
        %v1008 = vadd.f32 %v928, %v976
        %v1009 = vadd.f32 %v929, %v977
        %v1010 = vadd.f32 %v930, %v978
        %v1011 = vadd.f32 %v931, %v979
        %v1012 = vadd.f32 %v932, %v980
        %v1013 = vadd.f32 %v933, %v981
        %v1014 = vadd.f32 %v934, %v982
        %v1015 = vadd.f32 %v935, %v983
        %v1016 = vadd.f32 %v936, %v984
        %v1017 = vadd.f32 %v937, %v985
        %v1018 = vadd.f32 %v938, %v986
        %v1019 = vadd.f32 %v939, %v987
        %1020 = vrot.lane.b32.xlu0 %v402, 80
        %v1021 = vpop.permute.xlu0 %1020
        %1022 = vrot.lane.b32.xlu0 %v390, 80
        %v1023 = vpop.permute.xlu0 %1022
        %1024 = vrot.lane.b32.xlu0 %v396, 80
        %v1025 = vpop.permute.xlu0 %1024
        %1026 = vrot.lane.b32.xlu0 %v397, 80
        %v1027 = vpop.permute.xlu0 %1026
        %1028 = vrot.lane.b32.xlu0 %v398, 80
        %v1029 = vpop.permute.xlu0 %1028
        %1030 = vrot.lane.b32.xlu0 %v399, 80
        %v1031 = vpop.permute.xlu0 %1030
        %1032 = vrot.lane.b32.xlu0 %v400, 80
        %v1033 = vpop.permute.xlu0 %1032
        %1034 = vrot.lane.b32.xlu0 %v401, 80
        %v1035 = vpop.permute.xlu0 %1034
        %1036 = vrot.lane.b32.xlu0 %v409, 80
        %v1037 = vpop.permute.xlu0 %1036
        %1038 = vrot.lane.b32.xlu0 %v392, 80
        %v1039 = vpop.permute.xlu0 %1038
        %1040 = vrot.lane.b32.xlu0 %v403, 80
        %v1041 = vpop.permute.xlu0 %1040
        %1042 = vrot.lane.b32.xlu0 %v404, 80
        %v1043 = vpop.permute.xlu0 %1042
        %1044 = vrot.lane.b32.xlu0 %v405, 80
        %v1045 = vpop.permute.xlu0 %1044
        %1046 = vrot.lane.b32.xlu0 %v406, 80
        %v1047 = vpop.permute.xlu0 %1046
        %1048 = vrot.lane.b32.xlu0 %v407, 80
        %v1049 = vpop.permute.xlu0 %1048
        %1050 = vrot.lane.b32.xlu0 %v408, 80
        %v1051 = vpop.permute.xlu0 %1050
        %v1068 = vadd.f32 %v1004, %v1021
        %v1069 = vadd.f32 %v1005, %v1023
        %v1070 = vadd.f32 %v1006, %v1025
        %v1071 = vadd.f32 %v1007, %v1027
        %v1072 = vadd.f32 %v1008, %v1029
        %v1073 = vadd.f32 %v1009, %v1031
        %v1074 = vadd.f32 %v1010, %v1033
        %v1075 = vadd.f32 %v1011, %v1035
        %v1076 = vadd.f32 %v1012, %v1037
        %v1077 = vadd.f32 %v1013, %v1039
        %v1078 = vadd.f32 %v1014, %v1041
        %v1079 = vadd.f32 %v1015, %v1043
        %v1080 = vadd.f32 %v1016, %v1045
        %v1081 = vadd.f32 %v1017, %v1047
        %v1082 = vadd.f32 %v1018, %v1049
        %v1083 = vadd.f32 %v1019, %v1051
        %v1100 = vrot.slane %v1068, 1
        %v1101 = vsel %vm459, %v1069, %v1100
        %v1102 = vrot.slane %v1070, 7
        %v1103 = vsel %vm462, %v1102, %v1101
        %v1104 = vrot.slane %v1071, 6
        %v1105 = vsel %vm465, %v1104, %v1103
        %v1106 = vrot.slane %v1072, 5
        %v1107 = vsel %vm468, %v1106, %v1105
        %v1108 = vrot.slane %v1073, 4
        %v1109 = vsel %vm471, %v1108, %v1107
        %v1110 = vrot.slane %v1074, 3
        %v1111 = vsel %vm474, %v1110, %v1109
        %v1112 = vrot.slane %v1075, 2
        %v1113 = vsel %vm477, %v1112, %v1111
        %v1114 = vrot.slane %v1076, 1
        %v1115 = vsel %vm459, %v1077, %v1114
        %v1116 = vrot.slane %v1078, 7
        %v1117 = vsel %vm462, %v1116, %v1115
        %v1118 = vrot.slane %v1079, 6
        %v1119 = vsel %vm465, %v1118, %v1117
        %v1120 = vrot.slane %v1080, 5
        %v1121 = vsel %vm468, %v1120, %v1119
        %v1122 = vrot.slane %v1081, 4
        %v1123 = vsel %vm471, %v1122, %v1121
        %v1124 = vrot.slane %v1082, 3
        %v1125 = vsel %vm474, %v1124, %v1123
        %v1126 = vrot.slane %v1083, 2
        %v1127 = vsel %vm477, %v1126, %v1125
        %1128 = vrot.lane.b32.xlu0 %v1113, 48
        %v1129 = vpop.permute.xlu0 %1128
        %1130 = vrot.lane.b32.xlu0 %v1127, 48
        %v1131 = vpop.permute.xlu0 %1130
        %vm1134 = vcmask 523648
        %1135 = vst.msk [vmem:[#allocation2] sm:$0xff] %vm1134, %v1129
        %1136 = vst.msk [vmem:[#allocation2 + $0x10] sm:$0xff] %vm1134, %v1131
        %v1137 = vmul.f32 %v351, 0.13333334
        %v1138 = vmul.f32 %v353, 0.13333334
        %v1139 = vmul.f32 %v356, 0.13333334
        %v1140 = vmul.f32 %v358, 0.13333334
        %v1141 = vmul.f32 %v361, 0.13333334
        %v1142 = vmul.f32 %v363, 0.13333334
        %v1143 = vmul.f32 %v366, 0.13333334
        %v1144 = vmul.f32 %v368, 0.13333334
        %v1145 = vmul.f32 %v371, 0.13333334
        %v1146 = vmul.f32 %v373, 0.13333334
        %v1147 = vmul.f32 %v376, 0.13333334
        %v1148 = vmul.f32 %v378, 0.13333334
        %v1149 = vmul.f32 %v381, 0.13333334
        %v1150 = vmul.f32 %v383, 0.13333334
        %v1151 = vmul.f32 %v386, 0.13333334
        %v1152 = vmul.f32 %v388, 0.13333334
        %v1153 = vmul.f32 %v351, 0.8666667
        %v1154 = vmul.f32 %v353, 0.8666667
        %v1155 = vmul.f32 %v356, 0.8666667
        %v1156 = vmul.f32 %v358, 0.8666667
        %v1157 = vmul.f32 %v361, 0.8666667
        %v1158 = vmul.f32 %v363, 0.8666667
        %v1159 = vmul.f32 %v366, 0.8666667
        %v1160 = vmul.f32 %v368, 0.8666667
        %v1161 = vmul.f32 %v371, 0.8666667
        %v1162 = vmul.f32 %v373, 0.8666667
        %v1163 = vmul.f32 %v376, 0.8666667
        %v1164 = vmul.f32 %v378, 0.8666667
        %v1165 = vmul.f32 %v381, 0.8666667
        %v1166 = vmul.f32 %v383, 0.8666667
        %v1167 = vmul.f32 %v386, 0.8666667
        %v1168 = vmul.f32 %v388, 0.8666667
        %v1185 = vrot.slane %v1153, 1
        %v1186 = vrot.slane %v1154, 1
        %v1187 = vrot.slane %v1155, 1
        %v1188 = vrot.slane %v1156, 1
        %v1189 = vrot.slane %v1157, 1
        %v1190 = vrot.slane %v1158, 1
        %v1191 = vrot.slane %v1159, 1
        %v1192 = vrot.slane %v1160, 1
        %v1193 = vrot.slane %v1161, 1
        %v1194 = vrot.slane %v1162, 1
        %v1195 = vrot.slane %v1163, 1
        %v1196 = vrot.slane %v1164, 1
        %v1197 = vrot.slane %v1165, 1
        %v1198 = vrot.slane %v1166, 1
        %v1199 = vrot.slane %v1167, 1
        %v1200 = vrot.slane %v1168, 1
        %v1217 = vadd.f32 %v1137, %v1185
        %v1218 = vadd.f32 %v1138, %v1186
        %v1219 = vadd.f32 %v1139, %v1187
        %v1220 = vadd.f32 %v1140, %v1188
        %v1221 = vadd.f32 %v1141, %v1189
        %v1222 = vadd.f32 %v1142, %v1190
        %v1223 = vadd.f32 %v1143, %v1191
        %v1224 = vadd.f32 %v1144, %v1192
        %v1225 = vadd.f32 %v1145, %v1193
        %v1226 = vadd.f32 %v1146, %v1194
        %v1227 = vadd.f32 %v1147, %v1195
        %v1228 = vadd.f32 %v1148, %v1196
        %v1229 = vadd.f32 %v1149, %v1197
        %v1230 = vadd.f32 %v1150, %v1198
        %v1231 = vadd.f32 %v1151, %v1199
        %v1232 = vadd.f32 %v1152, %v1200
        %1233 = vrot.lane.b32.xlu0 %v402, 64
        %v1234 = vpop.permute.xlu0 %1233
        %1235 = vrot.lane.b32.xlu0 %v390, 64
        %v1236 = vpop.permute.xlu0 %1235
        %1237 = vrot.lane.b32.xlu0 %v396, 64
        %v1238 = vpop.permute.xlu0 %1237
        %1239 = vrot.lane.b32.xlu0 %v397, 64
        %v1240 = vpop.permute.xlu0 %1239
        %1241 = vrot.lane.b32.xlu0 %v398, 64
        %v1242 = vpop.permute.xlu0 %1241
        %1243 = vrot.lane.b32.xlu0 %v399, 64
        %v1244 = vpop.permute.xlu0 %1243
        %1245 = vrot.lane.b32.xlu0 %v400, 64
        %v1246 = vpop.permute.xlu0 %1245
        %1247 = vrot.lane.b32.xlu0 %v401, 64
        %v1248 = vpop.permute.xlu0 %1247
        %1249 = vrot.lane.b32.xlu0 %v409, 64
        %v1250 = vpop.permute.xlu0 %1249
        %1251 = vrot.lane.b32.xlu0 %v392, 64
        %v1252 = vpop.permute.xlu0 %1251
        %1253 = vrot.lane.b32.xlu0 %v403, 64
        %v1254 = vpop.permute.xlu0 %1253
        %1255 = vrot.lane.b32.xlu0 %v404, 64
        %v1256 = vpop.permute.xlu0 %1255
        %1257 = vrot.lane.b32.xlu0 %v405, 64
        %v1258 = vpop.permute.xlu0 %1257
        %1259 = vrot.lane.b32.xlu0 %v406, 64
        %v1260 = vpop.permute.xlu0 %1259
        %1261 = vrot.lane.b32.xlu0 %v407, 64
        %v1262 = vpop.permute.xlu0 %1261
        %1263 = vrot.lane.b32.xlu0 %v408, 64
        %v1264 = vpop.permute.xlu0 %1263
        %v1281 = vadd.f32 %v1217, %v1234
        %v1282 = vadd.f32 %v1218, %v1236
        %v1283 = vadd.f32 %v1219, %v1238
        %v1284 = vadd.f32 %v1220, %v1240
        %v1285 = vadd.f32 %v1221, %v1242
        %v1286 = vadd.f32 %v1222, %v1244
        %v1287 = vadd.f32 %v1223, %v1246
        %v1288 = vadd.f32 %v1224, %v1248
        %v1289 = vadd.f32 %v1225, %v1250
        %v1290 = vadd.f32 %v1226, %v1252
        %v1291 = vadd.f32 %v1227, %v1254
        %v1292 = vadd.f32 %v1228, %v1256
        %v1293 = vadd.f32 %v1229, %v1258
        %v1294 = vadd.f32 %v1230, %v1260
        %v1295 = vadd.f32 %v1231, %v1262
        %v1296 = vadd.f32 %v1232, %v1264
        %v1313 = vrot.slane %v1281, 1
        %v1314 = vsel %vm459, %v1282, %v1313
        %v1315 = vrot.slane %v1283, 7
        %v1316 = vsel %vm462, %v1315, %v1314
        %v1317 = vrot.slane %v1284, 6
        %v1318 = vsel %vm465, %v1317, %v1316
        %v1319 = vrot.slane %v1285, 5
        %v1320 = vsel %vm468, %v1319, %v1318
        %v1321 = vrot.slane %v1286, 4
        %v1322 = vsel %vm471, %v1321, %v1320
        %v1323 = vrot.slane %v1287, 3
        %v1324 = vsel %vm474, %v1323, %v1322
        %v1325 = vrot.slane %v1288, 2
        %v1326 = vsel %vm477, %v1325, %v1324
        %v1327 = vrot.slane %v1289, 1
        %v1328 = vsel %vm459, %v1290, %v1327
        %v1329 = vrot.slane %v1291, 7
        %v1330 = vsel %vm462, %v1329, %v1328
        %v1331 = vrot.slane %v1292, 6
        %v1332 = vsel %vm465, %v1331, %v1330
        %v1333 = vrot.slane %v1293, 5
        %v1334 = vsel %vm468, %v1333, %v1332
        %v1335 = vrot.slane %v1294, 4
        %v1336 = vsel %vm471, %v1335, %v1334
        %v1337 = vrot.slane %v1295, 3
        %v1338 = vsel %vm474, %v1337, %v1336
        %v1339 = vrot.slane %v1296, 2
        %v1340 = vsel %vm477, %v1339, %v1338
        %1341 = vrot.lane.b32.xlu0 %v1326, 64
        %v1342 = vpop.permute.xlu0 %1341
        %1343 = vrot.lane.b32.xlu0 %v1340, 64
        %v1344 = vpop.permute.xlu0 %1343
        %vm1347 = vcmask 654848
        %1348 = vst.msk [vmem:[#allocation2] sm:$0xff] %vm1347, %v1342
        %1349 = vst.msk [vmem:[#allocation2 + $0x10] sm:$0xff] %vm1347, %v1344
        %v1350 = vmul.f32 %v351, 0.6666667
        %v1351 = vmul.f32 %v353, 0.6666667
        %v1352 = vmul.f32 %v356, 0.6666667
        %v1353 = vmul.f32 %v358, 0.6666667
        %v1354 = vmul.f32 %v361, 0.6666667
        %v1355 = vmul.f32 %v363, 0.6666667
        %v1356 = vmul.f32 %v366, 0.6666667
        %v1357 = vmul.f32 %v368, 0.6666667
        %v1358 = vmul.f32 %v371, 0.6666667
        %v1359 = vmul.f32 %v373, 0.6666667
        %v1360 = vmul.f32 %v376, 0.6666667
        %v1361 = vmul.f32 %v378, 0.6666667
        %v1362 = vmul.f32 %v381, 0.6666667
        %v1363 = vmul.f32 %v383, 0.6666667
        %v1364 = vmul.f32 %v386, 0.6666667
        %v1365 = vmul.f32 %v388, 0.6666667
        %v1366 = vmul.f32 %v351, 0.33333334
        %v1367 = vmul.f32 %v353, 0.33333334
        %v1368 = vmul.f32 %v356, 0.33333334
        %v1369 = vmul.f32 %v358, 0.33333334
        %v1370 = vmul.f32 %v361, 0.33333334
        %v1371 = vmul.f32 %v363, 0.33333334
        %v1372 = vmul.f32 %v366, 0.33333334
        %v1373 = vmul.f32 %v368, 0.33333334
        %v1374 = vmul.f32 %v371, 0.33333334
        %v1375 = vmul.f32 %v373, 0.33333334
        %v1376 = vmul.f32 %v376, 0.33333334
        %v1377 = vmul.f32 %v378, 0.33333334
        %v1378 = vmul.f32 %v381, 0.33333334
        %v1379 = vmul.f32 %v383, 0.33333334
        %v1380 = vmul.f32 %v386, 0.33333334
        %v1381 = vmul.f32 %v388, 0.33333334
        %v1398 = vrot.slane %v1366, 1
        %v1399 = vrot.slane %v1367, 1
        %v1400 = vrot.slane %v1368, 1
        %v1401 = vrot.slane %v1369, 1
        %v1402 = vrot.slane %v1370, 1
        %v1403 = vrot.slane %v1371, 1
        %v1404 = vrot.slane %v1372, 1
        %v1405 = vrot.slane %v1373, 1
        %v1406 = vrot.slane %v1374, 1
        %v1407 = vrot.slane %v1375, 1
        %v1408 = vrot.slane %v1376, 1
        %v1409 = vrot.slane %v1377, 1
        %v1410 = vrot.slane %v1378, 1
        %v1411 = vrot.slane %v1379, 1
        %v1412 = vrot.slane %v1380, 1
        %v1413 = vrot.slane %v1381, 1
        %v1430 = vadd.f32 %v1350, %v1398
        %v1431 = vadd.f32 %v1351, %v1399
        %v1432 = vadd.f32 %v1352, %v1400
        %v1433 = vadd.f32 %v1353, %v1401
        %v1434 = vadd.f32 %v1354, %v1402
        %v1435 = vadd.f32 %v1355, %v1403
        %v1436 = vadd.f32 %v1356, %v1404
        %v1437 = vadd.f32 %v1357, %v1405
        %v1438 = vadd.f32 %v1358, %v1406
        %v1439 = vadd.f32 %v1359, %v1407
        %v1440 = vadd.f32 %v1360, %v1408
        %v1441 = vadd.f32 %v1361, %v1409
        %v1442 = vadd.f32 %v1362, %v1410
        %v1443 = vadd.f32 %v1363, %v1411
        %v1444 = vadd.f32 %v1364, %v1412
        %v1445 = vadd.f32 %v1365, %v1413
        %1446 = vrot.lane.b32.xlu0 %v401, 48
        %v1447 = vpop.permute.xlu0 %1446
        %1448 = vrot.lane.b32.xlu0 %v402, 48
        %v1449 = vpop.permute.xlu0 %1448
        %1450 = vrot.lane.b32.xlu0 %v390, 48
        %v1451 = vpop.permute.xlu0 %1450
        %1452 = vrot.lane.b32.xlu0 %v396, 48
        %v1453 = vpop.permute.xlu0 %1452
        %1454 = vrot.lane.b32.xlu0 %v397, 48
        %v1455 = vpop.permute.xlu0 %1454
        %1456 = vrot.lane.b32.xlu0 %v398, 48
        %v1457 = vpop.permute.xlu0 %1456
        %1458 = vrot.lane.b32.xlu0 %v399, 48
        %v1459 = vpop.permute.xlu0 %1458
        %1460 = vrot.lane.b32.xlu0 %v400, 48
        %v1461 = vpop.permute.xlu0 %1460
        %1462 = vrot.lane.b32.xlu0 %v408, 48
        %v1463 = vpop.permute.xlu0 %1462
        %1464 = vrot.lane.b32.xlu0 %v409, 48
        %v1465 = vpop.permute.xlu0 %1464
        %1466 = vrot.lane.b32.xlu0 %v392, 48
        %v1467 = vpop.permute.xlu0 %1466
        %1468 = vrot.lane.b32.xlu0 %v403, 48
        %v1469 = vpop.permute.xlu0 %1468
        %1470 = vrot.lane.b32.xlu0 %v404, 48
        %v1471 = vpop.permute.xlu0 %1470
        %1472 = vrot.lane.b32.xlu0 %v405, 48
        %v1473 = vpop.permute.xlu0 %1472
        %1474 = vrot.lane.b32.xlu0 %v406, 48
        %v1475 = vpop.permute.xlu0 %1474
        %1476 = vrot.lane.b32.xlu0 %v407, 48
        %v1477 = vpop.permute.xlu0 %1476
        %v1494 = vadd.f32 %v1430, %v1447
        %v1495 = vadd.f32 %v1431, %v1449
        %v1496 = vadd.f32 %v1432, %v1451
        %v1497 = vadd.f32 %v1433, %v1453
        %v1498 = vadd.f32 %v1434, %v1455
        %v1499 = vadd.f32 %v1435, %v1457
        %v1500 = vadd.f32 %v1436, %v1459
        %v1501 = vadd.f32 %v1437, %v1461
        %v1502 = vadd.f32 %v1438, %v1463
        %v1503 = vadd.f32 %v1439, %v1465
        %v1504 = vadd.f32 %v1440, %v1467
        %v1505 = vadd.f32 %v1441, %v1469
        %v1506 = vadd.f32 %v1442, %v1471
        %v1507 = vadd.f32 %v1443, %v1473
        %v1508 = vadd.f32 %v1444, %v1475
        %v1509 = vadd.f32 %v1445, %v1477
        %v1526 = vrot.slane %v1494, 2
        %v1527 = vrot.slane %v1495, 1
        %v1528 = vsel %vm459, %v1527, %v1526
        %v1529 = vsel %vm462, %v1496, %v1528
        %v1530 = vrot.slane %v1497, 7
        %v1531 = vsel %vm465, %v1530, %v1529
        %v1532 = vrot.slane %v1498, 6
        %v1533 = vsel %vm468, %v1532, %v1531
        %v1534 = vrot.slane %v1499, 5
        %v1535 = vsel %vm471, %v1534, %v1533
        %v1536 = vrot.slane %v1500, 4
        %v1537 = vsel %vm474, %v1536, %v1535
        %v1538 = vrot.slane %v1501, 3
        %v1539 = vsel %vm477, %v1538, %v1537
        %v1540 = vrot.slane %v1502, 2
        %v1541 = vrot.slane %v1503, 1
        %v1542 = vsel %vm459, %v1541, %v1540
        %v1543 = vsel %vm462, %v1504, %v1542
        %v1544 = vrot.slane %v1505, 7
        %v1545 = vsel %vm465, %v1544, %v1543
        %v1546 = vrot.slane %v1506, 6
        %v1547 = vsel %vm468, %v1546, %v1545
        %v1548 = vrot.slane %v1507, 5
        %v1549 = vsel %vm471, %v1548, %v1547
        %v1550 = vrot.slane %v1508, 4
        %v1551 = vsel %vm474, %v1550, %v1549
        %v1552 = vrot.slane %v1509, 3
        %v1553 = vsel %vm477, %v1552, %v1551
        %1554 = vrot.lane.b32.xlu0 %v1539, 80
        %v1555 = vpop.permute.xlu0 %1554
        %1556 = vrot.lane.b32.xlu0 %v1553, 80
        %v1557 = vpop.permute.xlu0 %1556
        %vm1560 = vcmask 786048
        %1561 = vst.msk [vmem:[#allocation2] sm:$0xff] %vm1560, %v1555
        %1562 = vst.msk [vmem:[#allocation2 + $0x10] sm:$0xff] %vm1560, %v1557
        %v1563 = vmul.f32 %v351, 0.2
        %v1564 = vmul.f32 %v353, 0.2
        %v1565 = vmul.f32 %v356, 0.2
        %v1566 = vmul.f32 %v358, 0.2
        %v1567 = vmul.f32 %v361, 0.2
        %v1568 = vmul.f32 %v363, 0.2
        %v1569 = vmul.f32 %v366, 0.2
        %v1570 = vmul.f32 %v368, 0.2
        %v1571 = vmul.f32 %v371, 0.2
        %v1572 = vmul.f32 %v373, 0.2
        %v1573 = vmul.f32 %v376, 0.2
        %v1574 = vmul.f32 %v378, 0.2
        %v1575 = vmul.f32 %v381, 0.2
        %v1576 = vmul.f32 %v383, 0.2
        %v1577 = vmul.f32 %v386, 0.2
        %v1578 = vmul.f32 %v388, 0.2
        %v1579 = vmul.f32 %v351, 0.8
        %v1580 = vmul.f32 %v353, 0.8
        %v1581 = vmul.f32 %v356, 0.8
        %v1582 = vmul.f32 %v358, 0.8
        %v1583 = vmul.f32 %v361, 0.8
        %v1584 = vmul.f32 %v363, 0.8
        %v1585 = vmul.f32 %v366, 0.8
        %v1586 = vmul.f32 %v368, 0.8
        %v1587 = vmul.f32 %v371, 0.8
        %v1588 = vmul.f32 %v373, 0.8
        %v1589 = vmul.f32 %v376, 0.8
        %v1590 = vmul.f32 %v378, 0.8
        %v1591 = vmul.f32 %v381, 0.8
        %v1592 = vmul.f32 %v383, 0.8
        %v1593 = vmul.f32 %v386, 0.8
        %v1594 = vmul.f32 %v388, 0.8
        %v1611 = vrot.slane %v1579, 1
        %v1612 = vrot.slane %v1580, 1
        %v1613 = vrot.slane %v1581, 1
        %v1614 = vrot.slane %v1582, 1
        %v1615 = vrot.slane %v1583, 1
        %v1616 = vrot.slane %v1584, 1
        %v1617 = vrot.slane %v1585, 1
        %v1618 = vrot.slane %v1586, 1
        %v1619 = vrot.slane %v1587, 1
        %v1620 = vrot.slane %v1588, 1
        %v1621 = vrot.slane %v1589, 1
        %v1622 = vrot.slane %v1590, 1
        %v1623 = vrot.slane %v1591, 1
        %v1624 = vrot.slane %v1592, 1
        %v1625 = vrot.slane %v1593, 1
        %v1626 = vrot.slane %v1594, 1
        %v1643 = vadd.f32 %v1563, %v1611
        %v1644 = vadd.f32 %v1564, %v1612
        %v1645 = vadd.f32 %v1565, %v1613
        %v1646 = vadd.f32 %v1566, %v1614
        %v1647 = vadd.f32 %v1567, %v1615
        %v1648 = vadd.f32 %v1568, %v1616
        %v1649 = vadd.f32 %v1569, %v1617
        %v1650 = vadd.f32 %v1570, %v1618
        %v1651 = vadd.f32 %v1571, %v1619
        %v1652 = vadd.f32 %v1572, %v1620
        %v1653 = vadd.f32 %v1573, %v1621
        %v1654 = vadd.f32 %v1574, %v1622
        %v1655 = vadd.f32 %v1575, %v1623
        %v1656 = vadd.f32 %v1576, %v1624
        %v1657 = vadd.f32 %v1577, %v1625
        %v1658 = vadd.f32 %v1578, %v1626
        %1659 = vrot.lane.b32.xlu0 %v401, 32
        %v1660 = vpop.permute.xlu0 %1659
        %1661 = vrot.lane.b32.xlu0 %v402, 32
        %v1662 = vpop.permute.xlu0 %1661
        %1663 = vrot.lane.b32.xlu0 %v390, 32
        %v1664 = vpop.permute.xlu0 %1663
        %1665 = vrot.lane.b32.xlu0 %v396, 32
        %v1666 = vpop.permute.xlu0 %1665
        %1667 = vrot.lane.b32.xlu0 %v397, 32
        %v1668 = vpop.permute.xlu0 %1667
        %1669 = vrot.lane.b32.xlu0 %v398, 32
        %v1670 = vpop.permute.xlu0 %1669
        %1671 = vrot.lane.b32.xlu0 %v399, 32
        %v1672 = vpop.permute.xlu0 %1671
        %1673 = vrot.lane.b32.xlu0 %v400, 32
        %v1674 = vpop.permute.xlu0 %1673
        %1675 = vrot.lane.b32.xlu0 %v408, 32
        %v1676 = vpop.permute.xlu0 %1675
        %1677 = vrot.lane.b32.xlu0 %v409, 32
        %v1678 = vpop.permute.xlu0 %1677
        %1679 = vrot.lane.b32.xlu0 %v392, 32
        %v1680 = vpop.permute.xlu0 %1679
        %1681 = vrot.lane.b32.xlu0 %v403, 32
        %v1682 = vpop.permute.xlu0 %1681
        %1683 = vrot.lane.b32.xlu0 %v404, 32
        %v1684 = vpop.permute.xlu0 %1683
        %1685 = vrot.lane.b32.xlu0 %v405, 32
        %v1686 = vpop.permute.xlu0 %1685
        %1687 = vrot.lane.b32.xlu0 %v406, 32
        %v1688 = vpop.permute.xlu0 %1687
        %1689 = vrot.lane.b32.xlu0 %v407, 32
        %v1690 = vpop.permute.xlu0 %1689
        %v1707 = vadd.f32 %v1643, %v1660
        %v1708 = vadd.f32 %v1644, %v1662
        %v1709 = vadd.f32 %v1645, %v1664
        %v1710 = vadd.f32 %v1646, %v1666
        %v1711 = vadd.f32 %v1647, %v1668
        %v1712 = vadd.f32 %v1648, %v1670
        %v1713 = vadd.f32 %v1649, %v1672
        %v1714 = vadd.f32 %v1650, %v1674
        %v1715 = vadd.f32 %v1651, %v1676
        %v1716 = vadd.f32 %v1652, %v1678
        %v1717 = vadd.f32 %v1653, %v1680
        %v1718 = vadd.f32 %v1654, %v1682
        %v1719 = vadd.f32 %v1655, %v1684
        %v1720 = vadd.f32 %v1656, %v1686
        %v1721 = vadd.f32 %v1657, %v1688
        %v1722 = vadd.f32 %v1658, %v1690
        %v1739 = vrot.slane %v1707, 2
        %v1740 = vrot.slane %v1708, 1
        %v1741 = vsel %vm459, %v1740, %v1739
        %v1742 = vsel %vm462, %v1709, %v1741
        %v1743 = vrot.slane %v1710, 7
        %v1744 = vsel %vm465, %v1743, %v1742
        %v1745 = vrot.slane %v1711, 6
        %v1746 = vsel %vm468, %v1745, %v1744
        %v1747 = vrot.slane %v1712, 5
        %v1748 = vsel %vm471, %v1747, %v1746
        %v1749 = vrot.slane %v1713, 4
        %v1750 = vsel %vm474, %v1749, %v1748
        %v1751 = vrot.slane %v1714, 3
        %v1752 = vsel %vm477, %v1751, %v1750
        %v1753 = vrot.slane %v1715, 2
        %v1754 = vrot.slane %v1716, 1
        %v1755 = vsel %vm459, %v1754, %v1753
        %v1756 = vsel %vm462, %v1717, %v1755
        %v1757 = vrot.slane %v1718, 7
        %v1758 = vsel %vm465, %v1757, %v1756
        %v1759 = vrot.slane %v1719, 6
        %v1760 = vsel %vm468, %v1759, %v1758
        %v1761 = vrot.slane %v1720, 5
        %v1762 = vsel %vm471, %v1761, %v1760
        %v1763 = vrot.slane %v1721, 4
        %v1764 = vsel %vm474, %v1763, %v1762
        %v1765 = vrot.slane %v1722, 3
        %v1766 = vsel %vm477, %v1765, %v1764
        %1767 = vrot.lane.b32.xlu0 %v1752, 96
        %v1768 = vpop.permute.xlu0 %1767
        %1769 = vrot.lane.b32.xlu0 %v1766, 96
        %v1770 = vpop.permute.xlu0 %1769
        %vm1773 = vcmask 917248
        %1774 = vst.msk [vmem:[#allocation2] sm:$0xff] %vm1773, %v1768
        %1775 = vst.msk [vmem:[#allocation2 + $0x10] sm:$0xff] %vm1773, %v1770
        %v1776 = vmul.f32 %v351, 0.73333335
        %v1777 = vmul.f32 %v353, 0.73333335
        %v1778 = vmul.f32 %v356, 0.73333335
        %v1779 = vmul.f32 %v358, 0.73333335
        %v1780 = vmul.f32 %v361, 0.73333335
        %v1781 = vmul.f32 %v363, 0.73333335
        %v1782 = vmul.f32 %v366, 0.73333335
        %v1783 = vmul.f32 %v368, 0.73333335
        %v1784 = vmul.f32 %v371, 0.73333335
        %v1785 = vmul.f32 %v373, 0.73333335
        %v1786 = vmul.f32 %v376, 0.73333335
        %v1787 = vmul.f32 %v378, 0.73333335
        %v1788 = vmul.f32 %v381, 0.73333335
        %v1789 = vmul.f32 %v383, 0.73333335
        %v1790 = vmul.f32 %v386, 0.73333335
        %v1791 = vmul.f32 %v388, 0.73333335
        %v1792 = vmul.f32 %v351, 0.26666668
        %v1793 = vmul.f32 %v353, 0.26666668
        %v1794 = vmul.f32 %v356, 0.26666668
        %v1795 = vmul.f32 %v358, 0.26666668
        %v1796 = vmul.f32 %v361, 0.26666668
        %v1797 = vmul.f32 %v363, 0.26666668
        %v1798 = vmul.f32 %v366, 0.26666668
        %v1799 = vmul.f32 %v368, 0.26666668
        %v1800 = vmul.f32 %v371, 0.26666668
        %v1801 = vmul.f32 %v373, 0.26666668
        %v1802 = vmul.f32 %v376, 0.26666668
        %v1803 = vmul.f32 %v378, 0.26666668
        %v1804 = vmul.f32 %v381, 0.26666668
        %v1805 = vmul.f32 %v383, 0.26666668
        %v1806 = vmul.f32 %v386, 0.26666668
        %v1807 = vmul.f32 %v388, 0.26666668
        %v1824 = vrot.slane %v1792, 1
        %v1825 = vrot.slane %v1793, 1
        %v1826 = vrot.slane %v1794, 1
        %v1827 = vrot.slane %v1795, 1
        %v1828 = vrot.slane %v1796, 1
        %v1829 = vrot.slane %v1797, 1
        %v1830 = vrot.slane %v1798, 1
        %v1831 = vrot.slane %v1799, 1
        %v1832 = vrot.slane %v1800, 1
        %v1833 = vrot.slane %v1801, 1
        %v1834 = vrot.slane %v1802, 1
        %v1835 = vrot.slane %v1803, 1
        %v1836 = vrot.slane %v1804, 1
        %v1837 = vrot.slane %v1805, 1
        %v1838 = vrot.slane %v1806, 1
        %v1839 = vrot.slane %v1807, 1
        %v1856 = vadd.f32 %v1776, %v1824
        %v1857 = vadd.f32 %v1777, %v1825
        %v1858 = vadd.f32 %v1778, %v1826
        %v1859 = vadd.f32 %v1779, %v1827
        %v1860 = vadd.f32 %v1780, %v1828
        %v1861 = vadd.f32 %v1781, %v1829
        %v1862 = vadd.f32 %v1782, %v1830
        %v1863 = vadd.f32 %v1783, %v1831
        %v1864 = vadd.f32 %v1784, %v1832
        %v1865 = vadd.f32 %v1785, %v1833
        %v1866 = vadd.f32 %v1786, %v1834
        %v1867 = vadd.f32 %v1787, %v1835
        %v1868 = vadd.f32 %v1788, %v1836
        %v1869 = vadd.f32 %v1789, %v1837
        %v1870 = vadd.f32 %v1790, %v1838
        %v1871 = vadd.f32 %v1791, %v1839
        %1872 = vrot.lane.b32.xlu0 %v400, 16
        %v1873 = vpop.permute.xlu0 %1872
        %1874 = vrot.lane.b32.xlu0 %v401, 16
        %v1875 = vpop.permute.xlu0 %1874
        %1876 = vrot.lane.b32.xlu0 %v402, 16
        %v1877 = vpop.permute.xlu0 %1876
        %1878 = vrot.lane.b32.xlu0 %v390, 16
        %v1879 = vpop.permute.xlu0 %1878
        %1880 = vrot.lane.b32.xlu0 %v396, 16
        %v1881 = vpop.permute.xlu0 %1880
        %1882 = vrot.lane.b32.xlu0 %v397, 16
        %v1883 = vpop.permute.xlu0 %1882
        %1884 = vrot.lane.b32.xlu0 %v398, 16
        %v1885 = vpop.permute.xlu0 %1884
        %1886 = vrot.lane.b32.xlu0 %v399, 16
        %v1887 = vpop.permute.xlu0 %1886
        %1888 = vrot.lane.b32.xlu0 %v407, 16
        %v1889 = vpop.permute.xlu0 %1888
        %1890 = vrot.lane.b32.xlu0 %v408, 16
        %v1891 = vpop.permute.xlu0 %1890
        %1892 = vrot.lane.b32.xlu0 %v409, 16
        %v1893 = vpop.permute.xlu0 %1892
        %1894 = vrot.lane.b32.xlu0 %v392, 16
        %v1895 = vpop.permute.xlu0 %1894
        %1896 = vrot.lane.b32.xlu0 %v403, 16
        %v1897 = vpop.permute.xlu0 %1896
        %1898 = vrot.lane.b32.xlu0 %v404, 16
        %v1899 = vpop.permute.xlu0 %1898
        %1900 = vrot.lane.b32.xlu0 %v405, 16
        %v1901 = vpop.permute.xlu0 %1900
        %1902 = vrot.lane.b32.xlu0 %v406, 16
        %v1903 = vpop.permute.xlu0 %1902
        %v1920 = vadd.f32 %v1856, %v1873
        %v1921 = vadd.f32 %v1857, %v1875
        %v1922 = vadd.f32 %v1858, %v1877
        %v1923 = vadd.f32 %v1859, %v1879
        %v1924 = vadd.f32 %v1860, %v1881
        %v1925 = vadd.f32 %v1861, %v1883
        %v1926 = vadd.f32 %v1862, %v1885
        %v1927 = vadd.f32 %v1863, %v1887
        %v1928 = vadd.f32 %v1864, %v1889
        %v1929 = vadd.f32 %v1865, %v1891
        %v1930 = vadd.f32 %v1866, %v1893
        %v1931 = vadd.f32 %v1867, %v1895
        %v1932 = vadd.f32 %v1868, %v1897
        %v1933 = vadd.f32 %v1869, %v1899
        %v1934 = vadd.f32 %v1870, %v1901
        %v1935 = vadd.f32 %v1871, %v1903
        %v1952 = vrot.slane %v1920, 3
        %v1953 = vrot.slane %v1921, 2
        %v1954 = vsel %vm459, %v1953, %v1952
        %v1955 = vrot.slane %v1922, 1
        %v1956 = vsel %vm462, %v1955, %v1954
        %v1957 = vsel %vm465, %v1923, %v1956
        %v1958 = vrot.slane %v1924, 7
        %v1959 = vsel %vm468, %v1958, %v1957
        %v1960 = vrot.slane %v1925, 6
        %v1961 = vsel %vm471, %v1960, %v1959
        %v1962 = vrot.slane %v1926, 5
        %v1963 = vsel %vm474, %v1962, %v1961
        %v1964 = vrot.slane %v1927, 4
        %v1965 = vsel %vm477, %v1964, %v1963
        %v1966 = vrot.slane %v1928, 3
        %v1967 = vrot.slane %v1929, 2
        %v1968 = vsel %vm459, %v1967, %v1966
        %v1969 = vrot.slane %v1930, 1
        %v1970 = vsel %vm462, %v1969, %v1968
        %v1971 = vsel %vm465, %v1931, %v1970
        %v1972 = vrot.slane %v1932, 7
        %v1973 = vsel %vm468, %v1972, %v1971
        %v1974 = vrot.slane %v1933, 6
        %v1975 = vsel %vm471, %v1974, %v1973
        %v1976 = vrot.slane %v1934, 5
        %v1977 = vsel %vm474, %v1976, %v1975
        %v1978 = vrot.slane %v1935, 4
        %v1979 = vsel %vm477, %v1978, %v1977
        %1980 = vrot.lane.b32.xlu0 %v1965, 112
        %v1981 = vpop.permute.xlu0 %1980
        %1982 = vrot.lane.b32.xlu0 %v1979, 112
        %v1983 = vpop.permute.xlu0 %1982
        %vm1986 = vcmask 1048448
        %1987 = vst.msk [vmem:[#allocation2] sm:$0xff] %vm1986, %v1981
        %1988 = vst.msk [vmem:[#allocation2 + $0x10] sm:$0xff] %vm1986, %v1983
        %v2005 = vrot.slane %v1776, 1
        %v2006 = vrot.slane %v1777, 1
        %v2007 = vrot.slane %v1778, 1
        %v2008 = vrot.slane %v1779, 1
        %v2009 = vrot.slane %v1780, 1
        %v2010 = vrot.slane %v1781, 1
        %v2011 = vrot.slane %v1782, 1
        %v2012 = vrot.slane %v1783, 1
        %v2013 = vrot.slane %v1784, 1
        %v2014 = vrot.slane %v1785, 1
        %v2015 = vrot.slane %v1786, 1
        %v2016 = vrot.slane %v1787, 1
        %v2017 = vrot.slane %v1788, 1
        %v2018 = vrot.slane %v1789, 1
        %v2019 = vrot.slane %v1790, 1
        %v2020 = vrot.slane %v1791, 1
        %v2037 = vadd.f32 %v1792, %v2005
        %v2038 = vadd.f32 %v1793, %v2006
        %v2039 = vadd.f32 %v1794, %v2007
        %v2040 = vadd.f32 %v1795, %v2008
        %v2041 = vadd.f32 %v1796, %v2009
        %v2042 = vadd.f32 %v1797, %v2010
        %v2043 = vadd.f32 %v1798, %v2011
        %v2044 = vadd.f32 %v1799, %v2012
        %v2045 = vadd.f32 %v1800, %v2013
        %v2046 = vadd.f32 %v1801, %v2014
        %v2047 = vadd.f32 %v1802, %v2015
        %v2048 = vadd.f32 %v1803, %v2016
        %v2049 = vadd.f32 %v1804, %v2017
        %v2050 = vadd.f32 %v1805, %v2018
        %v2051 = vadd.f32 %v1806, %v2019
        %v2052 = vadd.f32 %v1807, %v2020
        %v2055 = vrot.slane %v391, 5
        %v2056 = vrot.slane %v391, 6
        %v2057 = vrot.slane %v391, 7
        %v2058 = vrot.slane %v391, 1
        %v2059 = vrot.slane %v391, 2
        %v2060 = vrot.slane %v391, 3
        %v2061 = vrot.slane %v391, 4
        %v2062 = vrot.slane %v393, 5
        %v2063 = vrot.slane %v393, 6
        %v2064 = vrot.slane %v393, 7
        %v2065 = vrot.slane %v393, 1
        %v2066 = vrot.slane %v393, 2
        %v2067 = vrot.slane %v393, 3
        %v2068 = vrot.slane %v393, 4
        %v2085 = vadd.f32 %v2037, %v2055
        %v2086 = vadd.f32 %v2038, %v2056
        %v2087 = vadd.f32 %v2039, %v2057
        %v2088 = vadd.f32 %v2040, %v391
        %v2089 = vadd.f32 %v2041, %v2058
        %v2090 = vadd.f32 %v2042, %v2059
        %v2091 = vadd.f32 %v2043, %v2060
        %v2092 = vadd.f32 %v2044, %v2061
        %v2093 = vadd.f32 %v2045, %v2062
        %v2094 = vadd.f32 %v2046, %v2063
        %v2095 = vadd.f32 %v2047, %v2064
        %v2096 = vadd.f32 %v2048, %v393
        %v2097 = vadd.f32 %v2049, %v2065
        %v2098 = vadd.f32 %v2050, %v2066
        %v2099 = vadd.f32 %v2051, %v2067
        %v2100 = vadd.f32 %v2052, %v2068
        %v2117 = vrot.slane %v2085, 3
        %v2118 = vrot.slane %v2086, 2
        %v2119 = vsel %vm459, %v2118, %v2117
        %v2120 = vrot.slane %v2087, 1
        %v2121 = vsel %vm462, %v2120, %v2119
        %v2122 = vsel %vm465, %v2088, %v2121
        %v2123 = vrot.slane %v2089, 7
        %v2124 = vsel %vm468, %v2123, %v2122
        %v2125 = vrot.slane %v2090, 6
        %v2126 = vsel %vm471, %v2125, %v2124
        %v2127 = vrot.slane %v2091, 5
        %v2128 = vsel %vm474, %v2127, %v2126
        %v2129 = vrot.slane %v2092, 4
        %v2130 = vsel %vm477, %v2129, %v2128
        %v2131 = vrot.slane %v2093, 3
        %v2132 = vrot.slane %v2094, 2
        %v2133 = vsel %vm459, %v2132, %v2131
        %v2134 = vrot.slane %v2095, 1
        %v2135 = vsel %vm462, %v2134, %v2133
        %v2136 = vsel %vm465, %v2096, %v2135
        %v2137 = vrot.slane %v2097, 7
        %v2138 = vsel %vm468, %v2137, %v2136
        %v2139 = vrot.slane %v2098, 6
        %v2140 = vsel %vm471, %v2139, %v2138
        %v2141 = vrot.slane %v2099, 5
        %v2142 = vsel %vm474, %v2141, %v2140
        %v2143 = vrot.slane %v2100, 4
        %v2144 = vsel %vm477, %v2143, %v2142
        %2147 = vst.msk [vmem:[#allocation2 + $0x8] sm:$0xff] %vm495, %v2130
        %2148 = vst.msk [vmem:[#allocation2 + $0x18] sm:$0xff] %vm495, %v2144
        %v2165 = vrot.slane %v1563, 1
        %v2166 = vrot.slane %v1564, 1
        %v2167 = vrot.slane %v1565, 1
        %v2168 = vrot.slane %v1566, 1
        %v2169 = vrot.slane %v1567, 1
        %v2170 = vrot.slane %v1568, 1
        %v2171 = vrot.slane %v1569, 1
        %v2172 = vrot.slane %v1570, 1
        %v2173 = vrot.slane %v1571, 1
        %v2174 = vrot.slane %v1572, 1
        %v2175 = vrot.slane %v1573, 1
        %v2176 = vrot.slane %v1574, 1
        %v2177 = vrot.slane %v1575, 1
        %v2178 = vrot.slane %v1576, 1
        %v2179 = vrot.slane %v1577, 1
        %v2180 = vrot.slane %v1578, 1
        %v2197 = vadd.f32 %v1579, %v2165
        %v2198 = vadd.f32 %v1580, %v2166
        %v2199 = vadd.f32 %v1581, %v2167
        %v2200 = vadd.f32 %v1582, %v2168
        %v2201 = vadd.f32 %v1583, %v2169
        %v2202 = vadd.f32 %v1584, %v2170
        %v2203 = vadd.f32 %v1585, %v2171
        %v2204 = vadd.f32 %v1586, %v2172
        %v2205 = vadd.f32 %v1587, %v2173
        %v2206 = vadd.f32 %v1588, %v2174
        %v2207 = vadd.f32 %v1589, %v2175
        %v2208 = vadd.f32 %v1590, %v2176
        %v2209 = vadd.f32 %v1591, %v2177
        %v2210 = vadd.f32 %v1592, %v2178
        %v2211 = vadd.f32 %v1593, %v2179
        %v2212 = vadd.f32 %v1594, %v2180
        %2213 = vrot.lane.b32.xlu0 %v2061, 112
        %v2214 = vpop.permute.xlu0 %2213
        %2215 = vrot.lane.b32.xlu0 %v2055, 112
        %v2216 = vpop.permute.xlu0 %2215
        %2217 = vrot.lane.b32.xlu0 %v2056, 112
        %v2218 = vpop.permute.xlu0 %2217
        %2219 = vrot.lane.b32.xlu0 %v2057, 112
        %v2220 = vpop.permute.xlu0 %2219
        %2221 = vrot.lane.b32.xlu0 %v391, 112
        %v2222 = vpop.permute.xlu0 %2221
        %2223 = vrot.lane.b32.xlu0 %v2058, 112
        %v2224 = vpop.permute.xlu0 %2223
        %2225 = vrot.lane.b32.xlu0 %v2059, 112
        %v2226 = vpop.permute.xlu0 %2225
        %2227 = vrot.lane.b32.xlu0 %v2060, 112
        %v2228 = vpop.permute.xlu0 %2227
        %2229 = vrot.lane.b32.xlu0 %v2068, 112
        %v2230 = vpop.permute.xlu0 %2229
        %2231 = vrot.lane.b32.xlu0 %v2062, 112
        %v2232 = vpop.permute.xlu0 %2231
        %2233 = vrot.lane.b32.xlu0 %v2063, 112
        %v2234 = vpop.permute.xlu0 %2233
        %2235 = vrot.lane.b32.xlu0 %v2064, 112
        %v2236 = vpop.permute.xlu0 %2235
        %2237 = vrot.lane.b32.xlu0 %v393, 112
        %v2238 = vpop.permute.xlu0 %2237
        %2239 = vrot.lane.b32.xlu0 %v2065, 112
        %v2240 = vpop.permute.xlu0 %2239
        %2241 = vrot.lane.b32.xlu0 %v2066, 112
        %v2242 = vpop.permute.xlu0 %2241
        %2243 = vrot.lane.b32.xlu0 %v2067, 112
        %v2244 = vpop.permute.xlu0 %2243
        %v2261 = vadd.f32 %v2197, %v2214
        %v2262 = vadd.f32 %v2198, %v2216
        %v2263 = vadd.f32 %v2199, %v2218
        %v2264 = vadd.f32 %v2200, %v2220
        %v2265 = vadd.f32 %v2201, %v2222
        %v2266 = vadd.f32 %v2202, %v2224
        %v2267 = vadd.f32 %v2203, %v2226
        %v2268 = vadd.f32 %v2204, %v2228
        %v2269 = vadd.f32 %v2205, %v2230
        %v2270 = vadd.f32 %v2206, %v2232
        %v2271 = vadd.f32 %v2207, %v2234
        %v2272 = vadd.f32 %v2208, %v2236
        %v2273 = vadd.f32 %v2209, %v2238
        %v2274 = vadd.f32 %v2210, %v2240
        %v2275 = vadd.f32 %v2211, %v2242
        %v2276 = vadd.f32 %v2212, %v2244
        %v2293 = vrot.slane %v2261, 4
        %v2294 = vrot.slane %v2262, 3
        %v2295 = vsel %vm459, %v2294, %v2293
        %v2296 = vrot.slane %v2263, 2
        %v2297 = vsel %vm462, %v2296, %v2295
        %v2298 = vrot.slane %v2264, 1
        %v2299 = vsel %vm465, %v2298, %v2297
        %v2300 = vsel %vm468, %v2265, %v2299
        %v2301 = vrot.slane %v2266, 7
        %v2302 = vsel %vm471, %v2301, %v2300
        %v2303 = vrot.slane %v2267, 6
        %v2304 = vsel %vm474, %v2303, %v2302
        %v2305 = vrot.slane %v2268, 5
        %v2306 = vsel %vm477, %v2305, %v2304
        %v2307 = vrot.slane %v2269, 4
        %v2308 = vrot.slane %v2270, 3
        %v2309 = vsel %vm459, %v2308, %v2307
        %v2310 = vrot.slane %v2271, 2
        %v2311 = vsel %vm462, %v2310, %v2309
        %v2312 = vrot.slane %v2272, 1
        %v2313 = vsel %vm465, %v2312, %v2311
        %v2314 = vsel %vm468, %v2273, %v2313
        %v2315 = vrot.slane %v2274, 7
        %v2316 = vsel %vm471, %v2315, %v2314
        %v2317 = vrot.slane %v2275, 6
        %v2318 = vsel %vm474, %v2317, %v2316
        %v2319 = vrot.slane %v2276, 5
        %v2320 = vsel %vm477, %v2319, %v2318
        %2321 = vrot.lane.b32.xlu0 %v2306, 16
        %v2322 = vpop.permute.xlu0 %2321
        %2323 = vrot.lane.b32.xlu0 %v2320, 16
        %v2324 = vpop.permute.xlu0 %2323
        %2327 = vst.msk [vmem:[#allocation2 + $0x8] sm:$0xff] %vm708, %v2322
        %2328 = vst.msk [vmem:[#allocation2 + $0x18] sm:$0xff] %vm708, %v2324
        %v2345 = vrot.slane %v1350, 1
        %v2346 = vrot.slane %v1351, 1
        %v2347 = vrot.slane %v1352, 1
        %v2348 = vrot.slane %v1353, 1
        %v2349 = vrot.slane %v1354, 1
        %v2350 = vrot.slane %v1355, 1
        %v2351 = vrot.slane %v1356, 1
        %v2352 = vrot.slane %v1357, 1
        %v2353 = vrot.slane %v1358, 1
        %v2354 = vrot.slane %v1359, 1
        %v2355 = vrot.slane %v1360, 1
        %v2356 = vrot.slane %v1361, 1
        %v2357 = vrot.slane %v1362, 1
        %v2358 = vrot.slane %v1363, 1
        %v2359 = vrot.slane %v1364, 1
        %v2360 = vrot.slane %v1365, 1
        %v2377 = vadd.f32 %v1366, %v2345
        %v2378 = vadd.f32 %v1367, %v2346
        %v2379 = vadd.f32 %v1368, %v2347
        %v2380 = vadd.f32 %v1369, %v2348
        %v2381 = vadd.f32 %v1370, %v2349
        %v2382 = vadd.f32 %v1371, %v2350
        %v2383 = vadd.f32 %v1372, %v2351
        %v2384 = vadd.f32 %v1373, %v2352
        %v2385 = vadd.f32 %v1374, %v2353
        %v2386 = vadd.f32 %v1375, %v2354
        %v2387 = vadd.f32 %v1376, %v2355
        %v2388 = vadd.f32 %v1377, %v2356
        %v2389 = vadd.f32 %v1378, %v2357
        %v2390 = vadd.f32 %v1379, %v2358
        %v2391 = vadd.f32 %v1380, %v2359
        %v2392 = vadd.f32 %v1381, %v2360
        %2393 = vrot.lane.b32.xlu0 %v2061, 96
        %v2394 = vpop.permute.xlu0 %2393
        %2395 = vrot.lane.b32.xlu0 %v2055, 96
        %v2396 = vpop.permute.xlu0 %2395
        %2397 = vrot.lane.b32.xlu0 %v2056, 96
        %v2398 = vpop.permute.xlu0 %2397
        %2399 = vrot.lane.b32.xlu0 %v2057, 96
        %v2400 = vpop.permute.xlu0 %2399
        %2401 = vrot.lane.b32.xlu0 %v391, 96
        %v2402 = vpop.permute.xlu0 %2401
        %2403 = vrot.lane.b32.xlu0 %v2058, 96
        %v2404 = vpop.permute.xlu0 %2403
        %2405 = vrot.lane.b32.xlu0 %v2059, 96
        %v2406 = vpop.permute.xlu0 %2405
        %2407 = vrot.lane.b32.xlu0 %v2060, 96
        %v2408 = vpop.permute.xlu0 %2407
        %2409 = vrot.lane.b32.xlu0 %v2068, 96
        %v2410 = vpop.permute.xlu0 %2409
        %2411 = vrot.lane.b32.xlu0 %v2062, 96
        %v2412 = vpop.permute.xlu0 %2411
        %2413 = vrot.lane.b32.xlu0 %v2063, 96
        %v2414 = vpop.permute.xlu0 %2413
        %2415 = vrot.lane.b32.xlu0 %v2064, 96
        %v2416 = vpop.permute.xlu0 %2415
        %2417 = vrot.lane.b32.xlu0 %v393, 96
        %v2418 = vpop.permute.xlu0 %2417
        %2419 = vrot.lane.b32.xlu0 %v2065, 96
        %v2420 = vpop.permute.xlu0 %2419
        %2421 = vrot.lane.b32.xlu0 %v2066, 96
        %v2422 = vpop.permute.xlu0 %2421
        %2423 = vrot.lane.b32.xlu0 %v2067, 96
        %v2424 = vpop.permute.xlu0 %2423
        %v2441 = vadd.f32 %v2377, %v2394
        %v2442 = vadd.f32 %v2378, %v2396
        %v2443 = vadd.f32 %v2379, %v2398
        %v2444 = vadd.f32 %v2380, %v2400
        %v2445 = vadd.f32 %v2381, %v2402
        %v2446 = vadd.f32 %v2382, %v2404
        %v2447 = vadd.f32 %v2383, %v2406
        %v2448 = vadd.f32 %v2384, %v2408
        %v2449 = vadd.f32 %v2385, %v2410
        %v2450 = vadd.f32 %v2386, %v2412
        %v2451 = vadd.f32 %v2387, %v2414
        %v2452 = vadd.f32 %v2388, %v2416
        %v2453 = vadd.f32 %v2389, %v2418
        %v2454 = vadd.f32 %v2390, %v2420
        %v2455 = vadd.f32 %v2391, %v2422
        %v2456 = vadd.f32 %v2392, %v2424
        %v2473 = vrot.slane %v2441, 4
        %v2474 = vrot.slane %v2442, 3
        %v2475 = vsel %vm459, %v2474, %v2473
        %v2476 = vrot.slane %v2443, 2
        %v2477 = vsel %vm462, %v2476, %v2475
        %v2478 = vrot.slane %v2444, 1
        %v2479 = vsel %vm465, %v2478, %v2477
        %v2480 = vsel %vm468, %v2445, %v2479
        %v2481 = vrot.slane %v2446, 7
        %v2482 = vsel %vm471, %v2481, %v2480
        %v2483 = vrot.slane %v2447, 6
        %v2484 = vsel %vm474, %v2483, %v2482
        %v2485 = vrot.slane %v2448, 5
        %v2486 = vsel %vm477, %v2485, %v2484
        %v2487 = vrot.slane %v2449, 4
        %v2488 = vrot.slane %v2450, 3
        %v2489 = vsel %vm459, %v2488, %v2487
        %v2490 = vrot.slane %v2451, 2
        %v2491 = vsel %vm462, %v2490, %v2489
        %v2492 = vrot.slane %v2452, 1
        %v2493 = vsel %vm465, %v2492, %v2491
        %v2494 = vsel %vm468, %v2453, %v2493
        %v2495 = vrot.slane %v2454, 7
        %v2496 = vsel %vm471, %v2495, %v2494
        %v2497 = vrot.slane %v2455, 6
        %v2498 = vsel %vm474, %v2497, %v2496
        %v2499 = vrot.slane %v2456, 5
        %v2500 = vsel %vm477, %v2499, %v2498
        %2501 = vrot.lane.b32.xlu0 %v2486, 32
        %v2502 = vpop.permute.xlu0 %2501
        %2503 = vrot.lane.b32.xlu0 %v2500, 32
        %v2504 = vpop.permute.xlu0 %2503
        %2507 = vst.msk [vmem:[#allocation2 + $0x8] sm:$0xff] %vm921, %v2502
        %2508 = vst.msk [vmem:[#allocation2 + $0x18] sm:$0xff] %vm921, %v2504
        %v2525 = vrot.slane %v1137, 1
        %v2526 = vrot.slane %v1138, 1
        %v2527 = vrot.slane %v1139, 1
        %v2528 = vrot.slane %v1140, 1
        %v2529 = vrot.slane %v1141, 1
        %v2530 = vrot.slane %v1142, 1
        %v2531 = vrot.slane %v1143, 1
        %v2532 = vrot.slane %v1144, 1
        %v2533 = vrot.slane %v1145, 1
        %v2534 = vrot.slane %v1146, 1
        %v2535 = vrot.slane %v1147, 1
        %v2536 = vrot.slane %v1148, 1
        %v2537 = vrot.slane %v1149, 1
        %v2538 = vrot.slane %v1150, 1
        %v2539 = vrot.slane %v1151, 1
        %v2540 = vrot.slane %v1152, 1
        %v2557 = vadd.f32 %v1153, %v2525
        %v2558 = vadd.f32 %v1154, %v2526
        %v2559 = vadd.f32 %v1155, %v2527
        %v2560 = vadd.f32 %v1156, %v2528
        %v2561 = vadd.f32 %v1157, %v2529
        %v2562 = vadd.f32 %v1158, %v2530
        %v2563 = vadd.f32 %v1159, %v2531
        %v2564 = vadd.f32 %v1160, %v2532
        %v2565 = vadd.f32 %v1161, %v2533
        %v2566 = vadd.f32 %v1162, %v2534
        %v2567 = vadd.f32 %v1163, %v2535
        %v2568 = vadd.f32 %v1164, %v2536
        %v2569 = vadd.f32 %v1165, %v2537
        %v2570 = vadd.f32 %v1166, %v2538
        %v2571 = vadd.f32 %v1167, %v2539
        %v2572 = vadd.f32 %v1168, %v2540
        %2573 = vrot.lane.b32.xlu0 %v2060, 80
        %v2574 = vpop.permute.xlu0 %2573
        %2575 = vrot.lane.b32.xlu0 %v2061, 80
        %v2576 = vpop.permute.xlu0 %2575
        %2577 = vrot.lane.b32.xlu0 %v2055, 80
        %v2578 = vpop.permute.xlu0 %2577
        %2579 = vrot.lane.b32.xlu0 %v2056, 80
        %v2580 = vpop.permute.xlu0 %2579
        %2581 = vrot.lane.b32.xlu0 %v2057, 80
        %v2582 = vpop.permute.xlu0 %2581
        %2583 = vrot.lane.b32.xlu0 %v391, 80
        %v2584 = vpop.permute.xlu0 %2583
        %2585 = vrot.lane.b32.xlu0 %v2058, 80
        %v2586 = vpop.permute.xlu0 %2585
        %2587 = vrot.lane.b32.xlu0 %v2059, 80
        %v2588 = vpop.permute.xlu0 %2587
        %2589 = vrot.lane.b32.xlu0 %v2067, 80
        %v2590 = vpop.permute.xlu0 %2589
        %2591 = vrot.lane.b32.xlu0 %v2068, 80
        %v2592 = vpop.permute.xlu0 %2591
        %2593 = vrot.lane.b32.xlu0 %v2062, 80
        %v2594 = vpop.permute.xlu0 %2593
        %2595 = vrot.lane.b32.xlu0 %v2063, 80
        %v2596 = vpop.permute.xlu0 %2595
        %2597 = vrot.lane.b32.xlu0 %v2064, 80
        %v2598 = vpop.permute.xlu0 %2597
        %2599 = vrot.lane.b32.xlu0 %v393, 80
        %v2600 = vpop.permute.xlu0 %2599
        %2601 = vrot.lane.b32.xlu0 %v2065, 80
        %v2602 = vpop.permute.xlu0 %2601
        %2603 = vrot.lane.b32.xlu0 %v2066, 80
        %v2604 = vpop.permute.xlu0 %2603
        %v2621 = vadd.f32 %v2557, %v2574
        %v2622 = vadd.f32 %v2558, %v2576
        %v2623 = vadd.f32 %v2559, %v2578
        %v2624 = vadd.f32 %v2560, %v2580
        %v2625 = vadd.f32 %v2561, %v2582
        %v2626 = vadd.f32 %v2562, %v2584
        %v2627 = vadd.f32 %v2563, %v2586
        %v2628 = vadd.f32 %v2564, %v2588
        %v2629 = vadd.f32 %v2565, %v2590
        %v2630 = vadd.f32 %v2566, %v2592
        %v2631 = vadd.f32 %v2567, %v2594
        %v2632 = vadd.f32 %v2568, %v2596
        %v2633 = vadd.f32 %v2569, %v2598
        %v2634 = vadd.f32 %v2570, %v2600
        %v2635 = vadd.f32 %v2571, %v2602
        %v2636 = vadd.f32 %v2572, %v2604
        %v2653 = vrot.slane %v2621, 5
        %v2654 = vrot.slane %v2622, 4
        %v2655 = vsel %vm459, %v2654, %v2653
        %v2656 = vrot.slane %v2623, 3
        %v2657 = vsel %vm462, %v2656, %v2655
        %v2658 = vrot.slane %v2624, 2
        %v2659 = vsel %vm465, %v2658, %v2657
        %v2660 = vrot.slane %v2625, 1
        %v2661 = vsel %vm468, %v2660, %v2659
        %v2662 = vsel %vm471, %v2626, %v2661
        %v2663 = vrot.slane %v2627, 7
        %v2664 = vsel %vm474, %v2663, %v2662
        %v2665 = vrot.slane %v2628, 6
        %v2666 = vsel %vm477, %v2665, %v2664
        %v2667 = vrot.slane %v2629, 5
        %v2668 = vrot.slane %v2630, 4
        %v2669 = vsel %vm459, %v2668, %v2667
        %v2670 = vrot.slane %v2631, 3
        %v2671 = vsel %vm462, %v2670, %v2669
        %v2672 = vrot.slane %v2632, 2
        %v2673 = vsel %vm465, %v2672, %v2671
        %v2674 = vrot.slane %v2633, 1
        %v2675 = vsel %vm468, %v2674, %v2673
        %v2676 = vsel %vm471, %v2634, %v2675
        %v2677 = vrot.slane %v2635, 7
        %v2678 = vsel %vm474, %v2677, %v2676
        %v2679 = vrot.slane %v2636, 6
        %v2680 = vsel %vm477, %v2679, %v2678
        %2681 = vrot.lane.b32.xlu0 %v2666, 48
        %v2682 = vpop.permute.xlu0 %2681
        %2683 = vrot.lane.b32.xlu0 %v2680, 48
        %v2684 = vpop.permute.xlu0 %2683
        %2687 = vst.msk [vmem:[#allocation2 + $0x8] sm:$0xff] %vm1134, %v2682
        %2688 = vst.msk [vmem:[#allocation2 + $0x18] sm:$0xff] %vm1134, %v2684
        %v2705 = vrot.slane %v924, 1
        %v2706 = vrot.slane %v925, 1
        %v2707 = vrot.slane %v926, 1
        %v2708 = vrot.slane %v927, 1
        %v2709 = vrot.slane %v928, 1
        %v2710 = vrot.slane %v929, 1
        %v2711 = vrot.slane %v930, 1
        %v2712 = vrot.slane %v931, 1
        %v2713 = vrot.slane %v932, 1
        %v2714 = vrot.slane %v933, 1
        %v2715 = vrot.slane %v934, 1
        %v2716 = vrot.slane %v935, 1
        %v2717 = vrot.slane %v936, 1
        %v2718 = vrot.slane %v937, 1
        %v2719 = vrot.slane %v938, 1
        %v2720 = vrot.slane %v939, 1
        %v2737 = vadd.f32 %v940, %v2705
        %v2738 = vadd.f32 %v941, %v2706
        %v2739 = vadd.f32 %v942, %v2707
        %v2740 = vadd.f32 %v943, %v2708
        %v2741 = vadd.f32 %v944, %v2709
        %v2742 = vadd.f32 %v945, %v2710
        %v2743 = vadd.f32 %v946, %v2711
        %v2744 = vadd.f32 %v947, %v2712
        %v2745 = vadd.f32 %v948, %v2713
        %v2746 = vadd.f32 %v949, %v2714
        %v2747 = vadd.f32 %v950, %v2715
        %v2748 = vadd.f32 %v951, %v2716
        %v2749 = vadd.f32 %v952, %v2717
        %v2750 = vadd.f32 %v953, %v2718
        %v2751 = vadd.f32 %v954, %v2719
        %v2752 = vadd.f32 %v955, %v2720
        %2753 = vrot.lane.b32.xlu0 %v2060, 64
        %v2754 = vpop.permute.xlu0 %2753
        %2755 = vrot.lane.b32.xlu0 %v2061, 64
        %v2756 = vpop.permute.xlu0 %2755
        %2757 = vrot.lane.b32.xlu0 %v2055, 64
        %v2758 = vpop.permute.xlu0 %2757
        %2759 = vrot.lane.b32.xlu0 %v2056, 64
        %v2760 = vpop.permute.xlu0 %2759
        %2761 = vrot.lane.b32.xlu0 %v2057, 64
        %v2762 = vpop.permute.xlu0 %2761
        %2763 = vrot.lane.b32.xlu0 %v391, 64
        %v2764 = vpop.permute.xlu0 %2763
        %2765 = vrot.lane.b32.xlu0 %v2058, 64
        %v2766 = vpop.permute.xlu0 %2765
        %2767 = vrot.lane.b32.xlu0 %v2059, 64
        %v2768 = vpop.permute.xlu0 %2767
        %2769 = vrot.lane.b32.xlu0 %v2067, 64
        %v2770 = vpop.permute.xlu0 %2769
        %2771 = vrot.lane.b32.xlu0 %v2068, 64
        %v2772 = vpop.permute.xlu0 %2771
        %2773 = vrot.lane.b32.xlu0 %v2062, 64
        %v2774 = vpop.permute.xlu0 %2773
        %2775 = vrot.lane.b32.xlu0 %v2063, 64
        %v2776 = vpop.permute.xlu0 %2775
        %2777 = vrot.lane.b32.xlu0 %v2064, 64
        %v2778 = vpop.permute.xlu0 %2777
        %2779 = vrot.lane.b32.xlu0 %v393, 64
        %v2780 = vpop.permute.xlu0 %2779
        %2781 = vrot.lane.b32.xlu0 %v2065, 64
        %v2782 = vpop.permute.xlu0 %2781
        %2783 = vrot.lane.b32.xlu0 %v2066, 64
        %v2784 = vpop.permute.xlu0 %2783
        %v2801 = vadd.f32 %v2737, %v2754
        %v2802 = vadd.f32 %v2738, %v2756
        %v2803 = vadd.f32 %v2739, %v2758
        %v2804 = vadd.f32 %v2740, %v2760
        %v2805 = vadd.f32 %v2741, %v2762
        %v2806 = vadd.f32 %v2742, %v2764
        %v2807 = vadd.f32 %v2743, %v2766
        %v2808 = vadd.f32 %v2744, %v2768
        %v2809 = vadd.f32 %v2745, %v2770
        %v2810 = vadd.f32 %v2746, %v2772
        %v2811 = vadd.f32 %v2747, %v2774
        %v2812 = vadd.f32 %v2748, %v2776
        %v2813 = vadd.f32 %v2749, %v2778
        %v2814 = vadd.f32 %v2750, %v2780
        %v2815 = vadd.f32 %v2751, %v2782
        %v2816 = vadd.f32 %v2752, %v2784
        %v2833 = vrot.slane %v2801, 5
        %v2834 = vrot.slane %v2802, 4
        %v2835 = vsel %vm459, %v2834, %v2833
        %v2836 = vrot.slane %v2803, 3
        %v2837 = vsel %vm462, %v2836, %v2835
        %v2838 = vrot.slane %v2804, 2
        %v2839 = vsel %vm465, %v2838, %v2837
        %v2840 = vrot.slane %v2805, 1
        %v2841 = vsel %vm468, %v2840, %v2839
        %v2842 = vsel %vm471, %v2806, %v2841
        %v2843 = vrot.slane %v2807, 7
        %v2844 = vsel %vm474, %v2843, %v2842
        %v2845 = vrot.slane %v2808, 6
        %v2846 = vsel %vm477, %v2845, %v2844
        %v2847 = vrot.slane %v2809, 5
        %v2848 = vrot.slane %v2810, 4
        %v2849 = vsel %vm459, %v2848, %v2847
        %v2850 = vrot.slane %v2811, 3
        %v2851 = vsel %vm462, %v2850, %v2849
        %v2852 = vrot.slane %v2812, 2
        %v2853 = vsel %vm465, %v2852, %v2851
        %v2854 = vrot.slane %v2813, 1
        %v2855 = vsel %vm468, %v2854, %v2853
        %v2856 = vsel %vm471, %v2814, %v2855
        %v2857 = vrot.slane %v2815, 7
        %v2858 = vsel %vm474, %v2857, %v2856
        %v2859 = vrot.slane %v2816, 6
        %v2860 = vsel %vm477, %v2859, %v2858
        %2861 = vrot.lane.b32.xlu0 %v2846, 64
        %v2862 = vpop.permute.xlu0 %2861
        %2863 = vrot.lane.b32.xlu0 %v2860, 64
        %v2864 = vpop.permute.xlu0 %2863
        %2867 = vst.msk [vmem:[#allocation2 + $0x8] sm:$0xff] %vm1347, %v2862
        %2868 = vst.msk [vmem:[#allocation2 + $0x18] sm:$0xff] %vm1347, %v2864
        %v2885 = vrot.slane %v711, 1
        %v2886 = vrot.slane %v712, 1
        %v2887 = vrot.slane %v713, 1
        %v2888 = vrot.slane %v714, 1
        %v2889 = vrot.slane %v715, 1
        %v2890 = vrot.slane %v716, 1
        %v2891 = vrot.slane %v717, 1
        %v2892 = vrot.slane %v718, 1
        %v2893 = vrot.slane %v719, 1
        %v2894 = vrot.slane %v720, 1
        %v2895 = vrot.slane %v721, 1
        %v2896 = vrot.slane %v722, 1
        %v2897 = vrot.slane %v723, 1
        %v2898 = vrot.slane %v724, 1
        %v2899 = vrot.slane %v725, 1
        %v2900 = vrot.slane %v726, 1
        %v2917 = vadd.f32 %v727, %v2885
        %v2918 = vadd.f32 %v728, %v2886
        %v2919 = vadd.f32 %v729, %v2887
        %v2920 = vadd.f32 %v730, %v2888
        %v2921 = vadd.f32 %v731, %v2889
        %v2922 = vadd.f32 %v732, %v2890
        %v2923 = vadd.f32 %v733, %v2891
        %v2924 = vadd.f32 %v734, %v2892
        %v2925 = vadd.f32 %v735, %v2893
        %v2926 = vadd.f32 %v736, %v2894
        %v2927 = vadd.f32 %v737, %v2895
        %v2928 = vadd.f32 %v738, %v2896
        %v2929 = vadd.f32 %v739, %v2897
        %v2930 = vadd.f32 %v740, %v2898
        %v2931 = vadd.f32 %v741, %v2899
        %v2932 = vadd.f32 %v742, %v2900
        %2933 = vrot.lane.b32.xlu0 %v2059, 48
        %v2934 = vpop.permute.xlu0 %2933
        %2935 = vrot.lane.b32.xlu0 %v2060, 48
        %v2936 = vpop.permute.xlu0 %2935
        %2937 = vrot.lane.b32.xlu0 %v2061, 48
        %v2938 = vpop.permute.xlu0 %2937
        %2939 = vrot.lane.b32.xlu0 %v2055, 48
        %v2940 = vpop.permute.xlu0 %2939
        %2941 = vrot.lane.b32.xlu0 %v2056, 48
        %v2942 = vpop.permute.xlu0 %2941
        %2943 = vrot.lane.b32.xlu0 %v2057, 48
        %v2944 = vpop.permute.xlu0 %2943
        %2945 = vrot.lane.b32.xlu0 %v391, 48
        %v2946 = vpop.permute.xlu0 %2945
        %2947 = vrot.lane.b32.xlu0 %v2058, 48
        %v2948 = vpop.permute.xlu0 %2947
        %2949 = vrot.lane.b32.xlu0 %v2066, 48
        %v2950 = vpop.permute.xlu0 %2949
        %2951 = vrot.lane.b32.xlu0 %v2067, 48
        %v2952 = vpop.permute.xlu0 %2951
        %2953 = vrot.lane.b32.xlu0 %v2068, 48
        %v2954 = vpop.permute.xlu0 %2953
        %2955 = vrot.lane.b32.xlu0 %v2062, 48
        %v2956 = vpop.permute.xlu0 %2955
        %2957 = vrot.lane.b32.xlu0 %v2063, 48
        %v2958 = vpop.permute.xlu0 %2957
        %2959 = vrot.lane.b32.xlu0 %v2064, 48
        %v2960 = vpop.permute.xlu0 %2959
        %2961 = vrot.lane.b32.xlu0 %v393, 48
        %v2962 = vpop.permute.xlu0 %2961
        %2963 = vrot.lane.b32.xlu0 %v2065, 48
        %v2964 = vpop.permute.xlu0 %2963
        %v2981 = vadd.f32 %v2917, %v2934
        %v2982 = vadd.f32 %v2918, %v2936
        %v2983 = vadd.f32 %v2919, %v2938
        %v2984 = vadd.f32 %v2920, %v2940
        %v2985 = vadd.f32 %v2921, %v2942
        %v2986 = vadd.f32 %v2922, %v2944
        %v2987 = vadd.f32 %v2923, %v2946
        %v2988 = vadd.f32 %v2924, %v2948
        %v2989 = vadd.f32 %v2925, %v2950
        %v2990 = vadd.f32 %v2926, %v2952
        %v2991 = vadd.f32 %v2927, %v2954
        %v2992 = vadd.f32 %v2928, %v2956
        %v2993 = vadd.f32 %v2929, %v2958
        %v2994 = vadd.f32 %v2930, %v2960
        %v2995 = vadd.f32 %v2931, %v2962
        %v2996 = vadd.f32 %v2932, %v2964
        %v3013 = vrot.slane %v2981, 6
        %v3014 = vrot.slane %v2982, 5
        %v3015 = vsel %vm459, %v3014, %v3013
        %v3016 = vrot.slane %v2983, 4
        %v3017 = vsel %vm462, %v3016, %v3015
        %v3018 = vrot.slane %v2984, 3
        %v3019 = vsel %vm465, %v3018, %v3017
        %v3020 = vrot.slane %v2985, 2
        %v3021 = vsel %vm468, %v3020, %v3019
        %v3022 = vrot.slane %v2986, 1
        %v3023 = vsel %vm471, %v3022, %v3021
        %v3024 = vsel %vm474, %v2987, %v3023
        %v3025 = vrot.slane %v2988, 7
        %v3026 = vsel %vm477, %v3025, %v3024
        %v3027 = vrot.slane %v2989, 6
        %v3028 = vrot.slane %v2990, 5
        %v3029 = vsel %vm459, %v3028, %v3027
        %v3030 = vrot.slane %v2991, 4
        %v3031 = vsel %vm462, %v3030, %v3029
        %v3032 = vrot.slane %v2992, 3
        %v3033 = vsel %vm465, %v3032, %v3031
        %v3034 = vrot.slane %v2993, 2
        %v3035 = vsel %vm468, %v3034, %v3033
        %v3036 = vrot.slane %v2994, 1
        %v3037 = vsel %vm471, %v3036, %v3035
        %v3038 = vsel %vm474, %v2995, %v3037
        %v3039 = vrot.slane %v2996, 7
        %v3040 = vsel %vm477, %v3039, %v3038
        %3041 = vrot.lane.b32.xlu0 %v3026, 80
        %v3042 = vpop.permute.xlu0 %3041
        %3043 = vrot.lane.b32.xlu0 %v3040, 80
        %v3044 = vpop.permute.xlu0 %3043
        %3047 = vst.msk [vmem:[#allocation2 + $0x8] sm:$0xff] %vm1560, %v3042
        %3048 = vst.msk [vmem:[#allocation2 + $0x18] sm:$0xff] %vm1560, %v3044
        %v3065 = vrot.slane %v498, 1
        %v3066 = vrot.slane %v499, 1
        %v3067 = vrot.slane %v500, 1
        %v3068 = vrot.slane %v501, 1
        %v3069 = vrot.slane %v502, 1
        %v3070 = vrot.slane %v503, 1
        %v3071 = vrot.slane %v504, 1
        %v3072 = vrot.slane %v505, 1
        %v3073 = vrot.slane %v506, 1
        %v3074 = vrot.slane %v507, 1
        %v3075 = vrot.slane %v508, 1
        %v3076 = vrot.slane %v509, 1
        %v3077 = vrot.slane %v510, 1
        %v3078 = vrot.slane %v511, 1
        %v3079 = vrot.slane %v512, 1
        %v3080 = vrot.slane %v513, 1
        %v3097 = vadd.f32 %v514, %v3065
        %v3098 = vadd.f32 %v515, %v3066
        %v3099 = vadd.f32 %v516, %v3067
        %v3100 = vadd.f32 %v517, %v3068
        %v3101 = vadd.f32 %v518, %v3069
        %v3102 = vadd.f32 %v519, %v3070
        %v3103 = vadd.f32 %v520, %v3071
        %v3104 = vadd.f32 %v521, %v3072
        %v3105 = vadd.f32 %v522, %v3073
        %v3106 = vadd.f32 %v523, %v3074
        %v3107 = vadd.f32 %v524, %v3075
        %v3108 = vadd.f32 %v525, %v3076
        %v3109 = vadd.f32 %v526, %v3077
        %v3110 = vadd.f32 %v527, %v3078
        %v3111 = vadd.f32 %v528, %v3079
        %v3112 = vadd.f32 %v529, %v3080
        %3113 = vrot.lane.b32.xlu0 %v2059, 32
        %v3114 = vpop.permute.xlu0 %3113
        %3115 = vrot.lane.b32.xlu0 %v2060, 32
        %v3116 = vpop.permute.xlu0 %3115
        %3117 = vrot.lane.b32.xlu0 %v2061, 32
        %v3118 = vpop.permute.xlu0 %3117
        %3119 = vrot.lane.b32.xlu0 %v2055, 32
        %v3120 = vpop.permute.xlu0 %3119
        %3121 = vrot.lane.b32.xlu0 %v2056, 32
        %v3122 = vpop.permute.xlu0 %3121
        %3123 = vrot.lane.b32.xlu0 %v2057, 32
        %v3124 = vpop.permute.xlu0 %3123
        %3125 = vrot.lane.b32.xlu0 %v391, 32
        %v3126 = vpop.permute.xlu0 %3125
        %3127 = vrot.lane.b32.xlu0 %v2058, 32
        %v3128 = vpop.permute.xlu0 %3127
        %3129 = vrot.lane.b32.xlu0 %v2066, 32
        %v3130 = vpop.permute.xlu0 %3129
        %3131 = vrot.lane.b32.xlu0 %v2067, 32
        %v3132 = vpop.permute.xlu0 %3131
        %3133 = vrot.lane.b32.xlu0 %v2068, 32
        %v3134 = vpop.permute.xlu0 %3133
        %3135 = vrot.lane.b32.xlu0 %v2062, 32
        %v3136 = vpop.permute.xlu0 %3135
        %3137 = vrot.lane.b32.xlu0 %v2063, 32
        %v3138 = vpop.permute.xlu0 %3137
        %3139 = vrot.lane.b32.xlu0 %v2064, 32
        %v3140 = vpop.permute.xlu0 %3139
        %3141 = vrot.lane.b32.xlu0 %v393, 32
        %v3142 = vpop.permute.xlu0 %3141
        %3143 = vrot.lane.b32.xlu0 %v2065, 32
        %v3144 = vpop.permute.xlu0 %3143
        %v3161 = vadd.f32 %v3097, %v3114
        %v3162 = vadd.f32 %v3098, %v3116
        %v3163 = vadd.f32 %v3099, %v3118
        %v3164 = vadd.f32 %v3100, %v3120
        %v3165 = vadd.f32 %v3101, %v3122
        %v3166 = vadd.f32 %v3102, %v3124
        %v3167 = vadd.f32 %v3103, %v3126
        %v3168 = vadd.f32 %v3104, %v3128
        %v3169 = vadd.f32 %v3105, %v3130
        %v3170 = vadd.f32 %v3106, %v3132
        %v3171 = vadd.f32 %v3107, %v3134
        %v3172 = vadd.f32 %v3108, %v3136
        %v3173 = vadd.f32 %v3109, %v3138
        %v3174 = vadd.f32 %v3110, %v3140
        %v3175 = vadd.f32 %v3111, %v3142
        %v3176 = vadd.f32 %v3112, %v3144
        %v3193 = vrot.slane %v3161, 6
        %v3194 = vrot.slane %v3162, 5
        %v3195 = vsel %vm459, %v3194, %v3193
        %v3196 = vrot.slane %v3163, 4
        %v3197 = vsel %vm462, %v3196, %v3195
        %v3198 = vrot.slane %v3164, 3
        %v3199 = vsel %vm465, %v3198, %v3197
        %v3200 = vrot.slane %v3165, 2
        %v3201 = vsel %vm468, %v3200, %v3199
        %v3202 = vrot.slane %v3166, 1
        %v3203 = vsel %vm471, %v3202, %v3201
        %v3204 = vsel %vm474, %v3167, %v3203
        %v3205 = vrot.slane %v3168, 7
        %v3206 = vsel %vm477, %v3205, %v3204
        %v3207 = vrot.slane %v3169, 6
        %v3208 = vrot.slane %v3170, 5
        %v3209 = vsel %vm459, %v3208, %v3207
        %v3210 = vrot.slane %v3171, 4
        %v3211 = vsel %vm462, %v3210, %v3209
        %v3212 = vrot.slane %v3172, 3
        %v3213 = vsel %vm465, %v3212, %v3211
        %v3214 = vrot.slane %v3173, 2
        %v3215 = vsel %vm468, %v3214, %v3213
        %v3216 = vrot.slane %v3174, 1
        %v3217 = vsel %vm471, %v3216, %v3215
        %v3218 = vsel %vm474, %v3175, %v3217
        %v3219 = vrot.slane %v3176, 7
        %v3220 = vsel %vm477, %v3219, %v3218
        %3221 = vrot.lane.b32.xlu0 %v3206, 96
        %v3222 = vpop.permute.xlu0 %3221
        %3223 = vrot.lane.b32.xlu0 %v3220, 96
        %v3224 = vpop.permute.xlu0 %3223
        %3227 = vst.msk [vmem:[#allocation2 + $0x8] sm:$0xff] %vm1773, %v3222
        %3228 = vst.msk [vmem:[#allocation2 + $0x18] sm:$0xff] %vm1773, %v3224
        %3229 = vrot.lane.b32.xlu0 %v2058, 16
        %v3230 = vpop.permute.xlu0 %3229
        %3231 = vrot.lane.b32.xlu0 %v2059, 16
        %v3232 = vpop.permute.xlu0 %3231
        %3233 = vrot.lane.b32.xlu0 %v2060, 16
        %v3234 = vpop.permute.xlu0 %3233
        %3235 = vrot.lane.b32.xlu0 %v2061, 16
        %v3236 = vpop.permute.xlu0 %3235
        %3237 = vrot.lane.b32.xlu0 %v2055, 16
        %v3238 = vpop.permute.xlu0 %3237
        %3239 = vrot.lane.b32.xlu0 %v2056, 16
        %v3240 = vpop.permute.xlu0 %3239
        %3241 = vrot.lane.b32.xlu0 %v2057, 16
        %v3242 = vpop.permute.xlu0 %3241
        %3243 = vrot.lane.b32.xlu0 %v391, 16
        %v3244 = vpop.permute.xlu0 %3243
        %3245 = vrot.lane.b32.xlu0 %v2065, 16
        %v3246 = vpop.permute.xlu0 %3245
        %3247 = vrot.lane.b32.xlu0 %v2066, 16
        %v3248 = vpop.permute.xlu0 %3247
        %3249 = vrot.lane.b32.xlu0 %v2067, 16
        %v3250 = vpop.permute.xlu0 %3249
        %3251 = vrot.lane.b32.xlu0 %v2068, 16
        %v3252 = vpop.permute.xlu0 %3251
        %3253 = vrot.lane.b32.xlu0 %v2062, 16
        %v3254 = vpop.permute.xlu0 %3253
        %3255 = vrot.lane.b32.xlu0 %v2063, 16
        %v3256 = vpop.permute.xlu0 %3255
        %3257 = vrot.lane.b32.xlu0 %v2064, 16
        %v3258 = vpop.permute.xlu0 %3257
        %3259 = vrot.lane.b32.xlu0 %v393, 16
        %v3260 = vpop.permute.xlu0 %3259
        %v3277 = vadd.f32 %v351, %v3230
        %v3278 = vadd.f32 %v353, %v3232
        %v3279 = vadd.f32 %v356, %v3234
        %v3280 = vadd.f32 %v358, %v3236
        %v3281 = vadd.f32 %v361, %v3238
        %v3282 = vadd.f32 %v363, %v3240
        %v3283 = vadd.f32 %v366, %v3242
        %v3284 = vadd.f32 %v368, %v3244
        %v3285 = vadd.f32 %v371, %v3246
        %v3286 = vadd.f32 %v373, %v3248
        %v3287 = vadd.f32 %v376, %v3250
        %v3288 = vadd.f32 %v378, %v3252
        %v3289 = vadd.f32 %v381, %v3254
        %v3290 = vadd.f32 %v383, %v3256
        %v3291 = vadd.f32 %v386, %v3258
        %v3292 = vadd.f32 %v388, %v3260
        %v3309 = vrot.slane %v3277, 7
        %v3310 = vrot.slane %v3278, 6
        %v3311 = vsel %vm459, %v3310, %v3309
        %v3312 = vrot.slane %v3279, 5
        %v3313 = vsel %vm462, %v3312, %v3311
        %v3314 = vrot.slane %v3280, 4
        %v3315 = vsel %vm465, %v3314, %v3313
        %v3316 = vrot.slane %v3281, 3
        %v3317 = vsel %vm468, %v3316, %v3315
        %v3318 = vrot.slane %v3282, 2
        %v3319 = vsel %vm471, %v3318, %v3317
        %v3320 = vrot.slane %v3283, 1
        %v3321 = vsel %vm474, %v3320, %v3319
        %v3322 = vsel %vm477, %v3284, %v3321
        %v3323 = vrot.slane %v3285, 7
        %v3324 = vrot.slane %v3286, 6
        %v3325 = vsel %vm459, %v3324, %v3323
        %v3326 = vrot.slane %v3287, 5
        %v3327 = vsel %vm462, %v3326, %v3325
        %v3328 = vrot.slane %v3288, 4
        %v3329 = vsel %vm465, %v3328, %v3327
        %v3330 = vrot.slane %v3289, 3
        %v3331 = vsel %vm468, %v3330, %v3329
        %v3332 = vrot.slane %v3290, 2
        %v3333 = vsel %vm471, %v3332, %v3331
        %v3334 = vrot.slane %v3291, 1
        %v3335 = vsel %vm474, %v3334, %v3333
        %v3336 = vsel %vm477, %v3292, %v3335
        %3337 = vrot.lane.b32.xlu0 %v3322, 112
        %v3338 = vpop.permute.xlu0 %3337
        %3339 = vrot.lane.b32.xlu0 %v3336, 112
        %v3340 = vpop.permute.xlu0 %3339
        %3343 = vst.msk [vmem:[#allocation2 + $0x8] sm:$0xff] %vm1986, %v3338
        %3344 = vst.msk [vmem:[#allocation2 + $0x18] sm:$0xff] %vm1986, %v3340
        %v3345 = vld [vmem:[#allocation2] sm:$0xff]
        %v3346 = vld [vmem:[#allocation2 + $0x8] sm:$0xff]
        %3347 = vrot.lane.b32.xlu0 %v3345, 17
        %v3348 = vpop.permute.xlu0 %3347
        %3349 = vrot.lane.b32.xlu0 %v3346, 17
        %v3350 = vpop.permute.xlu0 %3349
        %v3351 = vlaneseq
        %v3352 = vand.u32 %v3351, 127
        %vm3353 = vcmp.lt.s32.totalorder %v3352, 17
        %v3354 = vsel %vm3353, %v3348, %v3350
        %v3355 = vsel %vm3353, %v3350, %v3348
        %v3356 = vld [vmem:[%s3] ss:$8 sm:$0x3]
        %v3358 = vperm.slane %v3356, 0
        %v3359 = vperm.slane %v3356, 1
        %v3362 = vmul.f32 %v3355, %v3358
        %v3363 = vmul.f32 %v3354, %v3359
        %v3364 = vpack.c.bf16 %v3363, %v3362
        %3365 = vst [vmem:[#allocation3] sm:$0xff] %v3364
        %3366 = vrot.lane.b32.xlu0 %v3345, 16
        %v3367 = vpop.permute.xlu0 %3366
        %3368 = vrot.lane.b32.xlu0 %v3346, 16
        %v3369 = vpop.permute.xlu0 %3368
        %vm3370 = vcmp.lt.s32.totalorder %v3352, 16
        %v3371 = vsel %vm3370, %v3367, %v3369
        %v3372 = vsel %vm3370, %v3369, %v3367
        %s3373 = scalar_lea.vmem %s3, 1
        %v3374 = vld [vmem:[%s3373] ss:$8 sm:$0x3]
        %v3376 = vperm.slane %v3374, 0
        %v3377 = vperm.slane %v3374, 1
        %v3380 = vmul.f32 %v3372, %v3376
        %v3381 = vmul.f32 %v3371, %v3377
        %v3382 = vpack.c.bf16 %v3381, %v3380
        %3383 = vst [vmem:[#allocation3 + $0x8] sm:$0xff] %v3382
        %3384 = vrot.lane.b32.xlu0 %v3345, 15
        %v3385 = vpop.permute.xlu0 %3384
        %3386 = vrot.lane.b32.xlu0 %v3346, 15
        %v3387 = vpop.permute.xlu0 %3386
        %vm3388 = vcmp.lt.s32.totalorder %v3352, 15
        %v3389 = vsel %vm3388, %v3385, %v3387
        %v3390 = vsel %vm3388, %v3387, %v3385
        %s3391 = scalar_lea.vmem %s3, 2
        %v3392 = vld [vmem:[%s3391] ss:$8 sm:$0x3]
        %v3394 = vperm.slane %v3392, 0
        %v3395 = vperm.slane %v3392, 1
        %v3398 = vmul.f32 %v3390, %v3394
        %v3399 = vmul.f32 %v3389, %v3395
        %v3400 = vpack.c.bf16 %v3399, %v3398
        %3401 = vst [vmem:[#allocation3 + $0x10] sm:$0xff] %v3400
        %3402 = vrot.lane.b32.xlu0 %v3345, 1
        %v3403 = vpop.permute.xlu0 %3402
        %3404 = vrot.lane.b32.xlu0 %v3346, 1
        %v3405 = vpop.permute.xlu0 %3404
        %vm3406 = vcmp.lt.s32.totalorder %v3352, 1
        %v3407 = vsel %vm3406, %v3403, %v3405
        %v3408 = vsel %vm3406, %v3405, %v3403
        %s3409 = scalar_lea.vmem %s3, 3
        %v3410 = vld [vmem:[%s3409] ss:$8 sm:$0x3]
        %v3412 = vperm.slane %v3410, 0
        %v3413 = vperm.slane %v3410, 1
        %v3416 = vmul.f32 %v3408, %v3412
        %v3417 = vmul.f32 %v3407, %v3413
        %v3418 = vpack.c.bf16 %v3417, %v3416
        %3419 = vst [vmem:[#allocation3 + $0x18] sm:$0xff] %v3418
        %s3420 = scalar_lea.vmem %s3, 4
        %v3421 = vld [vmem:[%s3420] ss:$8 sm:$0x3]
        %v3423 = vperm.slane %v3421, 0
        %v3424 = vperm.slane %v3421, 1
        %v3427 = vmul.f32 %v3345, %v3423
        %v3428 = vmul.f32 %v3346, %v3424
        %v3429 = vpack.c.bf16 %v3428, %v3427
        %3430 = vst [vmem:[#allocation3 + $0x20] sm:$0xff] %v3429
        %3431 = vrot.lane.b32.xlu0 %v3345, 127
        %v3432 = vpop.permute.xlu0 %3431
        %3433 = vrot.lane.b32.xlu0 %v3346, 127
        %v3434 = vpop.permute.xlu0 %3433
        %vm3435 = vcmp.lt.s32.totalorder %v3352, 127
        %v3436 = vsel %vm3435, %v3432, %v3434
        %v3437 = vsel %vm3435, %v3434, %v3432
        %s3438 = scalar_lea.vmem %s3, 5
        %v3439 = vld [vmem:[%s3438] ss:$8 sm:$0x3]
        %v3441 = vperm.slane %v3439, 0
        %v3442 = vperm.slane %v3439, 1
        %v3445 = vmul.f32 %v3436, %v3441
        %v3446 = vmul.f32 %v3437, %v3442
        %v3447 = vpack.c.bf16 %v3446, %v3445
        %3448 = vst [vmem:[#allocation3 + $0x28] sm:$0xff] %v3447
        %3449 = vrot.lane.b32.xlu0 %v3345, 113
        %v3450 = vpop.permute.xlu0 %3449
        %3451 = vrot.lane.b32.xlu0 %v3346, 113
        %v3452 = vpop.permute.xlu0 %3451
        %vm3453 = vcmp.lt.s32.totalorder %v3352, 113
        %v3454 = vsel %vm3453, %v3450, %v3452
        %v3455 = vsel %vm3453, %v3452, %v3450
        %s3456 = scalar_lea.vmem %s3, 6
        %v3457 = vld [vmem:[%s3456] ss:$8 sm:$0x3]
        %v3459 = vperm.slane %v3457, 0
        %v3460 = vperm.slane %v3457, 1
        %v3463 = vmul.f32 %v3454, %v3459
        %v3464 = vmul.f32 %v3455, %v3460
        %v3465 = vpack.c.bf16 %v3464, %v3463
        %3466 = vst [vmem:[#allocation3 + $0x30] sm:$0xff] %v3465
        %3467 = vrot.lane.b32.xlu0 %v3345, 112
        %v3468 = vpop.permute.xlu0 %3467
        %3469 = vrot.lane.b32.xlu0 %v3346, 112
        %v3470 = vpop.permute.xlu0 %3469
        %vm3471 = vcmp.lt.s32.totalorder %v3352, 112
        %v3472 = vsel %vm3471, %v3468, %v3470
        %v3473 = vsel %vm3471, %v3470, %v3468
        %s3474 = scalar_lea.vmem %s3, 7
        %v3475 = vld [vmem:[%s3474] ss:$8 sm:$0x3]
        %v3477 = vperm.slane %v3475, 0
        %v3478 = vperm.slane %v3475, 1
        %v3481 = vmul.f32 %v3472, %v3477
        %v3482 = vmul.f32 %v3473, %v3478
        %v3483 = vpack.c.bf16 %v3482, %v3481
        %3484 = vst [vmem:[#allocation3 + $0x38] sm:$0xff] %v3483
        %3485 = vrot.lane.b32.xlu0 %v3345, 111
        %v3486 = vpop.permute.xlu0 %3485
        %3487 = vrot.lane.b32.xlu0 %v3346, 111
        %v3488 = vpop.permute.xlu0 %3487
        %vm3489 = vcmp.lt.s32.totalorder %v3352, 111
        %v3490 = vsel %vm3489, %v3486, %v3488
        %v3491 = vsel %vm3489, %v3488, %v3486
        %s3492 = scalar_lea.vmem %s3, 16
        %v3493 = vld [vmem:[%s3492] ss:$8 sm:$0x3]
        %v3495 = vperm.slane %v3493, 0
        %v3496 = vperm.slane %v3493, 1
        %v3499 = vmul.f32 %v3490, %v3495
        %v3500 = vmul.f32 %v3491, %v3496
        %v3501 = vpack.c.bf16 %v3500, %v3499
        %3502 = vst [vmem:[#allocation3 + $0x40] sm:$0xff] %v3501
        %v3503 = vld [vmem:[%s4] sm:$0xf]
        %v3504 = vld [vmem:[#allocation3] sm:$0xff]
        %v3505 = vld [vmem:[#allocation3 + $0x8] sm:$0xff]
        %v3506 = vld [vmem:[#allocation3 + $0x10] sm:$0xff]
        %v3507 = vld [vmem:[#allocation3 + $0x18] sm:$0xff]
        %v3508 = vld [vmem:[#allocation3 + $0x20] sm:$0xff]
        %v3509 = vld [vmem:[#allocation3 + $0x28] sm:$0xff]
        %v3510 = vld [vmem:[#allocation3 + $0x30] sm:$0xff]
        %v3511 = vld [vmem:[#allocation3 + $0x38] sm:$0xff]
        %v3512 = vld [vmem:[#allocation3 + $0x40] sm:$0xff]
        %v3522 = vunpack.c.l.b16 %v3504
        %v3523 = vunpack.c.h.b16 %v3504
        %v3524 = vunpack.c.l.b16 %v3505
        %v3525 = vunpack.c.h.b16 %v3505
        %v3526 = vunpack.c.l.b16 %v3506
        %v3527 = vunpack.c.h.b16 %v3506
        %v3528 = vunpack.c.l.b16 %v3507
        %v3529 = vunpack.c.h.b16 %v3507
        %v3530 = vunpack.c.l.b16 %v3508
        %v3531 = vunpack.c.h.b16 %v3508
        %v3532 = vunpack.c.l.b16 %v3509
        %v3533 = vunpack.c.h.b16 %v3509
        %v3534 = vunpack.c.l.b16 %v3510
        %v3535 = vunpack.c.h.b16 %v3510
        %v3536 = vunpack.c.l.b16 %v3511
        %v3537 = vunpack.c.h.b16 %v3511
        %v3538 = vunpack.c.l.b16 %v3512
        %v3539 = vunpack.c.h.b16 %v3512
        %v3540 = vpack.c.b16 %v3524, %v3522
        %v3541 = vpack.c.b16 %v3525, %v3523
        %v3542 = vpack.c.b16 %v3528, %v3526
        %v3543 = vpack.c.b16 %v3529, %v3527
        %v3544 = vpack.c.b16 %v3532, %v3530
        %v3545 = vpack.c.b16 %v3533, %v3531
        %v3546 = vpack.c.b16 %v3536, %v3534
        %v3547 = vpack.c.b16 %v3537, %v3535
        %v3548 = vpack.c.b16 %v3538, %v3538
        %v3549 = vpack.c.b16 %v3539, %v3539
        %vm3558 = vcmask 588800
        %v3560 = vsel %vm3558, %v3503, 0
        %v3563 = vsel %vm337, %v3548, 0
        %v3566 = vsel %vm337, %v3549, 0
        %3568 = vmatpush.bf16.msra.mxu0 0
        %3569 = vmatpush.bf16.msra.mxu0 0
        %3570 = vmatpush.bf16.msra.mxu0 0
        %3571 = vmatpush.bf16.msra.mxu0 %v3563
        %3572 = vmatpush.bf16.msra.mxu0 %v3546
        %3573 = vmatpush.bf16.msra.mxu0 %v3544
        %3574 = vmatpush.bf16.msra.mxu0 %v3542
        %3575 = vmatpush.bf16.msra.mxu0 %v3540
        %3576 = vmatmul.bf16.gmra.mxu0 %v3560
        %v3577 = vpop.f32.mrf.mxu0
        %v3578 = vadd.f32 0.0, %v3577
        %v3579 = vpop.f32.mrf.mxu0
        %3580 = vdwg.mxu0
        %3581 = vmatpush.bf16.msra.mxu0 0
        %3582 = vmatpush.bf16.msra.mxu0 0
        %3583 = vmatpush.bf16.msra.mxu0 0
        %3584 = vmatpush.bf16.msra.mxu0 %v3566
        %3585 = vmatpush.bf16.msra.mxu0 %v3547
        %3586 = vmatpush.bf16.msra.mxu0 %v3545
        %3587 = vmatpush.bf16.msra.mxu0 %v3543
        %3588 = vmatpush.bf16.msra.mxu0 %v3541
        %3589 = vmatmul.bf16.gmra.mxu0 %v3560
        %v3590 = vpop.f32.mrf.mxu0
        %v3591 = vadd.f32 0.0, %v3590
        %v3592 = vpop.f32.mrf.mxu0
        %3593 = vdwg.mxu0
        %v3594 = vadd.f32 %v3578, %v3591
        %3595 = vadd.xlane.f32.xlu0 %v3594
        %v3596 = vpop.xlane.xlu0 %3595
        %v3597 = vmul.f32 %v3596, 0.00390625
        %v3598 = vmul.f32 %v3578, %v3578
        %v3599 = vmul.f32 %v3591, %v3591
        %v3600 = vadd.f32 %v3598, %v3599
        %3601 = vadd.xlane.f32.xlu0 %v3600
        %v3602 = vpop.xlane.xlu0 %3601
        %v3603 = vmul.f32 %v3602, 0.00390625
        %v3604 = vmul.f32 %v3597, %v3597
        %v3605 = vsub.f32 %v3603, %v3604
        %v3606 = vmax.f32 %v3605, 0.0
        %v3607 = vsub.f32 %v3578, %v3597
        %v3608 = vsub.f32 %v3591, %v3597
        %v3609 = vadd.f32 %v3606, 1e-05
        %v3610 = vrsqrt.pop %v3609
        %v3611 = vmul.f32 %v3610, %v3609
        %v3612 = vmul.f32 %v3611, %v3610
        %v3613 = vmul.f32 0.5, %v3612
        %v3614 = vsub.f32 1.5, %v3613
        %v3615 = vmul.f32 %v3610, %v3614
        %vm3616 = vweird.f32 %v3609
        %vm3617 = vweird.f32 %v3610
        %vm3618 = vmor %vm3616, %vm3617
        %v3619 = vsel %vm3618, %v3610, %v3615
        %v3620 = vmul.f32 %v3607, %v3619
        %v3621 = vmul.f32 %v3608, %v3619
        %vm3622 = vcmp.gt.f32.partialorder %v3620, 0.0
        %vm3623 = vcmp.gt.f32.partialorder %v3621, 0.0
        %v3624 = vmul.f32 %v3620, 0.2
        %v3625 = vmul.f32 %v3621, 0.2
        %v3626 = vsel %vm3622, %v3620, %v3624
        %v3627 = vsel %vm3623, %v3621, %v3625
        %3628 = vst [vmem:[%s238] sm:$0xff] %v3626
        %3629 = vst [vmem:[%s238 + $0x8] sm:$0xff] %v3627
        %v3630 = vld [vmem:[#allocation2 + $0x10] sm:$0xff]
        %v3631 = vld [vmem:[#allocation2 + $0x18] sm:$0xff]
        %3632 = vrot.lane.b32.xlu0 %v3630, 17
        %v3633 = vpop.permute.xlu0 %3632
        %3634 = vrot.lane.b32.xlu0 %v3631, 17
        %v3635 = vpop.permute.xlu0 %3634
        %v3636 = vsel %vm3353, %v3633, %v3635
        %v3637 = vsel %vm3353, %v3635, %v3633
        %v3638 = vld [vmem:[%s3] ss:$8 sm:$0x3]
        %v3640 = vperm.slane %v3638, 0
        %v3641 = vperm.slane %v3638, 1
        %v3644 = vmul.f32 %v3637, %v3640
        %v3645 = vmul.f32 %v3636, %v3641
        %v3646 = vpack.c.bf16 %v3645, %v3644
        %3647 = vst [vmem:[#allocation3] sm:$0xff] %v3646
        %3648 = vrot.lane.b32.xlu0 %v3630, 16
        %v3649 = vpop.permute.xlu0 %3648
        %3650 = vrot.lane.b32.xlu0 %v3631, 16
        %v3651 = vpop.permute.xlu0 %3650
        %v3652 = vsel %vm3370, %v3649, %v3651
        %v3653 = vsel %vm3370, %v3651, %v3649
        %v3654 = vld [vmem:[%s3373] ss:$8 sm:$0x3]
        %v3656 = vperm.slane %v3654, 0
        %v3657 = vperm.slane %v3654, 1
        %v3660 = vmul.f32 %v3653, %v3656
        %v3661 = vmul.f32 %v3652, %v3657
        %v3662 = vpack.c.bf16 %v3661, %v3660
        %3663 = vst [vmem:[#allocation3 + $0x8] sm:$0xff] %v3662
        %3664 = vrot.lane.b32.xlu0 %v3630, 15
        %v3665 = vpop.permute.xlu0 %3664
        %3666 = vrot.lane.b32.xlu0 %v3631, 15
        %v3667 = vpop.permute.xlu0 %3666
        %v3668 = vsel %vm3388, %v3665, %v3667
        %v3669 = vsel %vm3388, %v3667, %v3665
        %v3670 = vld [vmem:[%s3391] ss:$8 sm:$0x3]
        %v3672 = vperm.slane %v3670, 0
        %v3673 = vperm.slane %v3670, 1
        %v3676 = vmul.f32 %v3669, %v3672
        %v3677 = vmul.f32 %v3668, %v3673
        %v3678 = vpack.c.bf16 %v3677, %v3676
        %3679 = vst [vmem:[#allocation3 + $0x10] sm:$0xff] %v3678
        %3680 = vrot.lane.b32.xlu0 %v3630, 1
        %v3681 = vpop.permute.xlu0 %3680
        %3682 = vrot.lane.b32.xlu0 %v3631, 1
        %v3683 = vpop.permute.xlu0 %3682
        %v3684 = vsel %vm3406, %v3681, %v3683
        %v3685 = vsel %vm3406, %v3683, %v3681
        %v3686 = vld [vmem:[%s3409] ss:$8 sm:$0x3]
        %v3688 = vperm.slane %v3686, 0
        %v3689 = vperm.slane %v3686, 1
        %v3692 = vmul.f32 %v3685, %v3688
        %v3693 = vmul.f32 %v3684, %v3689
        %v3694 = vpack.c.bf16 %v3693, %v3692
        %3695 = vst [vmem:[#allocation3 + $0x18] sm:$0xff] %v3694
        %v3696 = vld [vmem:[%s3420] ss:$8 sm:$0x3]
        %v3698 = vperm.slane %v3696, 0
        %v3699 = vperm.slane %v3696, 1
        %v3702 = vmul.f32 %v3630, %v3698
        %v3703 = vmul.f32 %v3631, %v3699
        %v3704 = vpack.c.bf16 %v3703, %v3702
        %3705 = vst [vmem:[#allocation3 + $0x20] sm:$0xff] %v3704
        %3706 = vrot.lane.b32.xlu0 %v3630, 127
        %v3707 = vpop.permute.xlu0 %3706
        %3708 = vrot.lane.b32.xlu0 %v3631, 127
        %v3709 = vpop.permute.xlu0 %3708
        %v3710 = vsel %vm3435, %v3707, %v3709
        %v3711 = vsel %vm3435, %v3709, %v3707
        %v3712 = vld [vmem:[%s3438] ss:$8 sm:$0x3]
        %v3714 = vperm.slane %v3712, 0
        %v3715 = vperm.slane %v3712, 1
        %v3718 = vmul.f32 %v3710, %v3714
        %v3719 = vmul.f32 %v3711, %v3715
        %v3720 = vpack.c.bf16 %v3719, %v3718
        %3721 = vst [vmem:[#allocation3 + $0x28] sm:$0xff] %v3720
        %3722 = vrot.lane.b32.xlu0 %v3630, 113
        %v3723 = vpop.permute.xlu0 %3722
        %3724 = vrot.lane.b32.xlu0 %v3631, 113
        %v3725 = vpop.permute.xlu0 %3724
        %v3726 = vsel %vm3453, %v3723, %v3725
        %v3727 = vsel %vm3453, %v3725, %v3723
        %v3728 = vld [vmem:[%s3456] ss:$8 sm:$0x3]
        %v3730 = vperm.slane %v3728, 0
        %v3731 = vperm.slane %v3728, 1
        %v3734 = vmul.f32 %v3726, %v3730
        %v3735 = vmul.f32 %v3727, %v3731
        %v3736 = vpack.c.bf16 %v3735, %v3734
        %3737 = vst [vmem:[#allocation3 + $0x30] sm:$0xff] %v3736
        %3738 = vrot.lane.b32.xlu0 %v3630, 112
        %v3739 = vpop.permute.xlu0 %3738
        %3740 = vrot.lane.b32.xlu0 %v3631, 112
        %v3741 = vpop.permute.xlu0 %3740
        %v3742 = vsel %vm3471, %v3739, %v3741
        %v3743 = vsel %vm3471, %v3741, %v3739
        %v3744 = vld [vmem:[%s3474] ss:$8 sm:$0x3]
        %v3746 = vperm.slane %v3744, 0
        %v3747 = vperm.slane %v3744, 1
        %v3750 = vmul.f32 %v3742, %v3746
        %v3751 = vmul.f32 %v3743, %v3747
        %v3752 = vpack.c.bf16 %v3751, %v3750
        %3753 = vst [vmem:[#allocation3 + $0x38] sm:$0xff] %v3752
        %3754 = vrot.lane.b32.xlu0 %v3630, 111
        %v3755 = vpop.permute.xlu0 %3754
        %3756 = vrot.lane.b32.xlu0 %v3631, 111
        %v3757 = vpop.permute.xlu0 %3756
        %v3758 = vsel %vm3489, %v3755, %v3757
        %v3759 = vsel %vm3489, %v3757, %v3755
        %v3760 = vld [vmem:[%s3492] ss:$8 sm:$0x3]
        %v3762 = vperm.slane %v3760, 0
        %v3763 = vperm.slane %v3760, 1
        %v3766 = vmul.f32 %v3758, %v3762
        %v3767 = vmul.f32 %v3759, %v3763
        %v3768 = vpack.c.bf16 %v3767, %v3766
        %3769 = vst [vmem:[#allocation3 + $0x40] sm:$0xff] %v3768
        %v3770 = vld [vmem:[%s4] sm:$0xf]
        %v3771 = vld [vmem:[#allocation3] sm:$0xff]
        %v3772 = vld [vmem:[#allocation3 + $0x8] sm:$0xff]
        %v3773 = vld [vmem:[#allocation3 + $0x10] sm:$0xff]
        %v3774 = vld [vmem:[#allocation3 + $0x18] sm:$0xff]
        %v3775 = vld [vmem:[#allocation3 + $0x20] sm:$0xff]
        %v3776 = vld [vmem:[#allocation3 + $0x28] sm:$0xff]
        %v3777 = vld [vmem:[#allocation3 + $0x30] sm:$0xff]
        %v3778 = vld [vmem:[#allocation3 + $0x38] sm:$0xff]
        %v3779 = vld [vmem:[#allocation3 + $0x40] sm:$0xff]
        %v3789 = vunpack.c.l.b16 %v3771
        %v3790 = vunpack.c.h.b16 %v3771
        %v3791 = vunpack.c.l.b16 %v3772
        %v3792 = vunpack.c.h.b16 %v3772
        %v3793 = vunpack.c.l.b16 %v3773
        %v3794 = vunpack.c.h.b16 %v3773
        %v3795 = vunpack.c.l.b16 %v3774
        %v3796 = vunpack.c.h.b16 %v3774
        %v3797 = vunpack.c.l.b16 %v3775
        %v3798 = vunpack.c.h.b16 %v3775
        %v3799 = vunpack.c.l.b16 %v3776
        %v3800 = vunpack.c.h.b16 %v3776
        %v3801 = vunpack.c.l.b16 %v3777
        %v3802 = vunpack.c.h.b16 %v3777
        %v3803 = vunpack.c.l.b16 %v3778
        %v3804 = vunpack.c.h.b16 %v3778
        %v3805 = vunpack.c.l.b16 %v3779
        %v3806 = vunpack.c.h.b16 %v3779
        %v3807 = vpack.c.b16 %v3791, %v3789
        %v3808 = vpack.c.b16 %v3792, %v3790
        %v3809 = vpack.c.b16 %v3795, %v3793
        %v3810 = vpack.c.b16 %v3796, %v3794
        %v3811 = vpack.c.b16 %v3799, %v3797
        %v3812 = vpack.c.b16 %v3800, %v3798
        %v3813 = vpack.c.b16 %v3803, %v3801
        %v3814 = vpack.c.b16 %v3804, %v3802
        %v3815 = vpack.c.b16 %v3805, %v3805
        %v3816 = vpack.c.b16 %v3806, %v3806
        %v3826 = vsel %vm3558, %v3770, 0
        %v3829 = vsel %vm337, %v3815, 0
        %v3832 = vsel %vm337, %v3816, 0
        %3834 = vmatpush.bf16.msra.mxu0 0
        %3835 = vmatpush.bf16.msra.mxu0 0
        %3836 = vmatpush.bf16.msra.mxu0 0
        %3837 = vmatpush.bf16.msra.mxu0 %v3829
        %3838 = vmatpush.bf16.msra.mxu0 %v3813
        %3839 = vmatpush.bf16.msra.mxu0 %v3811
        %3840 = vmatpush.bf16.msra.mxu0 %v3809
        %3841 = vmatpush.bf16.msra.mxu0 %v3807
        %3842 = vmatmul.bf16.gmra.mxu0 %v3826
        %v3843 = vpop.f32.mrf.mxu0
        %v3844 = vadd.f32 0.0, %v3843
        %v3845 = vpop.f32.mrf.mxu0
        %3846 = vdwg.mxu0
        %3847 = vmatpush.bf16.msra.mxu0 0
        %3848 = vmatpush.bf16.msra.mxu0 0
        %3849 = vmatpush.bf16.msra.mxu0 0
        %3850 = vmatpush.bf16.msra.mxu0 %v3832
        %3851 = vmatpush.bf16.msra.mxu0 %v3814
        %3852 = vmatpush.bf16.msra.mxu0 %v3812
        %3853 = vmatpush.bf16.msra.mxu0 %v3810
        %3854 = vmatpush.bf16.msra.mxu0 %v3808
        %3855 = vmatmul.bf16.gmra.mxu0 %v3826
        %v3856 = vpop.f32.mrf.mxu0
        %v3857 = vadd.f32 0.0, %v3856
        %v3858 = vpop.f32.mrf.mxu0
        %3859 = vdwg.mxu0
        %v3860 = vadd.f32 %v3844, %v3857
        %3861 = vadd.xlane.f32.xlu0 %v3860
        %v3862 = vpop.xlane.xlu0 %3861
        %v3863 = vmul.f32 %v3862, 0.00390625
        %v3864 = vmul.f32 %v3844, %v3844
        %v3865 = vmul.f32 %v3857, %v3857
        %v3866 = vadd.f32 %v3864, %v3865
        %3867 = vadd.xlane.f32.xlu0 %v3866
        %v3868 = vpop.xlane.xlu0 %3867
        %v3869 = vmul.f32 %v3868, 0.00390625
        %v3870 = vmul.f32 %v3863, %v3863
        %v3871 = vsub.f32 %v3869, %v3870
        %v3872 = vmax.f32 %v3871, 0.0
        %v3873 = vsub.f32 %v3844, %v3863
        %v3874 = vsub.f32 %v3857, %v3863
        %v3875 = vadd.f32 %v3872, 1e-05
        %v3876 = vrsqrt.pop %v3875
        %v3877 = vmul.f32 %v3876, %v3875
        %v3878 = vmul.f32 %v3877, %v3876
        %v3879 = vmul.f32 0.5, %v3878
        %v3880 = vsub.f32 1.5, %v3879
        %v3881 = vmul.f32 %v3876, %v3880
        %vm3882 = vweird.f32 %v3875
        %vm3883 = vweird.f32 %v3876
        %vm3884 = vmor %vm3882, %vm3883
        %v3885 = vsel %vm3884, %v3876, %v3881
        %v3886 = vmul.f32 %v3873, %v3885
        %v3887 = vmul.f32 %v3874, %v3885
        %vm3888 = vcmp.gt.f32.partialorder %v3886, 0.0
        %vm3889 = vcmp.gt.f32.partialorder %v3887, 0.0
        %v3890 = vmul.f32 %v3886, 0.2
        %v3891 = vmul.f32 %v3887, 0.2
        %v3892 = vsel %vm3888, %v3886, %v3890
        %v3893 = vsel %vm3889, %v3887, %v3891
        %s3894 = scalar_lea.vmem %s238, 16 [#allocation4]
        %3895 = vst [vmem:[%s3894] sm:$0xff] %v3892
        %3896 = vst [vmem:[%s3894 + $0x8] sm:$0xff] %v3893
        %s3897 = sand.u32 %s142, 1
        %s3898 = scalar_lea.sflag [#allocation5], %s3897
        %s3899 = sand.u32 %s142, 1
        %s3900 = smul.addr %s3899, 32
        %s3901 = scalar_lea.vmem [#allocation4], %s3900
        // Predicated region
        $region41: #{tpu_custom_call.1} parent=39 // pred_check
          %p3902 = pneg %p152
        $region42: #{tpu_custom_call.1} parent=39 // pred_check_branch
          %3904 = sbr.rel (%p3902) target = $region44
        $region43: #{tpu_custom_call.1} parent=39 // pred_region
          %s3905 = smul.u32 2, %s19
          %3907 = vsyncadd %s3898, 0
          %s3908 = smul.addr %s3905, 2
          %s3909 = smul.addr %s3908, 8
          %s3910 = scalar_lea.hbm %s5, %s3909
          %s3911 = sshll.u32 %s3901, 4
          %s3912 = int_to_ptr.vmem [resolvable:$true] %s3911
          %s3913 = sshll.u32 %s3910, 4
          %s3914 = int_to_ptr.hbm [resolvable:$true] %s3913
          %3919 = dma.vmem_to_hbm [thread:$0]  %s3912, 512, %s3914, %s3898, 256, 256, 16
        $region44: #{tpu_custom_call.1} parent=39 // pred_fallthru
          _
      $region40: #{tpu_custom_call.1} parent=5 // pred_fallthru
        _
      %p3920 = scmp.le.s32.totalorder 2, %s14
      // Predicated region
      $region45: #{tpu_custom_call.1} parent=5 // pred_check
        %p3921 = pneg %p3920
      $region46: #{tpu_custom_call.1} parent=5 // pred_check_branch
        %3923 = sbr.rel (%p3921) target = $region48
      $region47: #{tpu_custom_call.1} parent=5 // pred_region
        %s3924 = ssub.s32 %s14, 2
        // Predicated region
        $region49: #{tpu_custom_call.1} parent=47 // pred_check
          %p3925 = pneg %p158
        $region50: #{tpu_custom_call.1} parent=47 // pred_check_branch
          %3927 = sbr.rel (%p3925) target = $region52
        $region51: #{tpu_custom_call.1} parent=47 // pred_region
          %s3928 = sand.u32 %s143, 1
          %s3929 = scalar_lea.sflag [#allocation5], %s3928
          %s3930 = sand.u32 %s143, 1
          %s3931 = smul.addr %s3930, 32
          %s3932 = scalar_lea.vmem [#allocation4], %s3931
          %3934 = dma.done %s3929, 512
        $region52: #{tpu_custom_call.1} parent=47 // pred_fallthru
          _
      $region48: #{tpu_custom_call.1} parent=5 // pred_fallthru
        _
    $region6: #{tpu_custom_call.1} parent=1 // loop_footer
      %s18 = sadd.s32 1, %s14
    $region7: #{tpu_custom_call.1} parent=1 // loop_footer_branch
      %13 = sbr.rel target = $region3
    $region8: #{tpu_custom_call.1} parent=1 // loop_exit
      _
    %3935 = vsyncpa [#allocation5], 1
    %s3936 = scalar_lea.sflag [#allocation5], 1
    %3937 = vsyncpa %s3936, 1

</llo_original>
